<compile_context>
chip_gen: v6e
topology: v6e:2x2x1
jax: 0.10.0
libtpu: 0.0.40
codegen_flags: <defaults>
</compile_context>

<pallas_src>
import jax
import jax.numpy as jnp
from jax.experimental import pallas as pl
from jax.experimental.pallas import tpu as pltpu

# ---- synthetic "mini-BERT" config (small shapes consistent with the module) ----
B, S, H = 2, 8, 32              # batch, seq len, hidden (768 -> 32 for the synthetic model)
N_HEADS, D_HEAD = 2, 16
INTER = 64                      # FFN intermediate
N_LAYERS = 2
VOCAB, TYPE_VOCAB, MAX_POS = 100, 2, 16
LN_EPS = 1e-12
ATT_SCALE = 1.0 / (D_HEAD ** 0.5)
M = B * S                       # total rows, kept resident in VMEM scratch


# ----------------------------- in-kernel math helpers ----------------------------
def _layernorm(x, g, b):
    """LayerNorm over the last axis.  x:[M,H]  g,b:[1,H]"""
    mean = jnp.mean(x, axis=-1, keepdims=True)
    xc = x - mean
    var = jnp.mean(xc * xc, axis=-1, keepdims=True)
    return xc * jax.lax.rsqrt(var + LN_EPS) * g + b


def _gelu_tanh(x):
    """tanh-approx GELU (EUP tanh slot).
    TODO(synk): HF BERT default is exact erf GELU; swap back if bit-parity is required."""
    return 0.5 * x * (1.0 + jnp.tanh(0.7978845608028654 * (x + 0.044715 * x * x * x)))


# ------------------------ single fused forward kernel ----------------------------
def _fwd_kernel(ids_ref, tids_ref,                      # scalar-prefetch (SMEM)
                mask_ref, word_ref, pos_ref, type_ref, eg_ref, eb_ref,
                wqkv_ref, bqkv_ref, wo_ref, bo_ref,
                ln1g_ref, ln1b_ref, w1_ref, b1_ref,
                w2_ref, b2_ref, ln2g_ref, ln2b_ref,
                pw_ref, pb_ref, ow_ref, ob_ref,
                o_ref,                                   # [B, 1] logits (only output)
                x_sc, ctx_sc):                           # VMEM scratch [M, H] x2
    """One grid step == one transformer layer.  x stays resident in VMEM scratch x_sc.
    Layer 0 additionally does the embedding gather + LN; the last layer additionally
    runs the fused pooler -> dropout(identity) -> Linear(H,1) head."""
    layer = pl.program_id(0)

    # ---- layer 0: embedding gather (SMEM ids -> VMEM tables) + embedding LayerNorm ----
    @pl.when(layer == 0)
    def _():
        for b in range(B):
            for s in range(S):
                wid = ids_ref[b, s]
                tid = tids_ref[b, s]
                x_sc[pl.ds(b * S + s, 1), :] = (
                    word_ref[pl.ds(wid, 1), :]
                    + pos_ref[s:s + 1, :]
                    + type_ref[pl.ds(tid, 1), :])
        x_sc[...] = _layernorm(x_sc[...], eg_ref[...], eb_ref[...])

    x = x_sc[...]                                                     # [M, H]
    # additive attention-mask bias built in-register from the [B, S] int mask
    bias = (1.0 - mask_ref[...].astype(jnp.float32)) * -1e9           # [B, S]

    # ---- fused QKV projection: one MXU pass (scale pre-folded into Q columns) ----
    qkv = jnp.dot(x, wqkv_ref[0], preferred_element_type=jnp.float32) + bqkv_ref[0]
    q, k, v = qkv[:, :H], qkv[:, H:2 * H], qkv[:, 2 * H:]

    # ---- attention: static (batch, head) unroll, ctx written in place (no concats) ----
    for b in range(B):
        r0 = b * S
        bias_b = bias[b:b + 1, :]                                     # [1, S] -> bcast over queries
        for h in range(N_HEADS):
            c0 = h * D_HEAD
            qb = q[r0:r0 + S, c0:c0 + D_HEAD]                         # [S, dH]
            kb = k[r0:r0 + S, c0:c0 + D_HEAD]
            vb = v[r0:r0 + S, c0:c0 + D_HEAD]
            s = jax.lax.dot_general(qb, kb, (((1,), (1,)), ((), ())),
                                    preferred_element_type=jnp.float32)   # q @ k^T : [S, S]
            s = s + bias_b
            s = s - jnp.max(s, axis=-1, keepdims=True)
            prob = jnp.exp(s)
            prob = prob * pl.reciprocal(jnp.sum(prob, axis=-1, keepdims=True), approx=True)
            ctx_sc[r0:r0 + S, c0:c0 + D_HEAD] = jnp.dot(
                prob, vb, preferred_element_type=jnp.float32)

    # ---- output projection + add & LN ----
    attn = jnp.dot(ctx_sc[...], wo_ref[0], preferred_element_type=jnp.float32) + bo_ref[0]
    x = _layernorm(attn + x, ln1g_ref[0], ln1b_ref[0])

    # ---- FFN (tanh GELU) + add & LN ----
    hdn = _gelu_tanh(jnp.dot(x, w1_ref[0], preferred_element_type=jnp.float32) + b1_ref[0])
    ffn = jnp.dot(hdn, w2_ref[0], preferred_element_type=jnp.float32) + b2_ref[0]
    x = _layernorm(ffn + x, ln2g_ref[0], ln2b_ref[0])

    x_sc[...] = x

    # ---- last layer: fused pooler + dropout(identity) + Linear(H, 1) epilogue ----
    @pl.when(layer == pl.num_programs(0) - 1)
    def _():
        ow = ow_ref[...]                                              # [1, H]
        for b in range(B):
            cls = x[b * S:b * S + 1, :]                               # [CLS] row, [1, H]
            pooled = jnp.tanh(jnp.dot(cls, pw_ref[...],
                                      preferred_element_type=jnp.float32) + pb_ref[...])
            # self.bert_drop = nn.Dropout(0.3): identity in inference/eval mode
            # TODO(synk): training-mode stochastic dropout (pltpu.prng_*) not applied here.
            # Linear(H, 1) as a lane reduction (avoids an N=1 MXU pass)
            logit = jnp.sum(pooled * ow, axis=-1, keepdims=True) + ob_ref[...]   # [1, 1]
            o_ref[b:b + 1, :] = logit.astype(o_ref.dtype)


# ----------------------------- forward pass ----------------------------------------
def sentiment_classifier_forward(params, input_ids, attention_mask, token_type_ids):
    def shared(d0, d1):
        return pl.BlockSpec((d0, d1), lambda l, ids, tids: (0, 0))

    def per_layer(d0, d1):
        return pl.BlockSpec((1, d0, d1), lambda l, ids, tids: (l, 0, 0))

    grid_spec = pltpu.PrefetchScalarGridSpec(
        num_scalar_prefetch=2,            # input_ids, token_type_ids -> SMEM
        grid=(N_LAYERS,),
        in_specs=[
            shared(B, S),                  # attention mask (int32)
            shared(VOCAB, H),              # word_emb (whole table in VMEM, ~13 KB)
            shared(MAX_POS, H),            # pos_emb
            shared(TYPE_VOCAB, H),         # type_emb
            shared(1, H),                  # emb_ln_g
            shared(1, H),                  # emb_ln_b
            per_layer(H, 3 * H),           # w_qkv (Q cols pre-scaled by 1/sqrt(dH))
            per_layer(1, 3 * H),           # b_qkv
            per_layer(H, H),               # w_o
            per_layer(1, H),               # b_o
            per_layer(1, H),               # ln1_g
            per_layer(1, H),               # ln1_b
            per_layer(H, INTER),           # w_1
            per_layer(1, INTER),           # b_1
            per_layer(INTER, H),           # w_2
            per_layer(1, H),               # b_2
            per_layer(1, H),               # ln2_g
            per_layer(1, H),               # ln2_b
            shared(H, H),                  # pool_w
            shared(1, H),                  # pool_b
            shared(1, H),                  # out_w
            shared(1, 1),                  # out_b
        ],
        out_specs=pl.BlockSpec((B, 1), lambda l, ids, tids: (0, 0)),
        scratch_shapes=[pltpu.VMEM((M, H), jnp.float32),   # x (activation, layer-resident)
                        pltpu.VMEM((M, H), jnp.float32)],  # ctx (attention heads)
    )
    return pl.pallas_call(
        _fwd_kernel,
        grid_spec=grid_spec,
        out_shape=jax.ShapeDtypeStruct((B, 1), jnp.float32),
        compiler_params=pltpu.CompilerParams(dimension_semantics=("arbitrary",)),
    )(input_ids.astype(jnp.int32), token_type_ids.astype(jnp.int32),
      attention_mask.astype(jnp.int32),
      params["word_emb"], params["pos_emb"], params["type_emb"],
      params["emb_ln_g"], params["emb_ln_b"],
      params["w_qkv"], params["b_qkv"], params["w_o"], params["b_o"],
      params["ln1_g"], params["ln1_b"], params["w_1"], params["b_1"],
      params["w_2"], params["b_2"], params["ln2_g"], params["ln2_b"],
      params["pool_w"], params["pool_b"], params["out_w"], params["out_b"])


# ----------------------------- parameter init -------------------------------------
def init_params(key):
    def nrm(k, shape, std=0.02):
        return (std * jax.random.normal(k, shape)).astype(jnp.float32)

    ks = iter(jax.random.split(key, 16))
    w_qkv = nrm(next(ks), (N_LAYERS, H, 3 * H))
    b_qkv = jnp.zeros((N_LAYERS, 1, 3 * H), jnp.float32)
    # one-time weight transform: fold the attention scale into the Q projection
    w_qkv = w_qkv.at[:, :, :H].multiply(ATT_SCALE)
    b_qkv = b_qkv.at[:, :, :H].multiply(ATT_SCALE)
    return {
        "word_emb": nrm(next(ks), (VOCAB, H)),
        "pos_emb": nrm(next(ks), (MAX_POS, H)),
        "type_emb": nrm(next(ks), (TYPE_VOCAB, H)),
        "emb_ln_g": jnp.ones((1, H), jnp.float32),
        "emb_ln_b": jnp.zeros((1, H), jnp.float32),
        # per-layer weights stacked on a leading [N_LAYERS] axis; QKV pre-fused to [H, 3H]
        "w_qkv": w_qkv,
        "b_qkv": b_qkv,
        "w_o": nrm(next(ks), (N_LAYERS, H, H)),
        "b_o": jnp.zeros((N_LAYERS, 1, H), jnp.float32),
        "ln1_g": jnp.ones((N_LAYERS, 1, H), jnp.float32),
        "ln1_b": jnp.zeros((N_LAYERS, 1, H), jnp.float32),
        "w_1": nrm(next(ks), (N_LAYERS, H, INTER)),
        "b_1": jnp.zeros((N_LAYERS, 1, INTER), jnp.float32),
        "w_2": nrm(next(ks), (N_LAYERS, INTER, H)),
        "b_2": jnp.zeros((N_LAYERS, 1, H), jnp.float32),
        "ln2_g": jnp.ones((N_LAYERS, 1, H), jnp.float32),
        "ln2_b": jnp.zeros((N_LAYERS, 1, H), jnp.float32),
        # pooler + classifier
        "pool_w": nrm(next(ks), (H, H)),
        "pool_b": jnp.zeros((1, H), jnp.float32),
        "out_w": nrm(next(ks), (1, H)),      # nn.Linear(hidden, 1) weight, row layout
        "out_b": jnp.zeros((1, 1), jnp.float32),
    }


# ----------------------------------- main -------------------------------------------
if __name__ == "__main__":
    key = jax.random.PRNGKey(0)
    k_param, k_ids, k_type = jax.random.split(key, 3)

    params = init_params(k_param)
    input_ids = jax.random.randint(k_ids, (B, S), 0, VOCAB, dtype=jnp.int32)
    token_type_ids = jax.random.randint(k_type, (B, S), 0, TYPE_VOCAB, dtype=jnp.int32)
    attention_mask = jnp.ones((B, S), dtype=jnp.int32).at[1, S - 2:].set(0)  # pad tail of seq 1

    fwd = jax.jit(sentiment_classifier_forward)
    out = jax.block_until_ready(fwd(params, input_ids, attention_mask, token_type_ids))
    assert out.shape == (B, 1) and out.dtype == jnp.float32
    print("KERNEL_OK")
</pallas_src>

<mosaic_0001>
module attributes {stable_mosaic.version = 11 : i64} {
  func.func @_fwd_kernel(%arg0: i32, %arg1: memref<2x8xi32, #tpu.memory_space<smem>>, %arg2: memref<2x8xi32, #tpu.memory_space<smem>>, %arg3: memref<2x8xi32, #tpu.memory_space<vmem>>, %arg4: memref<100x32xf32, #tpu.memory_space<vmem>>, %arg5: memref<16x32xf32, #tpu.memory_space<vmem>>, %arg6: memref<2x32xf32, #tpu.memory_space<vmem>>, %arg7: memref<1x32xf32, #tpu.memory_space<vmem>>, %arg8: memref<1x32xf32, #tpu.memory_space<vmem>>, %arg9: memref<1x32x96xf32, #tpu.memory_space<vmem>>, %arg10: memref<1x1x96xf32, #tpu.memory_space<vmem>>, %arg11: memref<1x32x32xf32, #tpu.memory_space<vmem>>, %arg12: memref<1x1x32xf32, #tpu.memory_space<vmem>>, %arg13: memref<1x1x32xf32, #tpu.memory_space<vmem>>, %arg14: memref<1x1x32xf32, #tpu.memory_space<vmem>>, %arg15: memref<1x32x64xf32, #tpu.memory_space<vmem>>, %arg16: memref<1x1x64xf32, #tpu.memory_space<vmem>>, %arg17: memref<1x64x32xf32, #tpu.memory_space<vmem>>, %arg18: memref<1x1x32xf32, #tpu.memory_space<vmem>>, %arg19: memref<1x1x32xf32, #tpu.memory_space<vmem>>, %arg20: memref<1x1x32xf32, #tpu.memory_space<vmem>>, %arg21: memref<32x32xf32, #tpu.memory_space<vmem>>, %arg22: memref<1x32xf32, #tpu.memory_space<vmem>>, %arg23: memref<1x32xf32, #tpu.memory_space<vmem>>, %arg24: memref<1x1xf32, #tpu.memory_space<vmem>>, %arg25: memref<2x1xf32, #tpu.memory_space<vmem>>, %arg26: memref<16x32xf32, #tpu.memory_space<vmem>>, %arg27: memref<16x32xf32, #tpu.memory_space<vmem>>) attributes {dimension_semantics = [#tpu.dimension_semantics<arbitrary>], iteration_bounds = array<i64: 2>, scalar_prefetch = 2 : i64, scratch_operands = 2 : i64, tpu.core_type = #tpu.core_type<tc>, window_params = [{pipeline_mode = #tpu.pipeline_mode<synchronous>, transform_indices = @transform_0, window_bounds = array<i64: 2, 8>}, {pipeline_mode = #tpu.pipeline_mode<synchronous>, transform_indices = @transform_1, window_bounds = array<i64: 100, 32>}, {pipeline_mode = #tpu.pipeline_mode<synchronous>, transform_indices = @transform_2, window_bounds = array<i64: 16, 32>}, {pipeline_mode = #tpu.pipeline_mode<synchronous>, transform_indices = @transform_3, window_bounds = array<i64: 2, 32>}, {pipeline_mode = #tpu.pipeline_mode<synchronous>, transform_indices = @transform_4, window_bounds = array<i64: 1, 32>}, {pipeline_mode = #tpu.pipeline_mode<synchronous>, transform_indices = @transform_5, window_bounds = array<i64: 1, 32>}, {transform_indices = @transform_6, window_bounds = array<i64: 1, 32, 96>}, {transform_indices = @transform_7, window_bounds = array<i64: 1, 1, 96>}, {transform_indices = @transform_8, window_bounds = array<i64: 1, 32, 32>}, {transform_indices = @transform_9, window_bounds = array<i64: 1, 1, 32>}, {transform_indices = @transform_10, window_bounds = array<i64: 1, 1, 32>}, {transform_indices = @transform_11, window_bounds = array<i64: 1, 1, 32>}, {transform_indices = @transform_12, window_bounds = array<i64: 1, 32, 64>}, {transform_indices = @transform_13, window_bounds = array<i64: 1, 1, 64>}, {transform_indices = @transform_14, window_bounds = array<i64: 1, 64, 32>}, {transform_indices = @transform_15, window_bounds = array<i64: 1, 1, 32>}, {transform_indices = @transform_16, window_bounds = array<i64: 1, 1, 32>}, {transform_indices = @transform_17, window_bounds = array<i64: 1, 1, 32>}, {pipeline_mode = #tpu.pipeline_mode<synchronous>, transform_indices = @transform_18, window_bounds = array<i64: 32, 32>}, {pipeline_mode = #tpu.pipeline_mode<synchronous>, transform_indices = @transform_19, window_bounds = array<i64: 1, 32>}, {pipeline_mode = #tpu.pipeline_mode<synchronous>, transform_indices = @transform_20, window_bounds = array<i64: 1, 32>}, {pipeline_mode = #tpu.pipeline_mode<synchronous>, transform_indices = @transform_21, window_bounds = array<i64: 1, 1>}, {pipeline_mode = #tpu.pipeline_mode<synchronous>, transform_indices = @transform_22, window_bounds = array<i64: 2, 1>}]} {
    %c0_i32 = arith.constant 0 : i32
    %0 = arith.cmpi eq, %arg0, %c0_i32 : i32
    %1 = arith.extui %0 : i1 to i32
    %c0_i32_0 = arith.constant 0 : i32
    %2 = arith.cmpi ne, %1, %c0_i32_0 : i32
    scf.if %2 {
      %c0_86 = arith.constant 0 : index
      %c0_87 = arith.constant 0 : index
      %183 = memref.load %arg1[%c0_86, %c0_87] : memref<2x8xi32, #tpu.memory_space<smem>>
      %c0_88 = arith.constant 0 : index
      %c0_89 = arith.constant 0 : index
      %184 = memref.load %arg2[%c0_88, %c0_89] : memref<2x8xi32, #tpu.memory_space<smem>>
      %185 = arith.index_cast %183 : i32 to index
      %c0_90 = arith.constant 0 : index
      %186 = vector.load %arg4[%185, %c0_90] : memref<100x32xf32, #tpu.memory_space<vmem>>, vector<1x32xf32>
      %c0_91 = arith.constant 0 : index
      %c0_92 = arith.constant 0 : index
      %187 = vector.load %arg5[%c0_91, %c0_92] : memref<16x32xf32, #tpu.memory_space<vmem>>, vector<1x32xf32>
      %188 = arith.addf %186, %187 : vector<1x32xf32>
      %189 = arith.index_cast %184 : i32 to index
      %c0_93 = arith.constant 0 : index
      %190 = vector.load %arg6[%189, %c0_93] : memref<2x32xf32, #tpu.memory_space<vmem>>, vector<1x32xf32>
      %191 = arith.addf %188, %190 : vector<1x32xf32>
      %c0_94 = arith.constant 0 : index
      %c0_95 = arith.constant 0 : index
      %192 = vector.load %arg26[%c0_94, %c0_95] : memref<16x32xf32, #tpu.memory_space<vmem>>, vector<1x32xf32>
      tpu.vector_store %arg26[%c0_94, %c0_95], %191 {strides = array<i32>} : memref<16x32xf32, #tpu.memory_space<vmem>>, vector<1x32xf32>,
      %c0_96 = arith.constant 0 : index
      %c1 = arith.constant 1 : index
      %193 = memref.load %arg1[%c0_96, %c1] : memref<2x8xi32, #tpu.memory_space<smem>>
      %c0_97 = arith.constant 0 : index
      %c1_98 = arith.constant 1 : index
      %194 = memref.load %arg2[%c0_97, %c1_98] : memref<2x8xi32, #tpu.memory_space<smem>>
      %195 = arith.index_cast %193 : i32 to index
      %c0_99 = arith.constant 0 : index
      %196 = vector.load %arg4[%195, %c0_99] : memref<100x32xf32, #tpu.memory_space<vmem>>, vector<1x32xf32>
      %c1_100 = arith.constant 1 : index
      %c0_101 = arith.constant 0 : index
      %197 = vector.load %arg5[%c1_100, %c0_101] : memref<16x32xf32, #tpu.memory_space<vmem>>, vector<1x32xf32>
      %198 = arith.addf %196, %197 : vector<1x32xf32>
      %199 = arith.index_cast %194 : i32 to index
      %c0_102 = arith.constant 0 : index
      %200 = vector.load %arg6[%199, %c0_102] : memref<2x32xf32, #tpu.memory_space<vmem>>, vector<1x32xf32>
      %201 = arith.addf %198, %200 : vector<1x32xf32>
      %c1_103 = arith.constant 1 : index
      %c0_104 = arith.constant 0 : index
      %202 = vector.load %arg26[%c1_103, %c0_104] : memref<16x32xf32, #tpu.memory_space<vmem>>, vector<1x32xf32>
      tpu.vector_store %arg26[%c1_103, %c0_104], %201 {strides = array<i32>} : memref<16x32xf32, #tpu.memory_space<vmem>>, vector<1x32xf32>,
      %c0_105 = arith.constant 0 : index
      %c2 = arith.constant 2 : index
      %203 = memref.load %arg1[%c0_105, %c2] : memref<2x8xi32, #tpu.memory_space<smem>>
      %c0_106 = arith.constant 0 : index
      %c2_107 = arith.constant 2 : index
      %204 = memref.load %arg2[%c0_106, %c2_107] : memref<2x8xi32, #tpu.memory_space<smem>>
      %205 = arith.index_cast %203 : i32 to index
      %c0_108 = arith.constant 0 : index
      %206 = vector.load %arg4[%205, %c0_108] : memref<100x32xf32, #tpu.memory_space<vmem>>, vector<1x32xf32>
      %c2_109 = arith.constant 2 : index
      %c0_110 = arith.constant 0 : index
      %207 = vector.load %arg5[%c2_109, %c0_110] : memref<16x32xf32, #tpu.memory_space<vmem>>, vector<1x32xf32>
      %208 = arith.addf %206, %207 : vector<1x32xf32>
      %209 = arith.index_cast %204 : i32 to index
      %c0_111 = arith.constant 0 : index
      %210 = vector.load %arg6[%209, %c0_111] : memref<2x32xf32, #tpu.memory_space<vmem>>, vector<1x32xf32>
      %211 = arith.addf %208, %210 : vector<1x32xf32>
      %c2_112 = arith.constant 2 : index
      %c0_113 = arith.constant 0 : index
      %212 = vector.load %arg26[%c2_112, %c0_113] : memref<16x32xf32, #tpu.memory_space<vmem>>, vector<1x32xf32>
      tpu.vector_store %arg26[%c2_112, %c0_113], %211 {strides = array<i32>} : memref<16x32xf32, #tpu.memory_space<vmem>>, vector<1x32xf32>,
      %c0_114 = arith.constant 0 : index
      %c3 = arith.constant 3 : index
      %213 = memref.load %arg1[%c0_114, %c3] : memref<2x8xi32, #tpu.memory_space<smem>>
      %c0_115 = arith.constant 0 : index
      %c3_116 = arith.constant 3 : index
      %214 = memref.load %arg2[%c0_115, %c3_116] : memref<2x8xi32, #tpu.memory_space<smem>>
      %215 = arith.index_cast %213 : i32 to index
      %c0_117 = arith.constant 0 : index
      %216 = vector.load %arg4[%215, %c0_117] : memref<100x32xf32, #tpu.memory_space<vmem>>, vector<1x32xf32>
      %c3_118 = arith.constant 3 : index
      %c0_119 = arith.constant 0 : index
      %217 = vector.load %arg5[%c3_118, %c0_119] : memref<16x32xf32, #tpu.memory_space<vmem>>, vector<1x32xf32>
      %218 = arith.addf %216, %217 : vector<1x32xf32>
      %219 = arith.index_cast %214 : i32 to index
      %c0_120 = arith.constant 0 : index
      %220 = vector.load %arg6[%219, %c0_120] : memref<2x32xf32, #tpu.memory_space<vmem>>, vector<1x32xf32>
      %221 = arith.addf %218, %220 : vector<1x32xf32>
      %c3_121 = arith.constant 3 : index
      %c0_122 = arith.constant 0 : index
      %222 = vector.load %arg26[%c3_121, %c0_122] : memref<16x32xf32, #tpu.memory_space<vmem>>, vector<1x32xf32>
      tpu.vector_store %arg26[%c3_121, %c0_122], %221 {strides = array<i32>} : memref<16x32xf32, #tpu.memory_space<vmem>>, vector<1x32xf32>,
      %c0_123 = arith.constant 0 : index
      %c4 = arith.constant 4 : index
      %223 = memref.load %arg1[%c0_123, %c4] : memref<2x8xi32, #tpu.memory_space<smem>>
      %c0_124 = arith.constant 0 : index
      %c4_125 = arith.constant 4 : index
      %224 = memref.load %arg2[%c0_124, %c4_125] : memref<2x8xi32, #tpu.memory_space<smem>>
      %225 = arith.index_cast %223 : i32 to index
      %c0_126 = arith.constant 0 : index
      %226 = vector.load %arg4[%225, %c0_126] : memref<100x32xf32, #tpu.memory_space<vmem>>, vector<1x32xf32>
      %c4_127 = arith.constant 4 : index
      %c0_128 = arith.constant 0 : index
      %227 = vector.load %arg5[%c4_127, %c0_128] : memref<16x32xf32, #tpu.memory_space<vmem>>, vector<1x32xf32>
      %228 = arith.addf %226, %227 : vector<1x32xf32>
      %229 = arith.index_cast %224 : i32 to index
      %c0_129 = arith.constant 0 : index
      %230 = vector.load %arg6[%229, %c0_129] : memref<2x32xf32, #tpu.memory_space<vmem>>, vector<1x32xf32>
      %231 = arith.addf %228, %230 : vector<1x32xf32>
      %c4_130 = arith.constant 4 : index
      %c0_131 = arith.constant 0 : index
      %232 = vector.load %arg26[%c4_130, %c0_131] : memref<16x32xf32, #tpu.memory_space<vmem>>, vector<1x32xf32>
      tpu.vector_store %arg26[%c4_130, %c0_131], %231 {strides = array<i32>} : memref<16x32xf32, #tpu.memory_space<vmem>>, vector<1x32xf32>,
      %c0_132 = arith.constant 0 : index
      %c5 = arith.constant 5 : index
      %233 = memref.load %arg1[%c0_132, %c5] : memref<2x8xi32, #tpu.memory_space<smem>>
      %c0_133 = arith.constant 0 : index
      %c5_134 = arith.constant 5 : index
      %234 = memref.load %arg2[%c0_133, %c5_134] : memref<2x8xi32, #tpu.memory_space<smem>>
      %235 = arith.index_cast %233 : i32 to index
      %c0_135 = arith.constant 0 : index
      %236 = vector.load %arg4[%235, %c0_135] : memref<100x32xf32, #tpu.memory_space<vmem>>, vector<1x32xf32>
      %c5_136 = arith.constant 5 : index
      %c0_137 = arith.constant 0 : index
      %237 = vector.load %arg5[%c5_136, %c0_137] : memref<16x32xf32, #tpu.memory_space<vmem>>, vector<1x32xf32>
      %238 = arith.addf %236, %237 : vector<1x32xf32>
      %239 = arith.index_cast %234 : i32 to index
      %c0_138 = arith.constant 0 : index
      %240 = vector.load %arg6[%239, %c0_138] : memref<2x32xf32, #tpu.memory_space<vmem>>, vector<1x32xf32>
      %241 = arith.addf %238, %240 : vector<1x32xf32>
      %c5_139 = arith.constant 5 : index
      %c0_140 = arith.constant 0 : index
      %242 = vector.load %arg26[%c5_139, %c0_140] : memref<16x32xf32, #tpu.memory_space<vmem>>, vector<1x32xf32>
      tpu.vector_store %arg26[%c5_139, %c0_140], %241 {strides = array<i32>} : memref<16x32xf32, #tpu.memory_space<vmem>>, vector<1x32xf32>,
      %c0_141 = arith.constant 0 : index
      %c6 = arith.constant 6 : index
      %243 = memref.load %arg1[%c0_141, %c6] : memref<2x8xi32, #tpu.memory_space<smem>>
      %c0_142 = arith.constant 0 : index
      %c6_143 = arith.constant 6 : index
      %244 = memref.load %arg2[%c0_142, %c6_143] : memref<2x8xi32, #tpu.memory_space<smem>>
      %245 = arith.index_cast %243 : i32 to index
      %c0_144 = arith.constant 0 : index
      %246 = vector.load %arg4[%245, %c0_144] : memref<100x32xf32, #tpu.memory_space<vmem>>, vector<1x32xf32>
      %c6_145 = arith.constant 6 : index
      %c0_146 = arith.constant 0 : index
      %247 = vector.load %arg5[%c6_145, %c0_146] : memref<16x32xf32, #tpu.memory_space<vmem>>, vector<1x32xf32>
      %248 = arith.addf %246, %247 : vector<1x32xf32>
      %249 = arith.index_cast %244 : i32 to index
      %c0_147 = arith.constant 0 : index
      %250 = vector.load %arg6[%249, %c0_147] : memref<2x32xf32, #tpu.memory_space<vmem>>, vector<1x32xf32>
      %251 = arith.addf %248, %250 : vector<1x32xf32>
      %c6_148 = arith.constant 6 : index
      %c0_149 = arith.constant 0 : index
      %252 = vector.load %arg26[%c6_148, %c0_149] : memref<16x32xf32, #tpu.memory_space<vmem>>, vector<1x32xf32>
      tpu.vector_store %arg26[%c6_148, %c0_149], %251 {strides = array<i32>} : memref<16x32xf32, #tpu.memory_space<vmem>>, vector<1x32xf32>,
      %c0_150 = arith.constant 0 : index
      %c7 = arith.constant 7 : index
      %253 = memref.load %arg1[%c0_150, %c7] : memref<2x8xi32, #tpu.memory_space<smem>>
      %c0_151 = arith.constant 0 : index
      %c7_152 = arith.constant 7 : index
      %254 = memref.load %arg2[%c0_151, %c7_152] : memref<2x8xi32, #tpu.memory_space<smem>>
      %255 = arith.index_cast %253 : i32 to index
      %c0_153 = arith.constant 0 : index
      %256 = vector.load %arg4[%255, %c0_153] : memref<100x32xf32, #tpu.memory_space<vmem>>, vector<1x32xf32>
      %c7_154 = arith.constant 7 : index
      %c0_155 = arith.constant 0 : index
      %257 = vector.load %arg5[%c7_154, %c0_155] : memref<16x32xf32, #tpu.memory_space<vmem>>, vector<1x32xf32>
      %258 = arith.addf %256, %257 : vector<1x32xf32>
      %259 = arith.index_cast %254 : i32 to index
      %c0_156 = arith.constant 0 : index
      %260 = vector.load %arg6[%259, %c0_156] : memref<2x32xf32, #tpu.memory_space<vmem>>, vector<1x32xf32>
      %261 = arith.addf %258, %260 : vector<1x32xf32>
      %c7_157 = arith.constant 7 : index
      %c0_158 = arith.constant 0 : index
      %262 = vector.load %arg26[%c7_157, %c0_158] : memref<16x32xf32, #tpu.memory_space<vmem>>, vector<1x32xf32>
      tpu.vector_store %arg26[%c7_157, %c0_158], %261 {strides = array<i32>} : memref<16x32xf32, #tpu.memory_space<vmem>>, vector<1x32xf32>,
      %c1_159 = arith.constant 1 : index
      %c0_160 = arith.constant 0 : index
      %263 = memref.load %arg1[%c1_159, %c0_160] : memref<2x8xi32, #tpu.memory_space<smem>>
      %c1_161 = arith.constant 1 : index
      %c0_162 = arith.constant 0 : index
      %264 = memref.load %arg2[%c1_161, %c0_162] : memref<2x8xi32, #tpu.memory_space<smem>>
      %265 = arith.index_cast %263 : i32 to index
      %c0_163 = arith.constant 0 : index
      %266 = vector.load %arg4[%265, %c0_163] : memref<100x32xf32, #tpu.memory_space<vmem>>, vector<1x32xf32>
      %c0_164 = arith.constant 0 : index
      %c0_165 = arith.constant 0 : index
      %267 = vector.load %arg5[%c0_164, %c0_165] : memref<16x32xf32, #tpu.memory_space<vmem>>, vector<1x32xf32>
      %268 = arith.addf %266, %267 : vector<1x32xf32>
      %269 = arith.index_cast %264 : i32 to index
      %c0_166 = arith.constant 0 : index
      %270 = vector.load %arg6[%269, %c0_166] : memref<2x32xf32, #tpu.memory_space<vmem>>, vector<1x32xf32>
      %271 = arith.addf %268, %270 : vector<1x32xf32>
      %c8_167 = arith.constant 8 : index
      %c0_168 = arith.constant 0 : index
      %272 = vector.load %arg26[%c8_167, %c0_168] : memref<16x32xf32, #tpu.memory_space<vmem>>, vector<1x32xf32>
      tpu.vector_store %arg26[%c8_167, %c0_168], %271 {strides = array<i32>} : memref<16x32xf32, #tpu.memory_space<vmem>>, vector<1x32xf32>,
      %c1_169 = arith.constant 1 : index
      %c1_170 = arith.constant 1 : index
      %273 = memref.load %arg1[%c1_169, %c1_170] : memref<2x8xi32, #tpu.memory_space<smem>>
      %c1_171 = arith.constant 1 : index
      %c1_172 = arith.constant 1 : index
      %274 = memref.load %arg2[%c1_171, %c1_172] : memref<2x8xi32, #tpu.memory_space<smem>>
      %275 = arith.index_cast %273 : i32 to index
      %c0_173 = arith.constant 0 : index
      %276 = vector.load %arg4[%275, %c0_173] : memref<100x32xf32, #tpu.memory_space<vmem>>, vector<1x32xf32>
      %c1_174 = arith.constant 1 : index
      %c0_175 = arith.constant 0 : index
      %277 = vector.load %arg5[%c1_174, %c0_175] : memref<16x32xf32, #tpu.memory_space<vmem>>, vector<1x32xf32>
      %278 = arith.addf %276, %277 : vector<1x32xf32>
      %279 = arith.index_cast %274 : i32 to index
      %c0_176 = arith.constant 0 : index
      %280 = vector.load %arg6[%279, %c0_176] : memref<2x32xf32, #tpu.memory_space<vmem>>, vector<1x32xf32>
      %281 = arith.addf %278, %280 : vector<1x32xf32>
      %c9 = arith.constant 9 : index
      %c0_177 = arith.constant 0 : index
      %282 = vector.load %arg26[%c9, %c0_177] : memref<16x32xf32, #tpu.memory_space<vmem>>, vector<1x32xf32>
      tpu.vector_store %arg26[%c9, %c0_177], %281 {strides = array<i32>} : memref<16x32xf32, #tpu.memory_space<vmem>>, vector<1x32xf32>,
      %c1_178 = arith.constant 1 : index
      %c2_179 = arith.constant 2 : index
      %283 = memref.load %arg1[%c1_178, %c2_179] : memref<2x8xi32, #tpu.memory_space<smem>>
      %c1_180 = arith.constant 1 : index
      %c2_181 = arith.constant 2 : index
      %284 = memref.load %arg2[%c1_180, %c2_181] : memref<2x8xi32, #tpu.memory_space<smem>>
      %285 = arith.index_cast %283 : i32 to index
      %c0_182 = arith.constant 0 : index
      %286 = vector.load %arg4[%285, %c0_182] : memref<100x32xf32, #tpu.memory_space<vmem>>, vector<1x32xf32>
      %c2_183 = arith.constant 2 : index
      %c0_184 = arith.constant 0 : index
      %287 = vector.load %arg5[%c2_183, %c0_184] : memref<16x32xf32, #tpu.memory_space<vmem>>, vector<1x32xf32>
      %288 = arith.addf %286, %287 : vector<1x32xf32>
      %289 = arith.index_cast %284 : i32 to index
      %c0_185 = arith.constant 0 : index
      %290 = vector.load %arg6[%289, %c0_185] : memref<2x32xf32, #tpu.memory_space<vmem>>, vector<1x32xf32>
      %291 = arith.addf %288, %290 : vector<1x32xf32>
      %c10 = arith.constant 10 : index
      %c0_186 = arith.constant 0 : index
      %292 = vector.load %arg26[%c10, %c0_186] : memref<16x32xf32, #tpu.memory_space<vmem>>, vector<1x32xf32>
      tpu.vector_store %arg26[%c10, %c0_186], %291 {strides = array<i32>} : memref<16x32xf32, #tpu.memory_space<vmem>>, vector<1x32xf32>,
      %c1_187 = arith.constant 1 : index
      %c3_188 = arith.constant 3 : index
      %293 = memref.load %arg1[%c1_187, %c3_188] : memref<2x8xi32, #tpu.memory_space<smem>>
      %c1_189 = arith.constant 1 : index
      %c3_190 = arith.constant 3 : index
      %294 = memref.load %arg2[%c1_189, %c3_190] : memref<2x8xi32, #tpu.memory_space<smem>>
      %295 = arith.index_cast %293 : i32 to index
      %c0_191 = arith.constant 0 : index
      %296 = vector.load %arg4[%295, %c0_191] : memref<100x32xf32, #tpu.memory_space<vmem>>, vector<1x32xf32>
      %c3_192 = arith.constant 3 : index
      %c0_193 = arith.constant 0 : index
      %297 = vector.load %arg5[%c3_192, %c0_193] : memref<16x32xf32, #tpu.memory_space<vmem>>, vector<1x32xf32>
      %298 = arith.addf %296, %297 : vector<1x32xf32>
      %299 = arith.index_cast %294 : i32 to index
      %c0_194 = arith.constant 0 : index
      %300 = vector.load %arg6[%299, %c0_194] : memref<2x32xf32, #tpu.memory_space<vmem>>, vector<1x32xf32>
      %301 = arith.addf %298, %300 : vector<1x32xf32>
      %c11 = arith.constant 11 : index
      %c0_195 = arith.constant 0 : index
      %302 = vector.load %arg26[%c11, %c0_195] : memref<16x32xf32, #tpu.memory_space<vmem>>, vector<1x32xf32>
      tpu.vector_store %arg26[%c11, %c0_195], %301 {strides = array<i32>} : memref<16x32xf32, #tpu.memory_space<vmem>>, vector<1x32xf32>,
      %c1_196 = arith.constant 1 : index
      %c4_197 = arith.constant 4 : index
      %303 = memref.load %arg1[%c1_196, %c4_197] : memref<2x8xi32, #tpu.memory_space<smem>>
      %c1_198 = arith.constant 1 : index
      %c4_199 = arith.constant 4 : index
      %304 = memref.load %arg2[%c1_198, %c4_199] : memref<2x8xi32, #tpu.memory_space<smem>>
      %305 = arith.index_cast %303 : i32 to index
      %c0_200 = arith.constant 0 : index
      %306 = vector.load %arg4[%305, %c0_200] : memref<100x32xf32, #tpu.memory_space<vmem>>, vector<1x32xf32>
      %c4_201 = arith.constant 4 : index
      %c0_202 = arith.constant 0 : index
      %307 = vector.load %arg5[%c4_201, %c0_202] : memref<16x32xf32, #tpu.memory_space<vmem>>, vector<1x32xf32>
      %308 = arith.addf %306, %307 : vector<1x32xf32>
      %309 = arith.index_cast %304 : i32 to index
      %c0_203 = arith.constant 0 : index
      %310 = vector.load %arg6[%309, %c0_203] : memref<2x32xf32, #tpu.memory_space<vmem>>, vector<1x32xf32>
      %311 = arith.addf %308, %310 : vector<1x32xf32>
      %c12 = arith.constant 12 : index
      %c0_204 = arith.constant 0 : index
      %312 = vector.load %arg26[%c12, %c0_204] : memref<16x32xf32, #tpu.memory_space<vmem>>, vector<1x32xf32>
      tpu.vector_store %arg26[%c12, %c0_204], %311 {strides = array<i32>} : memref<16x32xf32, #tpu.memory_space<vmem>>, vector<1x32xf32>,
      %c1_205 = arith.constant 1 : index
      %c5_206 = arith.constant 5 : index
      %313 = memref.load %arg1[%c1_205, %c5_206] : memref<2x8xi32, #tpu.memory_space<smem>>
      %c1_207 = arith.constant 1 : index
      %c5_208 = arith.constant 5 : index
      %314 = memref.load %arg2[%c1_207, %c5_208] : memref<2x8xi32, #tpu.memory_space<smem>>
      %315 = arith.index_cast %313 : i32 to index
      %c0_209 = arith.constant 0 : index
      %316 = vector.load %arg4[%315, %c0_209] : memref<100x32xf32, #tpu.memory_space<vmem>>, vector<1x32xf32>
      %c5_210 = arith.constant 5 : index
      %c0_211 = arith.constant 0 : index
      %317 = vector.load %arg5[%c5_210, %c0_211] : memref<16x32xf32, #tpu.memory_space<vmem>>, vector<1x32xf32>
      %318 = arith.addf %316, %317 : vector<1x32xf32>
      %319 = arith.index_cast %314 : i32 to index
      %c0_212 = arith.constant 0 : index
      %320 = vector.load %arg6[%319, %c0_212] : memref<2x32xf32, #tpu.memory_space<vmem>>, vector<1x32xf32>
      %321 = arith.addf %318, %320 : vector<1x32xf32>
      %c13 = arith.constant 13 : index
      %c0_213 = arith.constant 0 : index
      %322 = vector.load %arg26[%c13, %c0_213] : memref<16x32xf32, #tpu.memory_space<vmem>>, vector<1x32xf32>
      tpu.vector_store %arg26[%c13, %c0_213], %321 {strides = array<i32>} : memref<16x32xf32, #tpu.memory_space<vmem>>, vector<1x32xf32>,
      %c1_214 = arith.constant 1 : index
      %c6_215 = arith.constant 6 : index
      %323 = memref.load %arg1[%c1_214, %c6_215] : memref<2x8xi32, #tpu.memory_space<smem>>
      %c1_216 = arith.constant 1 : index
      %c6_217 = arith.constant 6 : index
      %324 = memref.load %arg2[%c1_216, %c6_217] : memref<2x8xi32, #tpu.memory_space<smem>>
      %325 = arith.index_cast %323 : i32 to index
      %c0_218 = arith.constant 0 : index
      %326 = vector.load %arg4[%325, %c0_218] : memref<100x32xf32, #tpu.memory_space<vmem>>, vector<1x32xf32>
      %c6_219 = arith.constant 6 : index
      %c0_220 = arith.constant 0 : index
      %327 = vector.load %arg5[%c6_219, %c0_220] : memref<16x32xf32, #tpu.memory_space<vmem>>, vector<1x32xf32>
      %328 = arith.addf %326, %327 : vector<1x32xf32>
      %329 = arith.index_cast %324 : i32 to index
      %c0_221 = arith.constant 0 : index
      %330 = vector.load %arg6[%329, %c0_221] : memref<2x32xf32, #tpu.memory_space<vmem>>, vector<1x32xf32>
      %331 = arith.addf %328, %330 : vector<1x32xf32>
      %c14 = arith.constant 14 : index
      %c0_222 = arith.constant 0 : index
      %332 = vector.load %arg26[%c14, %c0_222] : memref<16x32xf32, #tpu.memory_space<vmem>>, vector<1x32xf32>
      tpu.vector_store %arg26[%c14, %c0_222], %331 {strides = array<i32>} : memref<16x32xf32, #tpu.memory_space<vmem>>, vector<1x32xf32>,
      %c1_223 = arith.constant 1 : index
      %c7_224 = arith.constant 7 : index
      %333 = memref.load %arg1[%c1_223, %c7_224] : memref<2x8xi32, #tpu.memory_space<smem>>
      %c1_225 = arith.constant 1 : index
      %c7_226 = arith.constant 7 : index
      %334 = memref.load %arg2[%c1_225, %c7_226] : memref<2x8xi32, #tpu.memory_space<smem>>
      %335 = arith.index_cast %333 : i32 to index
      %c0_227 = arith.constant 0 : index
      %336 = vector.load %arg4[%335, %c0_227] : memref<100x32xf32, #tpu.memory_space<vmem>>, vector<1x32xf32>
      %c7_228 = arith.constant 7 : index
      %c0_229 = arith.constant 0 : index
      %337 = vector.load %arg5[%c7_228, %c0_229] : memref<16x32xf32, #tpu.memory_space<vmem>>, vector<1x32xf32>
      %338 = arith.addf %336, %337 : vector<1x32xf32>
      %339 = arith.index_cast %334 : i32 to index
      %c0_230 = arith.constant 0 : index
      %340 = vector.load %arg6[%339, %c0_230] : memref<2x32xf32, #tpu.memory_space<vmem>>, vector<1x32xf32>
      %341 = arith.addf %338, %340 : vector<1x32xf32>
      %c15 = arith.constant 15 : index
      %c0_231 = arith.constant 0 : index
      %342 = vector.load %arg26[%c15, %c0_231] : memref<16x32xf32, #tpu.memory_space<vmem>>, vector<1x32xf32>
      tpu.vector_store %arg26[%c15, %c0_231], %341 {strides = array<i32>} : memref<16x32xf32, #tpu.memory_space<vmem>>, vector<1x32xf32>,
      %c0_232 = arith.constant 0 : index
      %c0_233 = arith.constant 0 : index
      %343 = vector.load %arg26[%c0_232, %c0_233] : memref<16x32xf32, #tpu.memory_space<vmem>>, vector<16x32xf32>
      %c0_234 = arith.constant 0 : index
      %c0_235 = arith.constant 0 : index
      %344 = vector.load %arg7[%c0_234, %c0_235] : memref<1x32xf32, #tpu.memory_space<vmem>>, vector<1x32xf32>
      %c0_236 = arith.constant 0 : index
      %c0_237 = arith.constant 0 : index
      %345 = vector.load %arg8[%c0_236, %c0_237] : memref<1x32xf32, #tpu.memory_space<vmem>>, vector<1x32xf32>
      %cst_238 = arith.constant dense<0.000000e+00> : vector<16xf32>
      %346 = vector.multi_reduction <add>, %343, %cst_238 [1] : vector<16x32xf32> to vector<16xf32>
      %347 = vector.shape_cast %346 : vector<16xf32> to vector<16x1xf32>
      %cst_239 = arith.constant 3.200000e+01 : f32
      %348 = vector.broadcast %cst_239 : f32 to vector<16x1xf32>
      %349 = arith.divf %347, %348 : vector<16x1xf32>
      %350 = vector.broadcast %349 : vector<16x1xf32> to vector<16x32xf32>
      %351 = arith.subf %343, %350 : vector<16x32xf32>
      %352 = arith.mulf %351, %351 : vector<16x32xf32>
      %cst_240 = arith.constant dense<0.000000e+00> : vector<16xf32>
      %353 = vector.multi_reduction <add>, %352, %cst_240 [1] : vector<16x32xf32> to vector<16xf32>
      %354 = vector.shape_cast %353 : vector<16xf32> to vector<16x1xf32>
      %cst_241 = arith.constant 3.200000e+01 : f32
      %355 = vector.broadcast %cst_241 : f32 to vector<16x1xf32>
      %356 = arith.divf %354, %355 : vector<16x1xf32>
      %cst_242 = arith.constant 9.99999996E-13 : f32
      %357 = vector.broadcast %cst_242 : f32 to vector<16x1xf32>
      %358 = arith.addf %356, %357 : vector<16x1xf32>
      %359 = math.rsqrt %358 : vector<16x1xf32>
      %360 = vector.broadcast %359 : vector<16x1xf32> to vector<16x32xf32>
      %361 = arith.mulf %351, %360 : vector<16x32xf32>
      %362 = vector.broadcast %344 : vector<1x32xf32> to vector<16x32xf32>
      %363 = arith.mulf %361, %362 : vector<16x32xf32>
      %364 = vector.broadcast %345 : vector<1x32xf32> to vector<16x32xf32>
      %365 = arith.addf %363, %364 : vector<16x32xf32>
      %c0_243 = arith.constant 0 : index
      %c0_244 = arith.constant 0 : index
      %366 = vector.load %arg26[%c0_243, %c0_244] : memref<16x32xf32, #tpu.memory_space<vmem>>, vector<16x32xf32>
      tpu.vector_store %arg26[%c0_243, %c0_244], %365 {strides = array<i32>} : memref<16x32xf32, #tpu.memory_space<vmem>>, vector<16x32xf32>,
    } else {
    }
    %c0 = arith.constant 0 : index
    %c0_1 = arith.constant 0 : index
    %3 = vector.load %arg26[%c0, %c0_1] : memref<16x32xf32, #tpu.memory_space<vmem>>, vector<16x32xf32>
    %c0_2 = arith.constant 0 : index
    %c0_3 = arith.constant 0 : index
    %4 = vector.load %arg3[%c0_2, %c0_3] : memref<2x8xi32, #tpu.memory_space<vmem>>, vector<2x8xi32>
    %5 = arith.sitofp %4 : vector<2x8xi32> to vector<2x8xf32>
    %cst = arith.constant 1.000000e+00 : f32
    %6 = vector.broadcast %cst : f32 to vector<2x8xf32>
    %7 = arith.subf %6, %5 : vector<2x8xf32>
    %cst_4 = arith.constant -1.000000e+09 : f32
    %8 = vector.broadcast %cst_4 : f32 to vector<2x8xf32>
    %9 = arith.mulf %7, %8 : vector<2x8xf32>
    %c0_5 = arith.constant 0 : index
    %c0_6 = arith.constant 0 : index
    %c0_7 = arith.constant 0 : index
    %10 = vector.load %arg9[%c0_5, %c0_6, %c0_7] : memref<1x32x96xf32, #tpu.memory_space<vmem>>, vector<1x32x96xf32>
    %11 = vector.shape_cast %10 : vector<1x32x96xf32> to vector<32x96xf32>
    %cst_8 = arith.constant dense<0.000000e+00> : vector<16x96xf32>
    %12 = tpu.matmul %3, %11, %cst_8 {dimension_numbers = #tpu.dot_dimension_numbers<[1], [0], [0], [1], [0, 0, 1, 1], [], []>} : vector<16x32xf32>, vector<32x96xf32>, vector<16x96xf32> -> vector<16x96xf32>
    %c0_9 = arith.constant 0 : index
    %c0_10 = arith.constant 0 : index
    %c0_11 = arith.constant 0 : index
    %13 = vector.load %arg10[%c0_9, %c0_10, %c0_11] : memref<1x1x96xf32, #tpu.memory_space<vmem>>, vector<1x1x96xf32>
    %14 = vector.shape_cast %13 : vector<1x1x96xf32> to vector<1x96xf32>
    %15 = vector.broadcast %14 : vector<1x96xf32> to vector<16x96xf32>
    %16 = arith.addf %12, %15 : vector<16x96xf32>
    %17 = vector.extract_strided_slice %16 {offsets = [0, 0], sizes = [16, 32], strides = [1, 1]} : vector<16x96xf32> to vector<16x32xf32>
    %18 = vector.extract_strided_slice %16 {offsets = [0, 32], sizes = [16, 32], strides = [1, 1]} : vector<16x96xf32> to vector<16x32xf32>
    %19 = vector.extract_strided_slice %16 {offsets = [0, 64], sizes = [16, 32], strides = [1, 1]} : vector<16x96xf32> to vector<16x32xf32>
    %20 = vector.extract_strided_slice %9 {offsets = [0, 0], sizes = [1, 8], strides = [1, 1]} : vector<2x8xf32> to vector<1x8xf32>
    %21 = vector.extract_strided_slice %17 {offsets = [0, 0], sizes = [8, 16], strides = [1, 1]} : vector<16x32xf32> to vector<8x16xf32>
    %22 = vector.extract_strided_slice %18 {offsets = [0, 0], sizes = [8, 16], strides = [1, 1]} : vector<16x32xf32> to vector<8x16xf32>
    %23 = vector.extract_strided_slice %19 {offsets = [0, 0], sizes = [8, 16], strides = [1, 1]} : vector<16x32xf32> to vector<8x16xf32>
    %cst_12 = arith.constant dense<0.000000e+00> : vector<8x8xf32>
    %24 = tpu.matmul %21, %22, %cst_12 {dimension_numbers = #tpu.dot_dimension_numbers<[1], [1], [0], [0], [0, 0, 1, 0], [], []>} : vector<8x16xf32>, vector<8x16xf32>, vector<8x8xf32> -> vector<8x8xf32>
    %25 = vector.broadcast %20 : vector<1x8xf32> to vector<8x8xf32>
    %26 = arith.addf %24, %25 : vector<8x8xf32>
    %cst_13 = arith.constant dense<0xFF800000> : vector<8xf32>
    %27 = vector.multi_reduction <maximumf>, %26, %cst_13 [1] : vector<8x8xf32> to vector<8xf32>
    %28 = vector.shape_cast %27 : vector<8xf32> to vector<8x1xf32>
    %29 = vector.broadcast %28 : vector<8x1xf32> to vector<8x8xf32>
    %30 = arith.subf %26, %29 : vector<8x8xf32>
    %31 = math.exp %30 : vector<8x8xf32>
    %cst_14 = arith.constant dense<0.000000e+00> : vector<8xf32>
    %32 = vector.multi_reduction <add>, %31, %cst_14 [1] : vector<8x8xf32> to vector<8xf32>
    %33 = vector.shape_cast %32 : vector<8xf32> to vector<8x1xf32>
    %34 = tpu.reciprocal %33 {approx = true} : vector<8x1xf32> -> vector<8x1xf32>
    %35 = vector.broadcast %34 : vector<8x1xf32> to vector<8x8xf32>
    %36 = arith.mulf %31, %35 : vector<8x8xf32>
    %cst_15 = arith.constant dense<0.000000e+00> : vector<8x16xf32>
    %37 = tpu.matmul %36, %23, %cst_15 {dimension_numbers = #tpu.dot_dimension_numbers<[1], [0], [0], [1], [0, 0, 1, 1], [], []>} : vector<8x8xf32>, vector<8x16xf32>, vector<8x16xf32> -> vector<8x16xf32>
    %c0_16 = arith.constant 0 : index
    %c0_17 = arith.constant 0 : index
    %38 = vector.load %arg27[%c0_16, %c0_17] : memref<16x32xf32, #tpu.memory_space<vmem>>, vector<8x16xf32>
    tpu.vector_store %arg27[%c0_16, %c0_17], %37 {strides = array<i32>} : memref<16x32xf32, #tpu.memory_space<vmem>>, vector<8x16xf32>,
    %39 = vector.extract_strided_slice %17 {offsets = [0, 16], sizes = [8, 16], strides = [1, 1]} : vector<16x32xf32> to vector<8x16xf32>
    %40 = vector.extract_strided_slice %18 {offsets = [0, 16], sizes = [8, 16], strides = [1, 1]} : vector<16x32xf32> to vector<8x16xf32>
    %41 = vector.extract_strided_slice %19 {offsets = [0, 16], sizes = [8, 16], strides = [1, 1]} : vector<16x32xf32> to vector<8x16xf32>
    %cst_18 = arith.constant dense<0.000000e+00> : vector<8x8xf32>
    %42 = tpu.matmul %39, %40, %cst_18 {dimension_numbers = #tpu.dot_dimension_numbers<[1], [1], [0], [0], [0, 0, 1, 0], [], []>} : vector<8x16xf32>, vector<8x16xf32>, vector<8x8xf32> -> vector<8x8xf32>
    %43 = vector.broadcast %20 : vector<1x8xf32> to vector<8x8xf32>
    %44 = arith.addf %42, %43 : vector<8x8xf32>
    %cst_19 = arith.constant dense<0xFF800000> : vector<8xf32>
    %45 = vector.multi_reduction <maximumf>, %44, %cst_19 [1] : vector<8x8xf32> to vector<8xf32>
    %46 = vector.shape_cast %45 : vector<8xf32> to vector<8x1xf32>
    %47 = vector.broadcast %46 : vector<8x1xf32> to vector<8x8xf32>
    %48 = arith.subf %44, %47 : vector<8x8xf32>
    %49 = math.exp %48 : vector<8x8xf32>
    %cst_20 = arith.constant dense<0.000000e+00> : vector<8xf32>
    %50 = vector.multi_reduction <add>, %49, %cst_20 [1] : vector<8x8xf32> to vector<8xf32>
    %51 = vector.shape_cast %50 : vector<8xf32> to vector<8x1xf32>
    %52 = tpu.reciprocal %51 {approx = true} : vector<8x1xf32> -> vector<8x1xf32>
    %53 = vector.broadcast %52 : vector<8x1xf32> to vector<8x8xf32>
    %54 = arith.mulf %49, %53 : vector<8x8xf32>
    %cst_21 = arith.constant dense<0.000000e+00> : vector<8x16xf32>
    %55 = tpu.matmul %54, %41, %cst_21 {dimension_numbers = #tpu.dot_dimension_numbers<[1], [0], [0], [1], [0, 0, 1, 1], [], []>} : vector<8x8xf32>, vector<8x16xf32>, vector<8x16xf32> -> vector<8x16xf32>
    %c0_22 = arith.constant 0 : index
    %c16 = arith.constant 16 : index
    %56 = vector.load %arg27[%c0_22, %c16] : memref<16x32xf32, #tpu.memory_space<vmem>>, vector<8x16xf32>
    tpu.vector_store %arg27[%c0_22, %c16], %55 {strides = array<i32>} : memref<16x32xf32, #tpu.memory_space<vmem>>, vector<8x16xf32>,
    %57 = vector.extract_strided_slice %9 {offsets = [1, 0], sizes = [1, 8], strides = [1, 1]} : vector<2x8xf32> to vector<1x8xf32>
    %58 = vector.extract_strided_slice %17 {offsets = [8, 0], sizes = [8, 16], strides = [1, 1]} : vector<16x32xf32> to vector<8x16xf32>
    %59 = vector.extract_strided_slice %18 {offsets = [8, 0], sizes = [8, 16], strides = [1, 1]} : vector<16x32xf32> to vector<8x16xf32>
    %60 = vector.extract_strided_slice %19 {offsets = [8, 0], sizes = [8, 16], strides = [1, 1]} : vector<16x32xf32> to vector<8x16xf32>
    %cst_23 = arith.constant dense<0.000000e+00> : vector<8x8xf32>
    %61 = tpu.matmul %58, %59, %cst_23 {dimension_numbers = #tpu.dot_dimension_numbers<[1], [1], [0], [0], [0, 0, 1, 0], [], []>} : vector<8x16xf32>, vector<8x16xf32>, vector<8x8xf32> -> vector<8x8xf32>
    %62 = vector.broadcast %57 : vector<1x8xf32> to vector<8x8xf32>
    %63 = arith.addf %61, %62 : vector<8x8xf32>
    %cst_24 = arith.constant dense<0xFF800000> : vector<8xf32>
    %64 = vector.multi_reduction <maximumf>, %63, %cst_24 [1] : vector<8x8xf32> to vector<8xf32>
    %65 = vector.shape_cast %64 : vector<8xf32> to vector<8x1xf32>
    %66 = vector.broadcast %65 : vector<8x1xf32> to vector<8x8xf32>
    %67 = arith.subf %63, %66 : vector<8x8xf32>
    %68 = math.exp %67 : vector<8x8xf32>
    %cst_25 = arith.constant dense<0.000000e+00> : vector<8xf32>
    %69 = vector.multi_reduction <add>, %68, %cst_25 [1] : vector<8x8xf32> to vector<8xf32>
    %70 = vector.shape_cast %69 : vector<8xf32> to vector<8x1xf32>
    %71 = tpu.reciprocal %70 {approx = true} : vector<8x1xf32> -> vector<8x1xf32>
    %72 = vector.broadcast %71 : vector<8x1xf32> to vector<8x8xf32>
    %73 = arith.mulf %68, %72 : vector<8x8xf32>
    %cst_26 = arith.constant dense<0.000000e+00> : vector<8x16xf32>
    %74 = tpu.matmul %73, %60, %cst_26 {dimension_numbers = #tpu.dot_dimension_numbers<[1], [0], [0], [1], [0, 0, 1, 1], [], []>} : vector<8x8xf32>, vector<8x16xf32>, vector<8x16xf32> -> vector<8x16xf32>
    %c8 = arith.constant 8 : index
    %c0_27 = arith.constant 0 : index
    %75 = vector.load %arg27[%c8, %c0_27] : memref<16x32xf32, #tpu.memory_space<vmem>>, vector<8x16xf32>
    tpu.vector_store %arg27[%c8, %c0_27], %74 {strides = array<i32>} : memref<16x32xf32, #tpu.memory_space<vmem>>, vector<8x16xf32>,
    %76 = vector.extract_strided_slice %17 {offsets = [8, 16], sizes = [8, 16], strides = [1, 1]} : vector<16x32xf32> to vector<8x16xf32>
    %77 = vector.extract_strided_slice %18 {offsets = [8, 16], sizes = [8, 16], strides = [1, 1]} : vector<16x32xf32> to vector<8x16xf32>
    %78 = vector.extract_strided_slice %19 {offsets = [8, 16], sizes = [8, 16], strides = [1, 1]} : vector<16x32xf32> to vector<8x16xf32>
    %cst_28 = arith.constant dense<0.000000e+00> : vector<8x8xf32>
    %79 = tpu.matmul %76, %77, %cst_28 {dimension_numbers = #tpu.dot_dimension_numbers<[1], [1], [0], [0], [0, 0, 1, 0], [], []>} : vector<8x16xf32>, vector<8x16xf32>, vector<8x8xf32> -> vector<8x8xf32>
    %80 = vector.broadcast %57 : vector<1x8xf32> to vector<8x8xf32>
    %81 = arith.addf %79, %80 : vector<8x8xf32>
    %cst_29 = arith.constant dense<0xFF800000> : vector<8xf32>
    %82 = vector.multi_reduction <maximumf>, %81, %cst_29 [1] : vector<8x8xf32> to vector<8xf32>
    %83 = vector.shape_cast %82 : vector<8xf32> to vector<8x1xf32>
    %84 = vector.broadcast %83 : vector<8x1xf32> to vector<8x8xf32>
    %85 = arith.subf %81, %84 : vector<8x8xf32>
    %86 = math.exp %85 : vector<8x8xf32>
    %cst_30 = arith.constant dense<0.000000e+00> : vector<8xf32>
    %87 = vector.multi_reduction <add>, %86, %cst_30 [1] : vector<8x8xf32> to vector<8xf32>
    %88 = vector.shape_cast %87 : vector<8xf32> to vector<8x1xf32>
    %89 = tpu.reciprocal %88 {approx = true} : vector<8x1xf32> -> vector<8x1xf32>
    %90 = vector.broadcast %89 : vector<8x1xf32> to vector<8x8xf32>
    %91 = arith.mulf %86, %90 : vector<8x8xf32>
    %cst_31 = arith.constant dense<0.000000e+00> : vector<8x16xf32>
    %92 = tpu.matmul %91, %78, %cst_31 {dimension_numbers = #tpu.dot_dimension_numbers<[1], [0], [0], [1], [0, 0, 1, 1], [], []>} : vector<8x8xf32>, vector<8x16xf32>, vector<8x16xf32> -> vector<8x16xf32>
    %c8_32 = arith.constant 8 : index
    %c16_33 = arith.constant 16 : index
    %93 = vector.load %arg27[%c8_32, %c16_33] : memref<16x32xf32, #tpu.memory_space<vmem>>, vector<8x16xf32>
    tpu.vector_store %arg27[%c8_32, %c16_33], %92 {strides = array<i32>} : memref<16x32xf32, #tpu.memory_space<vmem>>, vector<8x16xf32>,
    %c0_34 = arith.constant 0 : index
    %c0_35 = arith.constant 0 : index
    %94 = vector.load %arg27[%c0_34, %c0_35] : memref<16x32xf32, #tpu.memory_space<vmem>>, vector<16x32xf32>
    %c0_36 = arith.constant 0 : index
    %c0_37 = arith.constant 0 : index
    %c0_38 = arith.constant 0 : index
    %95 = vector.load %arg11[%c0_36, %c0_37, %c0_38] : memref<1x32x32xf32, #tpu.memory_space<vmem>>, vector<1x32x32xf32>
    %96 = vector.shape_cast %95 : vector<1x32x32xf32> to vector<32x32xf32>
    %cst_39 = arith.constant dense<0.000000e+00> : vector<16x32xf32>
    %97 = tpu.matmul %94, %96, %cst_39 {dimension_numbers = #tpu.dot_dimension_numbers<[1], [0], [0], [1], [0, 0, 1, 1], [], []>} : vector<16x32xf32>, vector<32x32xf32>, vector<16x32xf32> -> vector<16x32xf32>
    %c0_40 = arith.constant 0 : index
    %c0_41 = arith.constant 0 : index
    %c0_42 = arith.constant 0 : index
    %98 = vector.load %arg12[%c0_40, %c0_41, %c0_42] : memref<1x1x32xf32, #tpu.memory_space<vmem>>, vector<1x1x32xf32>
    %99 = vector.shape_cast %98 : vector<1x1x32xf32> to vector<1x32xf32>
    %100 = vector.broadcast %99 : vector<1x32xf32> to vector<16x32xf32>
    %101 = arith.addf %97, %100 : vector<16x32xf32>
    %102 = arith.addf %101, %3 : vector<16x32xf32>
    %c0_43 = arith.constant 0 : index
    %c0_44 = arith.constant 0 : index
    %c0_45 = arith.constant 0 : index
    %103 = vector.load %arg13[%c0_43, %c0_44, %c0_45] : memref<1x1x32xf32, #tpu.memory_space<vmem>>, vector<1x1x32xf32>
    %104 = vector.shape_cast %103 : vector<1x1x32xf32> to vector<1x32xf32>
    %c0_46 = arith.constant 0 : index
    %c0_47 = arith.constant 0 : index
    %c0_48 = arith.constant 0 : index
    %105 = vector.load %arg14[%c0_46, %c0_47, %c0_48] : memref<1x1x32xf32, #tpu.memory_space<vmem>>, vector<1x1x32xf32>
    %106 = vector.shape_cast %105 : vector<1x1x32xf32> to vector<1x32xf32>
    %cst_49 = arith.constant dense<0.000000e+00> : vector<16xf32>
    %107 = vector.multi_reduction <add>, %102, %cst_49 [1] : vector<16x32xf32> to vector<16xf32>
    %108 = vector.shape_cast %107 : vector<16xf32> to vector<16x1xf32>
    %cst_50 = arith.constant 3.200000e+01 : f32
    %109 = vector.broadcast %cst_50 : f32 to vector<16x1xf32>
    %110 = arith.divf %108, %109 : vector<16x1xf32>
    %111 = vector.broadcast %110 : vector<16x1xf32> to vector<16x32xf32>
    %112 = arith.subf %102, %111 : vector<16x32xf32>
    %113 = arith.mulf %112, %112 : vector<16x32xf32>
    %cst_51 = arith.constant dense<0.000000e+00> : vector<16xf32>
    %114 = vector.multi_reduction <add>, %113, %cst_51 [1] : vector<16x32xf32> to vector<16xf32>
    %115 = vector.shape_cast %114 : vector<16xf32> to vector<16x1xf32>
    %cst_52 = arith.constant 3.200000e+01 : f32
    %116 = vector.broadcast %cst_52 : f32 to vector<16x1xf32>
    %117 = arith.divf %115, %116 : vector<16x1xf32>
    %cst_53 = arith.constant 9.99999996E-13 : f32
    %118 = vector.broadcast %cst_53 : f32 to vector<16x1xf32>
    %119 = arith.addf %117, %118 : vector<16x1xf32>
    %120 = math.rsqrt %119 : vector<16x1xf32>
    %121 = vector.broadcast %120 : vector<16x1xf32> to vector<16x32xf32>
    %122 = arith.mulf %112, %121 : vector<16x32xf32>
    %123 = vector.broadcast %104 : vector<1x32xf32> to vector<16x32xf32>
    %124 = arith.mulf %122, %123 : vector<16x32xf32>
    %125 = vector.broadcast %106 : vector<1x32xf32> to vector<16x32xf32>
    %126 = arith.addf %124, %125 : vector<16x32xf32>
    %c0_54 = arith.constant 0 : index
    %c0_55 = arith.constant 0 : index
    %c0_56 = arith.constant 0 : index
    %127 = vector.load %arg15[%c0_54, %c0_55, %c0_56] : memref<1x32x64xf32, #tpu.memory_space<vmem>>, vector<1x32x64xf32>
    %128 = vector.shape_cast %127 : vector<1x32x64xf32> to vector<32x64xf32>
    %cst_57 = arith.constant dense<0.000000e+00> : vector<16x64xf32>
    %129 = tpu.matmul %126, %128, %cst_57 {dimension_numbers = #tpu.dot_dimension_numbers<[1], [0], [0], [1], [0, 0, 1, 1], [], []>} : vector<16x32xf32>, vector<32x64xf32>, vector<16x64xf32> -> vector<16x64xf32>
    %c0_58 = arith.constant 0 : index
    %c0_59 = arith.constant 0 : index
    %c0_60 = arith.constant 0 : index
    %130 = vector.load %arg16[%c0_58, %c0_59, %c0_60] : memref<1x1x64xf32, #tpu.memory_space<vmem>>, vector<1x1x64xf32>
    %131 = vector.shape_cast %130 : vector<1x1x64xf32> to vector<1x64xf32>
    %132 = vector.broadcast %131 : vector<1x64xf32> to vector<16x64xf32>
    %133 = arith.addf %129, %132 : vector<16x64xf32>
    %cst_61 = arith.constant 5.000000e-01 : f32
    %134 = vector.broadcast %cst_61 : f32 to vector<16x64xf32>
    %135 = arith.mulf %134, %133 : vector<16x64xf32>
    %cst_62 = arith.constant 4.471500e-02 : f32
    %136 = vector.broadcast %cst_62 : f32 to vector<16x64xf32>
    %137 = arith.mulf %136, %133 : vector<16x64xf32>
    %138 = arith.mulf %137, %133 : vector<16x64xf32>
    %139 = arith.mulf %138, %133 : vector<16x64xf32>
    %140 = arith.addf %133, %139 : vector<16x64xf32>
    %cst_63 = arith.constant 0.797884583 : f32
    %141 = vector.broadcast %cst_63 : f32 to vector<16x64xf32>
    %142 = arith.mulf %141, %140 : vector<16x64xf32>
    %143 = math.tanh %142 : vector<16x64xf32>
    %cst_64 = arith.constant 1.000000e+00 : f32
    %144 = vector.broadcast %cst_64 : f32 to vector<16x64xf32>
    %145 = arith.addf %144, %143 : vector<16x64xf32>
    %146 = arith.mulf %135, %145 : vector<16x64xf32>
    %c0_65 = arith.constant 0 : index
    %c0_66 = arith.constant 0 : index
    %c0_67 = arith.constant 0 : index
    %147 = vector.load %arg17[%c0_65, %c0_66, %c0_67] : memref<1x64x32xf32, #tpu.memory_space<vmem>>, vector<1x64x32xf32>
    %148 = vector.shape_cast %147 : vector<1x64x32xf32> to vector<64x32xf32>
    %cst_68 = arith.constant dense<0.000000e+00> : vector<16x32xf32>
    %149 = tpu.matmul %146, %148, %cst_68 {dimension_numbers = #tpu.dot_dimension_numbers<[1], [0], [0], [1], [0, 0, 1, 1], [], []>} : vector<16x64xf32>, vector<64x32xf32>, vector<16x32xf32> -> vector<16x32xf32>
    %c0_69 = arith.constant 0 : index
    %c0_70 = arith.constant 0 : index
    %c0_71 = arith.constant 0 : index
    %150 = vector.load %arg18[%c0_69, %c0_70, %c0_71] : memref<1x1x32xf32, #tpu.memory_space<vmem>>, vector<1x1x32xf32>
    %151 = vector.shape_cast %150 : vector<1x1x32xf32> to vector<1x32xf32>
    %152 = vector.broadcast %151 : vector<1x32xf32> to vector<16x32xf32>
    %153 = arith.addf %149, %152 : vector<16x32xf32>
    %154 = arith.addf %153, %126 : vector<16x32xf32>
    %c0_72 = arith.constant 0 : index
    %c0_73 = arith.constant 0 : index
    %c0_74 = arith.constant 0 : index
    %155 = vector.load %arg19[%c0_72, %c0_73, %c0_74] : memref<1x1x32xf32, #tpu.memory_space<vmem>>, vector<1x1x32xf32>
    %156 = vector.shape_cast %155 : vector<1x1x32xf32> to vector<1x32xf32>
    %c0_75 = arith.constant 0 : index
    %c0_76 = arith.constant 0 : index
    %c0_77 = arith.constant 0 : index
    %157 = vector.load %arg20[%c0_75, %c0_76, %c0_77] : memref<1x1x32xf32, #tpu.memory_space<vmem>>, vector<1x1x32xf32>
    %158 = vector.shape_cast %157 : vector<1x1x32xf32> to vector<1x32xf32>
    %cst_78 = arith.constant dense<0.000000e+00> : vector<16xf32>
    %159 = vector.multi_reduction <add>, %154, %cst_78 [1] : vector<16x32xf32> to vector<16xf32>
    %160 = vector.shape_cast %159 : vector<16xf32> to vector<16x1xf32>
    %cst_79 = arith.constant 3.200000e+01 : f32
    %161 = vector.broadcast %cst_79 : f32 to vector<16x1xf32>
    %162 = arith.divf %160, %161 : vector<16x1xf32>
    %163 = vector.broadcast %162 : vector<16x1xf32> to vector<16x32xf32>
    %164 = arith.subf %154, %163 : vector<16x32xf32>
    %165 = arith.mulf %164, %164 : vector<16x32xf32>
    %cst_80 = arith.constant dense<0.000000e+00> : vector<16xf32>
    %166 = vector.multi_reduction <add>, %165, %cst_80 [1] : vector<16x32xf32> to vector<16xf32>
    %167 = vector.shape_cast %166 : vector<16xf32> to vector<16x1xf32>
    %cst_81 = arith.constant 3.200000e+01 : f32
    %168 = vector.broadcast %cst_81 : f32 to vector<16x1xf32>
    %169 = arith.divf %167, %168 : vector<16x1xf32>
    %cst_82 = arith.constant 9.99999996E-13 : f32
    %170 = vector.broadcast %cst_82 : f32 to vector<16x1xf32>
    %171 = arith.addf %169, %170 : vector<16x1xf32>
    %172 = math.rsqrt %171 : vector<16x1xf32>
    %173 = vector.broadcast %172 : vector<16x1xf32> to vector<16x32xf32>
    %174 = arith.mulf %164, %173 : vector<16x32xf32>
    %175 = vector.broadcast %156 : vector<1x32xf32> to vector<16x32xf32>
    %176 = arith.mulf %174, %175 : vector<16x32xf32>
    %177 = vector.broadcast %158 : vector<1x32xf32> to vector<16x32xf32>
    %178 = arith.addf %176, %177 : vector<16x32xf32>
    %c0_83 = arith.constant 0 : index
    %c0_84 = arith.constant 0 : index
    %179 = vector.load %arg26[%c0_83, %c0_84] : memref<16x32xf32, #tpu.memory_space<vmem>>, vector<16x32xf32>
    tpu.vector_store %arg26[%c0_83, %c0_84], %178 {strides = array<i32>} : memref<16x32xf32, #tpu.memory_space<vmem>>, vector<16x32xf32>,
    %c1_i32 = arith.constant 1 : i32
    %180 = arith.cmpi eq, %arg0, %c1_i32 : i32
    %181 = arith.extui %180 : i1 to i32
    %c0_i32_85 = arith.constant 0 : i32
    %182 = arith.cmpi ne, %181, %c0_i32_85 : i32
    scf.if %182 {
      %c0_86 = arith.constant 0 : index
      %c0_87 = arith.constant 0 : index
      %183 = vector.load %arg23[%c0_86, %c0_87] : memref<1x32xf32, #tpu.memory_space<vmem>>, vector<1x32xf32>
      %184 = vector.extract_strided_slice %178 {offsets = [0, 0], sizes = [1, 32], strides = [1, 1]} : vector<16x32xf32> to vector<1x32xf32>
      %c0_88 = arith.constant 0 : index
      %c0_89 = arith.constant 0 : index
      %185 = vector.load %arg21[%c0_88, %c0_89] : memref<32x32xf32, #tpu.memory_space<vmem>>, vector<32x32xf32>
      %cst_90 = arith.constant dense<0.000000e+00> : vector<1x32xf32>
      %186 = tpu.matmul %184, %185, %cst_90 {dimension_numbers = #tpu.dot_dimension_numbers<[1], [0], [0], [1], [0, 0, 1, 1], [], []>} : vector<1x32xf32>, vector<32x32xf32>, vector<1x32xf32> -> vector<1x32xf32>
      %c0_91 = arith.constant 0 : index
      %c0_92 = arith.constant 0 : index
      %187 = vector.load %arg22[%c0_91, %c0_92] : memref<1x32xf32, #tpu.memory_space<vmem>>, vector<1x32xf32>
      %188 = arith.addf %186, %187 : vector<1x32xf32>
      %189 = math.tanh %188 : vector<1x32xf32>
      %190 = arith.mulf %189, %183 : vector<1x32xf32>
      %cst_93 = arith.constant dense<0.000000e+00> : vector<1xf32>
      %191 = vector.multi_reduction <add>, %190, %cst_93 [1] : vector<1x32xf32> to vector<1xf32>
      %192 = vector.shape_cast %191 : vector<1xf32> to vector<1x1xf32>
      %c0_94 = arith.constant 0 : index
      %c0_95 = arith.constant 0 : index
      %193 = vector.load %arg24[%c0_94, %c0_95] : memref<1x1xf32, #tpu.memory_space<vmem>>, vector<1x1xf32>
      %194 = arith.addf %192, %193 : vector<1x1xf32>
      %c0_96 = arith.constant 0 : index
      %c0_97 = arith.constant 0 : index
      %195 = vector.load %arg25[%c0_96, %c0_97] : memref<2x1xf32, #tpu.memory_space<vmem>>, vector<1x1xf32>
      tpu.vector_store %arg25[%c0_96, %c0_97], %194 {strides = array<i32>} : memref<2x1xf32, #tpu.memory_space<vmem>>, vector<1x1xf32>,
      %196 = vector.extract_strided_slice %178 {offsets = [8, 0], sizes = [1, 32], strides = [1, 1]} : vector<16x32xf32> to vector<1x32xf32>
      %c0_98 = arith.constant 0 : index
      %c0_99 = arith.constant 0 : index
      %197 = vector.load %arg21[%c0_98, %c0_99] : memref<32x32xf32, #tpu.memory_space<vmem>>, vector<32x32xf32>
      %cst_100 = arith.constant dense<0.000000e+00> : vector<1x32xf32>
      %198 = tpu.matmul %196, %197, %cst_100 {dimension_numbers = #tpu.dot_dimension_numbers<[1], [0], [0], [1], [0, 0, 1, 1], [], []>} : vector<1x32xf32>, vector<32x32xf32>, vector<1x32xf32> -> vector<1x32xf32>
      %c0_101 = arith.constant 0 : index
      %c0_102 = arith.constant 0 : index
      %199 = vector.load %arg22[%c0_101, %c0_102] : memref<1x32xf32, #tpu.memory_space<vmem>>, vector<1x32xf32>
      %200 = arith.addf %198, %199 : vector<1x32xf32>
      %201 = math.tanh %200 : vector<1x32xf32>
      %202 = arith.mulf %201, %183 : vector<1x32xf32>
      %cst_103 = arith.constant dense<0.000000e+00> : vector<1xf32>
      %203 = vector.multi_reduction <add>, %202, %cst_103 [1] : vector<1x32xf32> to vector<1xf32>
      %204 = vector.shape_cast %203 : vector<1xf32> to vector<1x1xf32>
      %c0_104 = arith.constant 0 : index
      %c0_105 = arith.constant 0 : index
      %205 = vector.load %arg24[%c0_104, %c0_105] : memref<1x1xf32, #tpu.memory_space<vmem>>, vector<1x1xf32>
      %206 = arith.addf %204, %205 : vector<1x1xf32>
      %c1 = arith.constant 1 : index
      %c0_106 = arith.constant 0 : index
      %207 = vector.load %arg25[%c1, %c0_106] : memref<2x1xf32, #tpu.memory_space<vmem>>, vector<1x1xf32>
      tpu.vector_store %arg25[%c1, %c0_106], %206 {strides = array<i32>} : memref<2x1xf32, #tpu.memory_space<vmem>>, vector<1x1xf32>,
    } else {
    }
    return
  }
  func.func @transform_0(%arg0: i32, %arg1: memref<2x8xi32, #tpu.memory_space<smem>>, %arg2: memref<2x8xi32, #tpu.memory_space<smem>>) -> (i32, i32) {
    %c0_i32 = arith.constant 0 : i32
    %c0_i32_0 = arith.constant 0 : i32
    %c0_i32_1 = arith.constant 0 : i32
    return %c0_i32, %c0_i32_0 : i32, i32
  }
  func.func @transform_1(%arg0: i32, %arg1: memref<2x8xi32, #tpu.memory_space<smem>>, %arg2: memref<2x8xi32, #tpu.memory_space<smem>>) -> (i32, i32) {
    %c0_i32 = arith.constant 0 : i32
    %c0_i32_0 = arith.constant 0 : i32
    %c0_i32_1 = arith.constant 0 : i32
    return %c0_i32, %c0_i32_0 : i32, i32
  }
  func.func @transform_2(%arg0: i32, %arg1: memref<2x8xi32, #tpu.memory_space<smem>>, %arg2: memref<2x8xi32, #tpu.memory_space<smem>>) -> (i32, i32) {
    %c0_i32 = arith.constant 0 : i32
    %c0_i32_0 = arith.constant 0 : i32
    %c0_i32_1 = arith.constant 0 : i32
    return %c0_i32, %c0_i32_0 : i32, i32
  }
  func.func @transform_3(%arg0: i32, %arg1: memref<2x8xi32, #tpu.memory_space<smem>>, %arg2: memref<2x8xi32, #tpu.memory_space<smem>>) -> (i32, i32) {
    %c0_i32 = arith.constant 0 : i32
    %c0_i32_0 = arith.constant 0 : i32
    %c0_i32_1 = arith.constant 0 : i32
    return %c0_i32, %c0_i32_0 : i32, i32
  }
  func.func @transform_4(%arg0: i32, %arg1: memref<2x8xi32, #tpu.memory_space<smem>>, %arg2: memref<2x8xi32, #tpu.memory_space<smem>>) -> (i32, i32) {
    %c0_i32 = arith.constant 0 : i32
    %c0_i32_0 = arith.constant 0 : i32
    %c0_i32_1 = arith.constant 0 : i32
    return %c0_i32, %c0_i32_0 : i32, i32
  }
  func.func @transform_5(%arg0: i32, %arg1: memref<2x8xi32, #tpu.memory_space<smem>>, %arg2: memref<2x8xi32, #tpu.memory_space<smem>>) -> (i32, i32) {
    %c0_i32 = arith.constant 0 : i32
    %c0_i32_0 = arith.constant 0 : i32
    %c0_i32_1 = arith.constant 0 : i32
    return %c0_i32, %c0_i32_0 : i32, i32
  }
  func.func @transform_6(%arg0: i32, %arg1: memref<2x8xi32, #tpu.memory_space<smem>>, %arg2: memref<2x8xi32, #tpu.memory_space<smem>>) -> (i32, i32, i32) {
    %c0_i32 = arith.constant 0 : i32
    %c0_i32_0 = arith.constant 0 : i32
    %c0_i32_1 = arith.constant 0 : i32
    return %arg0, %c0_i32, %c0_i32_0 : i32, i32, i32
  }
  func.func @transform_7(%arg0: i32, %arg1: memref<2x8xi32, #tpu.memory_space<smem>>, %arg2: memref<2x8xi32, #tpu.memory_space<smem>>) -> (i32, i32, i32) {
    %c0_i32 = arith.constant 0 : i32
    %c0_i32_0 = arith.constant 0 : i32
    %c0_i32_1 = arith.constant 0 : i32
    return %arg0, %c0_i32, %c0_i32_0 : i32, i32, i32
  }
  func.func @transform_8(%arg0: i32, %arg1: memref<2x8xi32, #tpu.memory_space<smem>>, %arg2: memref<2x8xi32, #tpu.memory_space<smem>>) -> (i32, i32, i32) {
    %c0_i32 = arith.constant 0 : i32
    %c0_i32_0 = arith.constant 0 : i32
    %c0_i32_1 = arith.constant 0 : i32
    return %arg0, %c0_i32, %c0_i32_0 : i32, i32, i32
  }
  func.func @transform_9(%arg0: i32, %arg1: memref<2x8xi32, #tpu.memory_space<smem>>, %arg2: memref<2x8xi32, #tpu.memory_space<smem>>) -> (i32, i32, i32) {
    %c0_i32 = arith.constant 0 : i32
    %c0_i32_0 = arith.constant 0 : i32
    %c0_i32_1 = arith.constant 0 : i32
    return %arg0, %c0_i32, %c0_i32_0 : i32, i32, i32
  }
  func.func @transform_10(%arg0: i32, %arg1: memref<2x8xi32, #tpu.memory_space<smem>>, %arg2: memref<2x8xi32, #tpu.memory_space<smem>>) -> (i32, i32, i32) {
    %c0_i32 = arith.constant 0 : i32
    %c0_i32_0 = arith.constant 0 : i32
    %c0_i32_1 = arith.constant 0 : i32
    return %arg0, %c0_i32, %c0_i32_0 : i32, i32, i32
  }
  func.func @transform_11(%arg0: i32, %arg1: memref<2x8xi32, #tpu.memory_space<smem>>, %arg2: memref<2x8xi32, #tpu.memory_space<smem>>) -> (i32, i32, i32) {
    %c0_i32 = arith.constant 0 : i32
    %c0_i32_0 = arith.constant 0 : i32
    %c0_i32_1 = arith.constant 0 : i32
    return %arg0, %c0_i32, %c0_i32_0 : i32, i32, i32
  }
  func.func @transform_12(%arg0: i32, %arg1: memref<2x8xi32, #tpu.memory_space<smem>>, %arg2: memref<2x8xi32, #tpu.memory_space<smem>>) -> (i32, i32, i32) {
    %c0_i32 = arith.constant 0 : i32
    %c0_i32_0 = arith.constant 0 : i32
    %c0_i32_1 = arith.constant 0 : i32
    return %arg0, %c0_i32, %c0_i32_0 : i32, i32, i32
  }
  func.func @transform_13(%arg0: i32, %arg1: memref<2x8xi32, #tpu.memory_space<smem>>, %arg2: memref<2x8xi32, #tpu.memory_space<smem>>) -> (i32, i32, i32) {
    %c0_i32 = arith.constant 0 : i32
    %c0_i32_0 = arith.constant 0 : i32
    %c0_i32_1 = arith.constant 0 : i32
    return %arg0, %c0_i32, %c0_i32_0 : i32, i32, i32
  }
  func.func @transform_14(%arg0: i32, %arg1: memref<2x8xi32, #tpu.memory_space<smem>>, %arg2: memref<2x8xi32, #tpu.memory_space<smem>>) -> (i32, i32, i32) {
    %c0_i32 = arith.constant 0 : i32
    %c0_i32_0 = arith.constant 0 : i32
    %c0_i32_1 = arith.constant 0 : i32
    return %arg0, %c0_i32, %c0_i32_0 : i32, i32, i32
  }
  func.func @transform_15(%arg0: i32, %arg1: memref<2x8xi32, #tpu.memory_space<smem>>, %arg2: memref<2x8xi32, #tpu.memory_space<smem>>) -> (i32, i32, i32) {
    %c0_i32 = arith.constant 0 : i32
    %c0_i32_0 = arith.constant 0 : i32
    %c0_i32_1 = arith.constant 0 : i32
    return %arg0, %c0_i32, %c0_i32_0 : i32, i32, i32
  }
  func.func @transform_16(%arg0: i32, %arg1: memref<2x8xi32, #tpu.memory_space<smem>>, %arg2: memref<2x8xi32, #tpu.memory_space<smem>>) -> (i32, i32, i32) {
    %c0_i32 = arith.constant 0 : i32
    %c0_i32_0 = arith.constant 0 : i32
    %c0_i32_1 = arith.constant 0 : i32
    return %arg0, %c0_i32, %c0_i32_0 : i32, i32, i32
  }
  func.func @transform_17(%arg0: i32, %arg1: memref<2x8xi32, #tpu.memory_space<smem>>, %arg2: memref<2x8xi32, #tpu.memory_space<smem>>) -> (i32, i32, i32) {
    %c0_i32 = arith.constant 0 : i32
    %c0_i32_0 = arith.constant 0 : i32
    %c0_i32_1 = arith.constant 0 : i32
    return %arg0, %c0_i32, %c0_i32_0 : i32, i32, i32
  }
  func.func @transform_18(%arg0: i32, %arg1: memref<2x8xi32, #tpu.memory_space<smem>>, %arg2: memref<2x8xi32, #tpu.memory_space<smem>>) -> (i32, i32) {
    %c0_i32 = arith.constant 0 : i32
    %c0_i32_0 = arith.constant 0 : i32
    %c0_i32_1 = arith.constant 0 : i32
    return %c0_i32, %c0_i32_0 : i32, i32
  }
  func.func @transform_19(%arg0: i32, %arg1: memref<2x8xi32, #tpu.memory_space<smem>>, %arg2: memref<2x8xi32, #tpu.memory_space<smem>>) -> (i32, i32) {
    %c0_i32 = arith.constant 0 : i32
    %c0_i32_0 = arith.constant 0 : i32
    %c0_i32_1 = arith.constant 0 : i32
    return %c0_i32, %c0_i32_0 : i32, i32
  }
  func.func @transform_20(%arg0: i32, %arg1: memref<2x8xi32, #tpu.memory_space<smem>>, %arg2: memref<2x8xi32, #tpu.memory_space<smem>>) -> (i32, i32) {
    %c0_i32 = arith.constant 0 : i32
    %c0_i32_0 = arith.constant 0 : i32
    %c0_i32_1 = arith.constant 0 : i32
    return %c0_i32, %c0_i32_0 : i32, i32
  }
  func.func @transform_21(%arg0: i32, %arg1: memref<2x8xi32, #tpu.memory_space<smem>>, %arg2: memref<2x8xi32, #tpu.memory_space<smem>>) -> (i32, i32) {
    %c0_i32 = arith.constant 0 : i32
    %c0_i32_0 = arith.constant 0 : i32
    %c0_i32_1 = arith.constant 0 : i32
    return %c0_i32, %c0_i32_0 : i32, i32
  }
  func.func @transform_22(%arg0: i32, %arg1: memref<2x8xi32, #tpu.memory_space<smem>>, %arg2: memref<2x8xi32, #tpu.memory_space<smem>>) -> (i32, i32) {
    %c0_i32 = arith.constant 0 : i32
    %c0_i32_0 = arith.constant 0 : i32
    %c0_i32_1 = arith.constant 0 : i32
    return %c0_i32, %c0_i32_0 : i32, i32
  }
}

</mosaic_0001>

<llo_original>
// kernel: sentiment_classifier_forward.1
$region0: #{sentiment_classifier_forward.1}
  #allocation0 [shape = 'u32[]', space=smem, size = 0x4, offset = 0x4, fixed_abs, tag = 'smem constant byte address 0x4 - core index']
  #allocation1 [shape = 'u32[144,128]{1,0:T(1,128)}', space=vmem, size = 0x12000, scoped, tag = 'internal scratch']
  #allocation2 [shape = 'f32[16,32]{1,0:T(8,128)}', space=vmem, size = 0x2000, scoped, tag = 'scratch operand']
  #allocation3 [shape = 'f32[16,32]{1,0:T(8,128)}', space=vmem, size = 0x2000, scoped, tag = 'scratch operand']
  #allocation4 [shape = 's32[1]{0}', space=sflag, size = 0x4, scoped, tag = 'scoped memory for sentiment_classifier_forward.1']
  #allocation5 [shape = 'u8[1024]{0}', space=smem, size = 0x400, scoped, tag = 'prefetched SMEM operand 0']
  #allocation6 [shape = 'u8[1024]{0}', space=smem, size = 0x400, scoped, tag = 'prefetched SMEM operand 1']
  #allocation7 [shape = 'f32[1,1]{1,0:T(1,128)S(1)}', space=vmem, size = 0x200, scoped, tag = 'scoped memory for sentiment_classifier_forward.1']
  %s0 = inlined_call_operand.vmem [shape: s32[2,8], index: 0, kind: input, shape index: {}]
  %s1 = inlined_call_operand.vmem [shape: s32[2,8], index: 1, kind: input, shape index: {}]
  %s2 = inlined_call_operand.vmem [shape: s32[2,8], index: 2, kind: input, shape index: {}]
  %s3 = inlined_call_operand.vmem [shape: f32[100,32], index: 3, kind: input, shape index: {}]
  %s4 = inlined_call_operand.vmem [shape: f32[16,32], index: 4, kind: input, shape index: {}]
  %s5 = inlined_call_operand.vmem [shape: f32[2,32], index: 5, kind: input, shape index: {}]
  %s6 = inlined_call_operand.vmem [shape: f32[1,32], index: 6, kind: input, shape index: {}]
  %s7 = inlined_call_operand.vmem [shape: f32[1,32], index: 7, kind: input, shape index: {}]
  %s8 = inlined_call_operand.vmem [shape: f32[2,32,96], index: 8, kind: input, shape index: {}]
  %s9 = inlined_call_operand.vmem [shape: f32[2,1,96], index: 9, kind: input, shape index: {}]
  %s10 = inlined_call_operand.vmem [shape: f32[2,32,32], index: 10, kind: input, shape index: {}]
  %s11 = inlined_call_operand.vmem [shape: f32[2,1,32], index: 11, kind: input, shape index: {}]
  %s12 = inlined_call_operand.vmem [shape: f32[2,1,32], index: 12, kind: input, shape index: {}]
  %s13 = inlined_call_operand.vmem [shape: f32[2,1,32], index: 13, kind: input, shape index: {}]
  %s14 = inlined_call_operand.vmem [shape: f32[2,32,64], index: 14, kind: input, shape index: {}]
  %s15 = inlined_call_operand.vmem [shape: f32[2,1,64], index: 15, kind: input, shape index: {}]
  %s16 = inlined_call_operand.vmem [shape: f32[2,64,32], index: 16, kind: input, shape index: {}]
  %s17 = inlined_call_operand.vmem [shape: f32[2,1,32], index: 17, kind: input, shape index: {}]
  %s18 = inlined_call_operand.vmem [shape: f32[2,1,32], index: 18, kind: input, shape index: {}]
  %s19 = inlined_call_operand.vmem [shape: f32[2,1,32], index: 19, kind: input, shape index: {}]
  %s20 = inlined_call_operand.vmem [shape: f32[32,32], index: 20, kind: input, shape index: {}]
  %s21 = inlined_call_operand.vmem [shape: f32[1,32], index: 21, kind: input, shape index: {}]
  %s22 = inlined_call_operand.vmem [shape: f32[1,32], index: 22, kind: input, shape index: {}]
  %s23 = inlined_call_operand.<no memory space> [shape: f32[1,1], index: 23, kind: input, shape index: {}]
  %s24 = inlined_call_operand.vmem [shape: f32[2,1], index: 24, kind: output, shape index: {}]
  %s25 = sld [smem:[#allocation0]]
  $region129: #{sentiment_classifier_forward.1} parent=0
    _
  %s27 = ssub.s32 1, %s25
  %s28 = scalar_select 0, %s27, %s25
  %s29 = sshll.u32 %s0, 4
  %s30 = int_to_ptr.vmem [resolvable:$true] %s29
  %32 = dma.vmem_to_smem %s30, 32, [#allocation5], [#allocation4]
  %s33 = sshll.u32 %s1, 4
  %s34 = int_to_ptr.vmem [resolvable:$true] %s33
  %36 = dma.vmem_to_smem %s34, 32, [#allocation6], [#allocation4]
  %v37 = vstv %s23
  %38 = vst [vmem:[#allocation7] sm:$0x1] %v37
  %39 = dma.done [#allocation4], 64
  %40 = sfence
  loop: start=0, step=1, limit=4
  $region2: #{sentiment_classifier_forward.1} parent=0 // loop_pre_header
    _
  $region3: #{sentiment_classifier_forward.1} parent=0 // loop_header
    %s42 = sphi 0, %s46
    %p43 = scmp.ge.s32.totalorder %s42, 4
    %s50 = sphi 0, %s50
    %s52 = sphi 0, %s50
    %s53 = sphi 0, %s52
    %s67 = sphi 0, %s53
    %s71 = sphi 0, %s71
    %s73 = sphi 0, %s71
    %s74 = sphi 0, %s73
    %s88 = sphi 0, %s74
    %s92 = sphi 0, %s92
    %s94 = sphi 0, %s92
    %s95 = sphi 0, %s94
    %s109 = sphi 0, %s95
    %s113 = sphi 0, %s113
    %s115 = sphi 0, %s113
    %s116 = sphi 0, %s115
    %s130 = sphi 0, %s116
    %s134 = sphi 0, %s134
    %s136 = sphi 0, %s134
    %s137 = sphi 0, %s136
    %s151 = sphi 0, %s137
    %s155 = sphi 0, %s155
    %s157 = sphi 0, %s155
    %s158 = sphi 0, %s157
    %s172 = sphi 0, %s158
    %s178 = sphi 0, %s180
    %s181 = sphi 0, %s178
    %s182 = sphi 0, %s181
    %s198 = sphi 0, %s182
    %s204 = sphi 0, %s206
    %s207 = sphi 0, %s204
    %s208 = sphi 0, %s207
    %s224 = sphi 0, %s208
    %s230 = sphi 0, %s232
    %s233 = sphi 0, %s230
    %s234 = sphi 0, %s233
    %s250 = sphi 0, %s234
    %s256 = sphi 0, %s258
    %s259 = sphi 0, %s256
    %s260 = sphi 0, %s259
    %s276 = sphi 0, %s260
    %s282 = sphi 0, %s284
    %s285 = sphi 0, %s282
    %s286 = sphi 0, %s285
    %s302 = sphi 0, %s286
    %s308 = sphi 0, %s310
    %s311 = sphi 0, %s308
    %s312 = sphi 0, %s311
    %s328 = sphi 0, %s312
    %s334 = sphi 0, %s336
    %s337 = sphi 0, %s334
    %s338 = sphi 0, %s337
    %s354 = sphi 0, %s338
    %s360 = sphi 0, %s362
    %s363 = sphi 0, %s360
    %s364 = sphi 0, %s363
    %s380 = sphi 0, %s364
    %s386 = sphi 0, %s388
    %s389 = sphi 0, %s386
    %s390 = sphi 0, %s389
    %s406 = sphi 0, %s390
    %s412 = sphi 0, %s414
    %s415 = sphi 0, %s412
    %s416 = sphi 0, %s415
    %s432 = sphi 0, %s416
    %s438 = sphi 0, %s440
    %s441 = sphi 0, %s438
    %s442 = sphi 0, %s441
    %s458 = sphi 0, %s442
    %s464 = sphi 0, %s466
    %s467 = sphi 0, %s464
    %s468 = sphi 0, %s467
    %s484 = sphi 0, %s468
    %s488 = sphi 0, %s488
    %s490 = sphi 0, %s488
    %s491 = sphi 0, %s490
    %s505 = sphi 0, %s491
    %s509 = sphi 0, %s509
    %s511 = sphi 0, %s509
    %s512 = sphi 0, %s511
    %s526 = sphi 0, %s512
    %s530 = sphi 0, %s530
    %s532 = sphi 0, %s530
    %s533 = sphi 0, %s532
    %s547 = sphi 0, %s533
    %s551 = sphi 0, %s551
    %s553 = sphi 0, %s551
    %s554 = sphi 0, %s553
    %s568 = sphi 0, %s554
    %s572 = sphi 0, %s572
    %s574 = sphi 0, %s572
    %s575 = sphi 0, %s574
    %s589 = sphi 0, %s575
  $region4: #{sentiment_classifier_forward.1} parent=0 // loop_header_branch
    %45 = sbr.rel (%p43) target = $region8
  $region5: #{sentiment_classifier_forward.1} parent=0 // loop_body
    %s47 = ssub.s32 %s42, 1
    %s48 = ssub.s32 %s42, 2
    %s49 = sadd.s32 %s42, 1
    %s51 = sadd.s32 %s50, 1
    %p54 = scmp.eq.s32.totalorder %s42, 1
    %p55 = scmp.ne.s32.totalorder %s50, %s52
    %p56 = scmp.eq.s32.totalorder %s42, 0
    %p57 = por %p55, %p56
    %p58 = scmp.ne.s32.totalorder %s50, %s52
    %p59 = scmp.eq.s32.totalorder %s47, 1
    %p60 = por %p58, %p59
    %p61 = scmp.ne.s32.totalorder %s52, %s53
    %p62 = scmp.eq.s32.totalorder %s47, 0
    %p63 = por %p61, %p62
    %p64 = scmp.ne.s32.totalorder %s52, %s53
    %p65 = scmp.eq.s32.totalorder %s48, 1
    %p66 = por %p64, %p65
    %p68 = scmp.ne.s32.totalorder %s53, %s67
    %p69 = scmp.eq.s32.totalorder %s48, 0
    %p70 = por %p68, %p69
    %s72 = sadd.s32 %s71, 1
    %p75 = scmp.eq.s32.totalorder %s42, 1
    %p76 = scmp.ne.s32.totalorder %s71, %s73
    %p77 = scmp.eq.s32.totalorder %s42, 0
    %p78 = por %p76, %p77
    %p79 = scmp.ne.s32.totalorder %s71, %s73
    %p80 = scmp.eq.s32.totalorder %s47, 1
    %p81 = por %p79, %p80
    %p82 = scmp.ne.s32.totalorder %s73, %s74
    %p83 = scmp.eq.s32.totalorder %s47, 0
    %p84 = por %p82, %p83
    %p85 = scmp.ne.s32.totalorder %s73, %s74
    %p86 = scmp.eq.s32.totalorder %s48, 1
    %p87 = por %p85, %p86
    %p89 = scmp.ne.s32.totalorder %s74, %s88
    %p90 = scmp.eq.s32.totalorder %s48, 0
    %p91 = por %p89, %p90
    %s93 = sadd.s32 %s92, 1
    %p96 = scmp.eq.s32.totalorder %s42, 1
    %p97 = scmp.ne.s32.totalorder %s92, %s94
    %p98 = scmp.eq.s32.totalorder %s42, 0
    %p99 = por %p97, %p98
    %p100 = scmp.ne.s32.totalorder %s92, %s94
    %p101 = scmp.eq.s32.totalorder %s47, 1
    %p102 = por %p100, %p101
    %p103 = scmp.ne.s32.totalorder %s94, %s95
    %p104 = scmp.eq.s32.totalorder %s47, 0
    %p105 = por %p103, %p104
    %p106 = scmp.ne.s32.totalorder %s94, %s95
    %p107 = scmp.eq.s32.totalorder %s48, 1
    %p108 = por %p106, %p107
    %p110 = scmp.ne.s32.totalorder %s95, %s109
    %p111 = scmp.eq.s32.totalorder %s48, 0
    %p112 = por %p110, %p111
    %s114 = sadd.s32 %s113, 1
    %p117 = scmp.eq.s32.totalorder %s42, 1
    %p118 = scmp.ne.s32.totalorder %s113, %s115
    %p119 = scmp.eq.s32.totalorder %s42, 0
    %p120 = por %p118, %p119
    %p121 = scmp.ne.s32.totalorder %s113, %s115
    %p122 = scmp.eq.s32.totalorder %s47, 1
    %p123 = por %p121, %p122
    %p124 = scmp.ne.s32.totalorder %s115, %s116
    %p125 = scmp.eq.s32.totalorder %s47, 0
    %p126 = por %p124, %p125
    %p127 = scmp.ne.s32.totalorder %s115, %s116
    %p128 = scmp.eq.s32.totalorder %s48, 1
    %p129 = por %p127, %p128
    %p131 = scmp.ne.s32.totalorder %s116, %s130
    %p132 = scmp.eq.s32.totalorder %s48, 0
    %p133 = por %p131, %p132
    %s135 = sadd.s32 %s134, 1
    %p138 = scmp.eq.s32.totalorder %s42, 1
    %p139 = scmp.ne.s32.totalorder %s134, %s136
    %p140 = scmp.eq.s32.totalorder %s42, 0
    %p141 = por %p139, %p140
    %p142 = scmp.ne.s32.totalorder %s134, %s136
    %p143 = scmp.eq.s32.totalorder %s47, 1
    %p144 = por %p142, %p143
    %p145 = scmp.ne.s32.totalorder %s136, %s137
    %p146 = scmp.eq.s32.totalorder %s47, 0
    %p147 = por %p145, %p146
    %p148 = scmp.ne.s32.totalorder %s136, %s137
    %p149 = scmp.eq.s32.totalorder %s48, 1
    %p150 = por %p148, %p149
    %p152 = scmp.ne.s32.totalorder %s137, %s151
    %p153 = scmp.eq.s32.totalorder %s48, 0
    %p154 = por %p152, %p153
    %s156 = sadd.s32 %s155, 1
    %p159 = scmp.eq.s32.totalorder %s42, 1
    %p160 = scmp.ne.s32.totalorder %s155, %s157
    %p161 = scmp.eq.s32.totalorder %s42, 0
    %p162 = por %p160, %p161
    %p163 = scmp.ne.s32.totalorder %s155, %s157
    %p164 = scmp.eq.s32.totalorder %s47, 1
    %p165 = por %p163, %p164
    %p166 = scmp.ne.s32.totalorder %s157, %s158
    %p167 = scmp.eq.s32.totalorder %s47, 0
    %p168 = por %p166, %p167
    %p169 = scmp.ne.s32.totalorder %s157, %s158
    %p170 = scmp.eq.s32.totalorder %s48, 1
    %p171 = por %p169, %p170
    %p173 = scmp.ne.s32.totalorder %s158, %s172
    %p174 = scmp.eq.s32.totalorder %s48, 0
    %p175 = por %p173, %p174
    %s176 = ssub.s32 %s42, %s49
    %p177 = scmp.eq.s32.totalorder %s176, 0
    %s179 = sadd.s32 %s178, 1
    %s180 = scalar_select %p177, %s178, %s179
    %p183 = pneg %p177
    %p184 = scmp.eq.s32.totalorder %s42, 1
    %p185 = por %p183, %p184
    %p186 = scmp.ne.s32.totalorder %s178, %s181
    %p187 = scmp.eq.s32.totalorder %s42, 0
    %p188 = por %p186, %p187
    %p189 = scmp.ne.s32.totalorder %s178, %s181
    %p190 = scmp.eq.s32.totalorder %s47, 1
    %p191 = por %p189, %p190
    %p192 = scmp.ne.s32.totalorder %s181, %s182
    %p193 = scmp.eq.s32.totalorder %s47, 0
    %p194 = por %p192, %p193
    %p195 = scmp.ne.s32.totalorder %s181, %s182
    %p196 = scmp.eq.s32.totalorder %s48, 1
    %p197 = por %p195, %p196
    %p199 = scmp.ne.s32.totalorder %s182, %s198
    %p200 = scmp.eq.s32.totalorder %s48, 0
    %p201 = por %p199, %p200
    %s202 = ssub.s32 %s42, %s49
    %p203 = scmp.eq.s32.totalorder %s202, 0
    %s205 = sadd.s32 %s204, 1
    %s206 = scalar_select %p203, %s204, %s205
    %p209 = pneg %p203
    %p210 = scmp.eq.s32.totalorder %s42, 1
    %p211 = por %p209, %p210
    %p212 = scmp.ne.s32.totalorder %s204, %s207
    %p213 = scmp.eq.s32.totalorder %s42, 0
    %p214 = por %p212, %p213
    %p215 = scmp.ne.s32.totalorder %s204, %s207
    %p216 = scmp.eq.s32.totalorder %s47, 1
    %p217 = por %p215, %p216
    %p218 = scmp.ne.s32.totalorder %s207, %s208
    %p219 = scmp.eq.s32.totalorder %s47, 0
    %p220 = por %p218, %p219
    %p221 = scmp.ne.s32.totalorder %s207, %s208
    %p222 = scmp.eq.s32.totalorder %s48, 1
    %p223 = por %p221, %p222
    %p225 = scmp.ne.s32.totalorder %s208, %s224
    %p226 = scmp.eq.s32.totalorder %s48, 0
    %p227 = por %p225, %p226
    %s228 = ssub.s32 %s42, %s49
    %p229 = scmp.eq.s32.totalorder %s228, 0
    %s231 = sadd.s32 %s230, 1
    %s232 = scalar_select %p229, %s230, %s231
    %p235 = pneg %p229
    %p236 = scmp.eq.s32.totalorder %s42, 1
    %p237 = por %p235, %p236
    %p238 = scmp.ne.s32.totalorder %s230, %s233
    %p239 = scmp.eq.s32.totalorder %s42, 0
    %p240 = por %p238, %p239
    %p241 = scmp.ne.s32.totalorder %s230, %s233
    %p242 = scmp.eq.s32.totalorder %s47, 1
    %p243 = por %p241, %p242
    %p244 = scmp.ne.s32.totalorder %s233, %s234
    %p245 = scmp.eq.s32.totalorder %s47, 0
    %p246 = por %p244, %p245
    %p247 = scmp.ne.s32.totalorder %s233, %s234
    %p248 = scmp.eq.s32.totalorder %s48, 1
    %p249 = por %p247, %p248
    %p251 = scmp.ne.s32.totalorder %s234, %s250
    %p252 = scmp.eq.s32.totalorder %s48, 0
    %p253 = por %p251, %p252
    %s254 = ssub.s32 %s42, %s49
    %p255 = scmp.eq.s32.totalorder %s254, 0
    %s257 = sadd.s32 %s256, 1
    %s258 = scalar_select %p255, %s256, %s257
    %p261 = pneg %p255
    %p262 = scmp.eq.s32.totalorder %s42, 1
    %p263 = por %p261, %p262
    %p264 = scmp.ne.s32.totalorder %s256, %s259
    %p265 = scmp.eq.s32.totalorder %s42, 0
    %p266 = por %p264, %p265
    %p267 = scmp.ne.s32.totalorder %s256, %s259
    %p268 = scmp.eq.s32.totalorder %s47, 1
    %p269 = por %p267, %p268
    %p270 = scmp.ne.s32.totalorder %s259, %s260
    %p271 = scmp.eq.s32.totalorder %s47, 0
    %p272 = por %p270, %p271
    %p273 = scmp.ne.s32.totalorder %s259, %s260
    %p274 = scmp.eq.s32.totalorder %s48, 1
    %p275 = por %p273, %p274
    %p277 = scmp.ne.s32.totalorder %s260, %s276
    %p278 = scmp.eq.s32.totalorder %s48, 0
    %p279 = por %p277, %p278
    %s280 = ssub.s32 %s42, %s49
    %p281 = scmp.eq.s32.totalorder %s280, 0
    %s283 = sadd.s32 %s282, 1
    %s284 = scalar_select %p281, %s282, %s283
    %p287 = pneg %p281
    %p288 = scmp.eq.s32.totalorder %s42, 1
    %p289 = por %p287, %p288
    %p290 = scmp.ne.s32.totalorder %s282, %s285
    %p291 = scmp.eq.s32.totalorder %s42, 0
    %p292 = por %p290, %p291
    %p293 = scmp.ne.s32.totalorder %s282, %s285
    %p294 = scmp.eq.s32.totalorder %s47, 1
    %p295 = por %p293, %p294
    %p296 = scmp.ne.s32.totalorder %s285, %s286
    %p297 = scmp.eq.s32.totalorder %s47, 0
    %p298 = por %p296, %p297
    %p299 = scmp.ne.s32.totalorder %s285, %s286
    %p300 = scmp.eq.s32.totalorder %s48, 1
    %p301 = por %p299, %p300
    %p303 = scmp.ne.s32.totalorder %s286, %s302
    %p304 = scmp.eq.s32.totalorder %s48, 0
    %p305 = por %p303, %p304
    %s306 = ssub.s32 %s42, %s49
    %p307 = scmp.eq.s32.totalorder %s306, 0
    %s309 = sadd.s32 %s308, 1
    %s310 = scalar_select %p307, %s308, %s309
    %p313 = pneg %p307
    %p314 = scmp.eq.s32.totalorder %s42, 1
    %p315 = por %p313, %p314
    %p316 = scmp.ne.s32.totalorder %s308, %s311
    %p317 = scmp.eq.s32.totalorder %s42, 0
    %p318 = por %p316, %p317
    %p319 = scmp.ne.s32.totalorder %s308, %s311
    %p320 = scmp.eq.s32.totalorder %s47, 1
    %p321 = por %p319, %p320
    %p322 = scmp.ne.s32.totalorder %s311, %s312
    %p323 = scmp.eq.s32.totalorder %s47, 0
    %p324 = por %p322, %p323
    %p325 = scmp.ne.s32.totalorder %s311, %s312
    %p326 = scmp.eq.s32.totalorder %s48, 1
    %p327 = por %p325, %p326
    %p329 = scmp.ne.s32.totalorder %s312, %s328
    %p330 = scmp.eq.s32.totalorder %s48, 0
    %p331 = por %p329, %p330
    %s332 = ssub.s32 %s42, %s49
    %p333 = scmp.eq.s32.totalorder %s332, 0
    %s335 = sadd.s32 %s334, 1
    %s336 = scalar_select %p333, %s334, %s335
    %p339 = pneg %p333
    %p340 = scmp.eq.s32.totalorder %s42, 1
    %p341 = por %p339, %p340
    %p342 = scmp.ne.s32.totalorder %s334, %s337
    %p343 = scmp.eq.s32.totalorder %s42, 0
    %p344 = por %p342, %p343
    %p345 = scmp.ne.s32.totalorder %s334, %s337
    %p346 = scmp.eq.s32.totalorder %s47, 1
    %p347 = por %p345, %p346
    %p348 = scmp.ne.s32.totalorder %s337, %s338
    %p349 = scmp.eq.s32.totalorder %s47, 0
    %p350 = por %p348, %p349
    %p351 = scmp.ne.s32.totalorder %s337, %s338
    %p352 = scmp.eq.s32.totalorder %s48, 1
    %p353 = por %p351, %p352
    %p355 = scmp.ne.s32.totalorder %s338, %s354
    %p356 = scmp.eq.s32.totalorder %s48, 0
    %p357 = por %p355, %p356
    %s358 = ssub.s32 %s42, %s49
    %p359 = scmp.eq.s32.totalorder %s358, 0
    %s361 = sadd.s32 %s360, 1
    %s362 = scalar_select %p359, %s360, %s361
    %p365 = pneg %p359
    %p366 = scmp.eq.s32.totalorder %s42, 1
    %p367 = por %p365, %p366
    %p368 = scmp.ne.s32.totalorder %s360, %s363
    %p369 = scmp.eq.s32.totalorder %s42, 0
    %p370 = por %p368, %p369
    %p371 = scmp.ne.s32.totalorder %s360, %s363
    %p372 = scmp.eq.s32.totalorder %s47, 1
    %p373 = por %p371, %p372
    %p374 = scmp.ne.s32.totalorder %s363, %s364
    %p375 = scmp.eq.s32.totalorder %s47, 0
    %p376 = por %p374, %p375
    %p377 = scmp.ne.s32.totalorder %s363, %s364
    %p378 = scmp.eq.s32.totalorder %s48, 1
    %p379 = por %p377, %p378
    %p381 = scmp.ne.s32.totalorder %s364, %s380
    %p382 = scmp.eq.s32.totalorder %s48, 0
    %p383 = por %p381, %p382
    %s384 = ssub.s32 %s42, %s49
    %p385 = scmp.eq.s32.totalorder %s384, 0
    %s387 = sadd.s32 %s386, 1
    %s388 = scalar_select %p385, %s386, %s387
    %p391 = pneg %p385
    %p392 = scmp.eq.s32.totalorder %s42, 1
    %p393 = por %p391, %p392
    %p394 = scmp.ne.s32.totalorder %s386, %s389
    %p395 = scmp.eq.s32.totalorder %s42, 0
    %p396 = por %p394, %p395
    %p397 = scmp.ne.s32.totalorder %s386, %s389
    %p398 = scmp.eq.s32.totalorder %s47, 1
    %p399 = por %p397, %p398
    %p400 = scmp.ne.s32.totalorder %s389, %s390
    %p401 = scmp.eq.s32.totalorder %s47, 0
    %p402 = por %p400, %p401
    %p403 = scmp.ne.s32.totalorder %s389, %s390
    %p404 = scmp.eq.s32.totalorder %s48, 1
    %p405 = por %p403, %p404
    %p407 = scmp.ne.s32.totalorder %s390, %s406
    %p408 = scmp.eq.s32.totalorder %s48, 0
    %p409 = por %p407, %p408
    %s410 = ssub.s32 %s42, %s49
    %p411 = scmp.eq.s32.totalorder %s410, 0
    %s413 = sadd.s32 %s412, 1
    %s414 = scalar_select %p411, %s412, %s413
    %p417 = pneg %p411
    %p418 = scmp.eq.s32.totalorder %s42, 1
    %p419 = por %p417, %p418
    %p420 = scmp.ne.s32.totalorder %s412, %s415
    %p421 = scmp.eq.s32.totalorder %s42, 0
    %p422 = por %p420, %p421
    %p423 = scmp.ne.s32.totalorder %s412, %s415
    %p424 = scmp.eq.s32.totalorder %s47, 1
    %p425 = por %p423, %p424
    %p426 = scmp.ne.s32.totalorder %s415, %s416
    %p427 = scmp.eq.s32.totalorder %s47, 0
    %p428 = por %p426, %p427
    %p429 = scmp.ne.s32.totalorder %s415, %s416
    %p430 = scmp.eq.s32.totalorder %s48, 1
    %p431 = por %p429, %p430
    %p433 = scmp.ne.s32.totalorder %s416, %s432
    %p434 = scmp.eq.s32.totalorder %s48, 0
    %p435 = por %p433, %p434
    %s436 = ssub.s32 %s42, %s49
    %p437 = scmp.eq.s32.totalorder %s436, 0
    %s439 = sadd.s32 %s438, 1
    %s440 = scalar_select %p437, %s438, %s439
    %p443 = pneg %p437
    %p444 = scmp.eq.s32.totalorder %s42, 1
    %p445 = por %p443, %p444
    %p446 = scmp.ne.s32.totalorder %s438, %s441
    %p447 = scmp.eq.s32.totalorder %s42, 0
    %p448 = por %p446, %p447
    %p449 = scmp.ne.s32.totalorder %s438, %s441
    %p450 = scmp.eq.s32.totalorder %s47, 1
    %p451 = por %p449, %p450
    %p452 = scmp.ne.s32.totalorder %s441, %s442
    %p453 = scmp.eq.s32.totalorder %s47, 0
    %p454 = por %p452, %p453
    %p455 = scmp.ne.s32.totalorder %s441, %s442
    %p456 = scmp.eq.s32.totalorder %s48, 1
    %p457 = por %p455, %p456
    %p459 = scmp.ne.s32.totalorder %s442, %s458
    %p460 = scmp.eq.s32.totalorder %s48, 0
    %p461 = por %p459, %p460
    %s462 = ssub.s32 %s42, %s49
    %p463 = scmp.eq.s32.totalorder %s462, 0
    %s465 = sadd.s32 %s464, 1
    %s466 = scalar_select %p463, %s464, %s465
    %p469 = pneg %p463
    %p470 = scmp.eq.s32.totalorder %s42, 1
    %p471 = por %p469, %p470
    %p472 = scmp.ne.s32.totalorder %s464, %s467
    %p473 = scmp.eq.s32.totalorder %s42, 0
    %p474 = por %p472, %p473
    %p475 = scmp.ne.s32.totalorder %s464, %s467
    %p476 = scmp.eq.s32.totalorder %s47, 1
    %p477 = por %p475, %p476
    %p478 = scmp.ne.s32.totalorder %s467, %s468
    %p479 = scmp.eq.s32.totalorder %s47, 0
    %p480 = por %p478, %p479
    %p481 = scmp.ne.s32.totalorder %s467, %s468
    %p482 = scmp.eq.s32.totalorder %s48, 1
    %p483 = por %p481, %p482
    %p485 = scmp.ne.s32.totalorder %s468, %s484
    %p486 = scmp.eq.s32.totalorder %s48, 0
    %p487 = por %p485, %p486
    %s489 = sadd.s32 %s488, 1
    %p492 = scmp.eq.s32.totalorder %s42, 1
    %p493 = scmp.ne.s32.totalorder %s488, %s490
    %p494 = scmp.eq.s32.totalorder %s42, 0
    %p495 = por %p493, %p494
    %p496 = scmp.ne.s32.totalorder %s488, %s490
    %p497 = scmp.eq.s32.totalorder %s47, 1
    %p498 = por %p496, %p497
    %p499 = scmp.ne.s32.totalorder %s490, %s491
    %p500 = scmp.eq.s32.totalorder %s47, 0
    %p501 = por %p499, %p500
    %p502 = scmp.ne.s32.totalorder %s490, %s491
    %p503 = scmp.eq.s32.totalorder %s48, 1
    %p504 = por %p502, %p503
    %p506 = scmp.ne.s32.totalorder %s491, %s505
    %p507 = scmp.eq.s32.totalorder %s48, 0
    %p508 = por %p506, %p507
    %s510 = sadd.s32 %s509, 1
    %p513 = scmp.eq.s32.totalorder %s42, 1
    %p514 = scmp.ne.s32.totalorder %s509, %s511
    %p515 = scmp.eq.s32.totalorder %s42, 0
    %p516 = por %p514, %p515
    %p517 = scmp.ne.s32.totalorder %s509, %s511
    %p518 = scmp.eq.s32.totalorder %s47, 1
    %p519 = por %p517, %p518
    %p520 = scmp.ne.s32.totalorder %s511, %s512
    %p521 = scmp.eq.s32.totalorder %s47, 0
    %p522 = por %p520, %p521
    %p523 = scmp.ne.s32.totalorder %s511, %s512
    %p524 = scmp.eq.s32.totalorder %s48, 1
    %p525 = por %p523, %p524
    %p527 = scmp.ne.s32.totalorder %s512, %s526
    %p528 = scmp.eq.s32.totalorder %s48, 0
    %p529 = por %p527, %p528
    %s531 = sadd.s32 %s530, 1
    %p534 = scmp.eq.s32.totalorder %s42, 1
    %p535 = scmp.ne.s32.totalorder %s530, %s532
    %p536 = scmp.eq.s32.totalorder %s42, 0
    %p537 = por %p535, %p536
    %p538 = scmp.ne.s32.totalorder %s530, %s532
    %p539 = scmp.eq.s32.totalorder %s47, 1
    %p540 = por %p538, %p539
    %p541 = scmp.ne.s32.totalorder %s532, %s533
    %p542 = scmp.eq.s32.totalorder %s47, 0
    %p543 = por %p541, %p542
    %p544 = scmp.ne.s32.totalorder %s532, %s533
    %p545 = scmp.eq.s32.totalorder %s48, 1
    %p546 = por %p544, %p545
    %p548 = scmp.ne.s32.totalorder %s533, %s547
    %p549 = scmp.eq.s32.totalorder %s48, 0
    %p550 = por %p548, %p549
    %s552 = sadd.s32 %s551, 1
    %p555 = scmp.eq.s32.totalorder %s42, 1
    %p556 = scmp.ne.s32.totalorder %s551, %s553
    %p557 = scmp.eq.s32.totalorder %s42, 0
    %p558 = por %p556, %p557
    %p559 = scmp.ne.s32.totalorder %s551, %s553
    %p560 = scmp.eq.s32.totalorder %s47, 1
    %p561 = por %p559, %p560
    %p562 = scmp.ne.s32.totalorder %s553, %s554
    %p563 = scmp.eq.s32.totalorder %s47, 0
    %p564 = por %p562, %p563
    %p565 = scmp.ne.s32.totalorder %s553, %s554
    %p566 = scmp.eq.s32.totalorder %s48, 1
    %p567 = por %p565, %p566
    %p569 = scmp.ne.s32.totalorder %s554, %s568
    %p570 = scmp.eq.s32.totalorder %s48, 0
    %p571 = por %p569, %p570
    %s573 = sadd.s32 %s572, 1
    %p576 = scmp.eq.s32.totalorder %s42, 1
    %p577 = scmp.ne.s32.totalorder %s572, %s574
    %p578 = scmp.eq.s32.totalorder %s42, 0
    %p579 = por %p577, %p578
    %p580 = scmp.ne.s32.totalorder %s572, %s574
    %p581 = scmp.eq.s32.totalorder %s47, 1
    %p582 = por %p580, %p581
    %p583 = scmp.ne.s32.totalorder %s574, %s575
    %p584 = scmp.eq.s32.totalorder %s47, 0
    %p585 = por %p583, %p584
    %p586 = scmp.ne.s32.totalorder %s574, %s575
    %p587 = scmp.eq.s32.totalorder %s48, 1
    %p588 = por %p586, %p587
    %p590 = scmp.ne.s32.totalorder %s575, %s589
    %p591 = scmp.eq.s32.totalorder %s48, 0
    %p592 = por %p590, %p591
    %p593 = scmp.le.s32.totalorder 1, %s42
    %p594 = scmp.lt.s32.totalorder %s42, 3
    %p595 = pnand %p593, %p594
    %p596 = pneg %p595
    // Predicated region
    $region9: #{sentiment_classifier_forward.1} parent=5 // pred_check
      _
    $region10: #{sentiment_classifier_forward.1} parent=5 // pred_check_branch
      %598 = sbr.rel (%p595) target = $region12
    $region11: #{sentiment_classifier_forward.1} parent=5 // pred_region
      %s599 = ssub.s32 %s42, 1
      // Predicated region
      $region13: #{sentiment_classifier_forward.1} parent=11 // pred_check
        %p600 = pneg %p63
      $region14: #{sentiment_classifier_forward.1} parent=11 // pred_check_branch
        %602 = sbr.rel (%p600) target = $region16
      $region15: #{sentiment_classifier_forward.1} parent=11 // pred_region
        _
      $region16: #{sentiment_classifier_forward.1} parent=11 // pred_fallthru
        _
      // Predicated region
      $region17: #{sentiment_classifier_forward.1} parent=11 // pred_check
        %p603 = pneg %p84
      $region18: #{sentiment_classifier_forward.1} parent=11 // pred_check_branch
        %605 = sbr.rel (%p603) target = $region20
      $region19: #{sentiment_classifier_forward.1} parent=11 // pred_region
        _
      $region20: #{sentiment_classifier_forward.1} parent=11 // pred_fallthru
        _
      // Predicated region
      $region21: #{sentiment_classifier_forward.1} parent=11 // pred_check
        %p606 = pneg %p105
      $region22: #{sentiment_classifier_forward.1} parent=11 // pred_check_branch
        %608 = sbr.rel (%p606) target = $region24
      $region23: #{sentiment_classifier_forward.1} parent=11 // pred_region
        _
      $region24: #{sentiment_classifier_forward.1} parent=11 // pred_fallthru
        _
      // Predicated region
      $region25: #{sentiment_classifier_forward.1} parent=11 // pred_check
        %p609 = pneg %p126
      $region26: #{sentiment_classifier_forward.1} parent=11 // pred_check_branch
        %611 = sbr.rel (%p609) target = $region28
      $region27: #{sentiment_classifier_forward.1} parent=11 // pred_region
        _
      $region28: #{sentiment_classifier_forward.1} parent=11 // pred_fallthru
        _
      // Predicated region
      $region29: #{sentiment_classifier_forward.1} parent=11 // pred_check
        %p612 = pneg %p147
      $region30: #{sentiment_classifier_forward.1} parent=11 // pred_check_branch
        %614 = sbr.rel (%p612) target = $region32
      $region31: #{sentiment_classifier_forward.1} parent=11 // pred_region
        _
      $region32: #{sentiment_classifier_forward.1} parent=11 // pred_fallthru
        _
      // Predicated region
      $region33: #{sentiment_classifier_forward.1} parent=11 // pred_check
        %p615 = pneg %p168
      $region34: #{sentiment_classifier_forward.1} parent=11 // pred_check_branch
        %617 = sbr.rel (%p615) target = $region36
      $region35: #{sentiment_classifier_forward.1} parent=11 // pred_region
        _
      $region36: #{sentiment_classifier_forward.1} parent=11 // pred_fallthru
        _
      // Predicated region
      $region37: #{sentiment_classifier_forward.1} parent=11 // pred_check
        %p618 = pneg %p501
      $region38: #{sentiment_classifier_forward.1} parent=11 // pred_check_branch
        %620 = sbr.rel (%p618) target = $region40
      $region39: #{sentiment_classifier_forward.1} parent=11 // pred_region
        _
      $region40: #{sentiment_classifier_forward.1} parent=11 // pred_fallthru
        _
      // Predicated region
      $region41: #{sentiment_classifier_forward.1} parent=11 // pred_check
        %p621 = pneg %p522
      $region42: #{sentiment_classifier_forward.1} parent=11 // pred_check_branch
        %623 = sbr.rel (%p621) target = $region44
      $region43: #{sentiment_classifier_forward.1} parent=11 // pred_region
        _
      $region44: #{sentiment_classifier_forward.1} parent=11 // pred_fallthru
        _
      // Predicated region
      $region45: #{sentiment_classifier_forward.1} parent=11 // pred_check
        %p624 = pneg %p543
      $region46: #{sentiment_classifier_forward.1} parent=11 // pred_check_branch
        %626 = sbr.rel (%p624) target = $region48
      $region47: #{sentiment_classifier_forward.1} parent=11 // pred_region
        _
      $region48: #{sentiment_classifier_forward.1} parent=11 // pred_fallthru
        _
      // Predicated region
      $region49: #{sentiment_classifier_forward.1} parent=11 // pred_check
        %p627 = pneg %p564
      $region50: #{sentiment_classifier_forward.1} parent=11 // pred_check_branch
        %629 = sbr.rel (%p627) target = $region52
      $region51: #{sentiment_classifier_forward.1} parent=11 // pred_region
        _
      $region52: #{sentiment_classifier_forward.1} parent=11 // pred_fallthru
        _
    $region12: #{sentiment_classifier_forward.1} parent=5 // pred_fallthru
      _
    %p630 = scmp.lt.s32.totalorder %s42, 2
    // Predicated region
    $region53: #{sentiment_classifier_forward.1} parent=5 // pred_check
      %p631 = pneg %p630
    $region54: #{sentiment_classifier_forward.1} parent=5 // pred_check_branch
      %633 = sbr.rel (%p631) target = $region56
    $region55: #{sentiment_classifier_forward.1} parent=5 // pred_region
      // Predicated region
      $region57: #{sentiment_classifier_forward.1} parent=55 // pred_check
        %p634 = pneg %p188
      $region58: #{sentiment_classifier_forward.1} parent=55 // pred_check_branch
        %636 = sbr.rel (%p634) target = $region60
      $region59: #{sentiment_classifier_forward.1} parent=55 // pred_region
        %p637 = scmp.lt.s32.totalorder %s42, 1
        %s638 = scalar_select %p637, %s42, 1
        %s639 = smul.addr %s638, 4
        %s640 = smul.addr %s639, 8
        %s641 = scalar_lea.vmem %s8, %s640
      $region60: #{sentiment_classifier_forward.1} parent=55 // pred_fallthru
        _
      // Predicated region
      $region61: #{sentiment_classifier_forward.1} parent=55 // pred_check
        %p642 = pneg %p214
      $region62: #{sentiment_classifier_forward.1} parent=55 // pred_check_branch
        %644 = sbr.rel (%p642) target = $region64
      $region63: #{sentiment_classifier_forward.1} parent=55 // pred_region
        %p645 = scmp.lt.s32.totalorder %s42, 1
        %s646 = scalar_select %p645, %s42, 1
        %s647 = scalar_lea.vmem %s9, %s646
      $region64: #{sentiment_classifier_forward.1} parent=55 // pred_fallthru
        _
      // Predicated region
      $region65: #{sentiment_classifier_forward.1} parent=55 // pred_check
        %p648 = pneg %p240
      $region66: #{sentiment_classifier_forward.1} parent=55 // pred_check_branch
        %650 = sbr.rel (%p648) target = $region68
      $region67: #{sentiment_classifier_forward.1} parent=55 // pred_region
        %p651 = scmp.lt.s32.totalorder %s42, 1
        %s652 = scalar_select %p651, %s42, 1
        %s653 = smul.addr %s652, 4
        %s654 = smul.addr %s653, 8
        %s655 = scalar_lea.vmem %s10, %s654
      $region68: #{sentiment_classifier_forward.1} parent=55 // pred_fallthru
        _
      // Predicated region
      $region69: #{sentiment_classifier_forward.1} parent=55 // pred_check
        %p656 = pneg %p266
      $region70: #{sentiment_classifier_forward.1} parent=55 // pred_check_branch
        %658 = sbr.rel (%p656) target = $region72
      $region71: #{sentiment_classifier_forward.1} parent=55 // pred_region
        %p659 = scmp.lt.s32.totalorder %s42, 1
        %s660 = scalar_select %p659, %s42, 1
        %s661 = scalar_lea.vmem %s11, %s660
      $region72: #{sentiment_classifier_forward.1} parent=55 // pred_fallthru
        _
      // Predicated region
      $region73: #{sentiment_classifier_forward.1} parent=55 // pred_check
        %p662 = pneg %p292
      $region74: #{sentiment_classifier_forward.1} parent=55 // pred_check_branch
        %664 = sbr.rel (%p662) target = $region76
      $region75: #{sentiment_classifier_forward.1} parent=55 // pred_region
        %p665 = scmp.lt.s32.totalorder %s42, 1
        %s666 = scalar_select %p665, %s42, 1
        %s667 = scalar_lea.vmem %s12, %s666
      $region76: #{sentiment_classifier_forward.1} parent=55 // pred_fallthru
        _
      // Predicated region
      $region77: #{sentiment_classifier_forward.1} parent=55 // pred_check
        %p668 = pneg %p318
      $region78: #{sentiment_classifier_forward.1} parent=55 // pred_check_branch
        %670 = sbr.rel (%p668) target = $region80
      $region79: #{sentiment_classifier_forward.1} parent=55 // pred_region
        %p671 = scmp.lt.s32.totalorder %s42, 1
        %s672 = scalar_select %p671, %s42, 1
        %s673 = scalar_lea.vmem %s13, %s672
      $region80: #{sentiment_classifier_forward.1} parent=55 // pred_fallthru
        _
      // Predicated region
      $region81: #{sentiment_classifier_forward.1} parent=55 // pred_check
        %p674 = pneg %p344
      $region82: #{sentiment_classifier_forward.1} parent=55 // pred_check_branch
        %676 = sbr.rel (%p674) target = $region84
      $region83: #{sentiment_classifier_forward.1} parent=55 // pred_region
        %p677 = scmp.lt.s32.totalorder %s42, 1
        %s678 = scalar_select %p677, %s42, 1
        %s679 = smul.addr %s678, 4
        %s680 = smul.addr %s679, 8
        %s681 = scalar_lea.vmem %s14, %s680
      $region84: #{sentiment_classifier_forward.1} parent=55 // pred_fallthru
        _
      // Predicated region
      $region85: #{sentiment_classifier_forward.1} parent=55 // pred_check
        %p682 = pneg %p370
      $region86: #{sentiment_classifier_forward.1} parent=55 // pred_check_branch
        %684 = sbr.rel (%p682) target = $region88
      $region87: #{sentiment_classifier_forward.1} parent=55 // pred_region
        %p685 = scmp.lt.s32.totalorder %s42, 1
        %s686 = scalar_select %p685, %s42, 1
        %s687 = scalar_lea.vmem %s15, %s686
      $region88: #{sentiment_classifier_forward.1} parent=55 // pred_fallthru
        _
      // Predicated region
      $region89: #{sentiment_classifier_forward.1} parent=55 // pred_check
        %p688 = pneg %p396
      $region90: #{sentiment_classifier_forward.1} parent=55 // pred_check_branch
        %690 = sbr.rel (%p688) target = $region92
      $region91: #{sentiment_classifier_forward.1} parent=55 // pred_region
        %p691 = scmp.lt.s32.totalorder %s42, 1
        %s692 = scalar_select %p691, %s42, 1
        %s693 = smul.addr %s692, 8
        %s694 = smul.addr %s693, 8
        %s695 = scalar_lea.vmem %s16, %s694
      $region92: #{sentiment_classifier_forward.1} parent=55 // pred_fallthru
        _
      // Predicated region
      $region93: #{sentiment_classifier_forward.1} parent=55 // pred_check
        %p696 = pneg %p422
      $region94: #{sentiment_classifier_forward.1} parent=55 // pred_check_branch
        %698 = sbr.rel (%p696) target = $region96
      $region95: #{sentiment_classifier_forward.1} parent=55 // pred_region
        %p699 = scmp.lt.s32.totalorder %s42, 1
        %s700 = scalar_select %p699, %s42, 1
        %s701 = scalar_lea.vmem %s17, %s700
      $region96: #{sentiment_classifier_forward.1} parent=55 // pred_fallthru
        _
      // Predicated region
      $region97: #{sentiment_classifier_forward.1} parent=55 // pred_check
        %p702 = pneg %p448
      $region98: #{sentiment_classifier_forward.1} parent=55 // pred_check_branch
        %704 = sbr.rel (%p702) target = $region100
      $region99: #{sentiment_classifier_forward.1} parent=55 // pred_region
        %p705 = scmp.lt.s32.totalorder %s42, 1
        %s706 = scalar_select %p705, %s42, 1
        %s707 = scalar_lea.vmem %s18, %s706
      $region100: #{sentiment_classifier_forward.1} parent=55 // pred_fallthru
        _
      // Predicated region
      $region101: #{sentiment_classifier_forward.1} parent=55 // pred_check
        %p708 = pneg %p474
      $region102: #{sentiment_classifier_forward.1} parent=55 // pred_check_branch
        %710 = sbr.rel (%p708) target = $region104
      $region103: #{sentiment_classifier_forward.1} parent=55 // pred_region
        %p711 = scmp.lt.s32.totalorder %s42, 1
        %s712 = scalar_select %p711, %s42, 1
        %s713 = scalar_lea.vmem %s19, %s712
      $region104: #{sentiment_classifier_forward.1} parent=55 // pred_fallthru
        _
    $region56: #{sentiment_classifier_forward.1} parent=5 // pred_fallthru
      _
    %p714 = scmp.le.s32.totalorder 1, %s42
    %p715 = scmp.lt.s32.totalorder %s42, 3
    %p716 = pnand %p714, %p715
    %p717 = pneg %p716
    // Predicated region
    $region105: #{sentiment_classifier_forward.1} parent=5 // pred_check
      _
    $region106: #{sentiment_classifier_forward.1} parent=5 // pred_check_branch
      %719 = sbr.rel (%p716) target = $region108
    $region107: #{sentiment_classifier_forward.1} parent=5 // pred_region
      %s720 = ssub.s32 %s42, 1
      %p721 = pneg %p63
      %p722 = pneg %p60
      %p723 = pneg %p84
      %p724 = pneg %p81
      %p725 = pneg %p105
      %p726 = pneg %p102
      %p727 = pneg %p126
      %p728 = pneg %p123
      %p729 = pneg %p147
      %p730 = pneg %p144
      %p731 = pneg %p168
      %p732 = pneg %p165
      %p733 = scmp.lt.s32.totalorder %s47, 1
      %s734 = scalar_select %p733, %s47, 1
      %s735 = smul.addr %s734, 4
      %s736 = smul.addr %s735, 8
      %s737 = scalar_lea.vmem %s8, %s736
      %p738 = pneg %p194
      %p739 = pneg %p191
      %p740 = scmp.lt.s32.totalorder %s47, 1
      %s741 = scalar_select %p740, %s47, 1
      %s742 = scalar_lea.vmem %s9, %s741
      %p743 = pneg %p220
      %p744 = pneg %p217
      %p745 = scmp.lt.s32.totalorder %s47, 1
      %s746 = scalar_select %p745, %s47, 1
      %s747 = smul.addr %s746, 4
      %s748 = smul.addr %s747, 8
      %s749 = scalar_lea.vmem %s10, %s748
      %p750 = pneg %p246
      %p751 = pneg %p243
      %p752 = scmp.lt.s32.totalorder %s47, 1
      %s753 = scalar_select %p752, %s47, 1
      %s754 = scalar_lea.vmem %s11, %s753
      %p755 = pneg %p272
      %p756 = pneg %p269
      %p757 = scmp.lt.s32.totalorder %s47, 1
      %s758 = scalar_select %p757, %s47, 1
      %s759 = scalar_lea.vmem %s12, %s758
      %p760 = pneg %p298
      %p761 = pneg %p295
      %p762 = scmp.lt.s32.totalorder %s47, 1
      %s763 = scalar_select %p762, %s47, 1
      %s764 = scalar_lea.vmem %s13, %s763
      %p765 = pneg %p324
      %p766 = pneg %p321
      %p767 = scmp.lt.s32.totalorder %s47, 1
      %s768 = scalar_select %p767, %s47, 1
      %s769 = smul.addr %s768, 4
      %s770 = smul.addr %s769, 8
      %s771 = scalar_lea.vmem %s14, %s770
      %p772 = pneg %p350
      %p773 = pneg %p347
      %p774 = scmp.lt.s32.totalorder %s47, 1
      %s775 = scalar_select %p774, %s47, 1
      %s776 = scalar_lea.vmem %s15, %s775
      %p777 = pneg %p376
      %p778 = pneg %p373
      %p779 = scmp.lt.s32.totalorder %s47, 1
      %s780 = scalar_select %p779, %s47, 1
      %s781 = smul.addr %s780, 8
      %s782 = smul.addr %s781, 8
      %s783 = scalar_lea.vmem %s16, %s782
      %p784 = pneg %p402
      %p785 = pneg %p399
      %p786 = scmp.lt.s32.totalorder %s47, 1
      %s787 = scalar_select %p786, %s47, 1
      %s788 = scalar_lea.vmem %s17, %s787
      %p789 = pneg %p428
      %p790 = pneg %p425
      %p791 = scmp.lt.s32.totalorder %s47, 1
      %s792 = scalar_select %p791, %s47, 1
      %s793 = scalar_lea.vmem %s18, %s792
      %p794 = pneg %p454
      %p795 = pneg %p451
      %p796 = scmp.lt.s32.totalorder %s47, 1
      %s797 = scalar_select %p796, %s47, 1
      %s798 = scalar_lea.vmem %s19, %s797
      %p799 = pneg %p480
      %p800 = pneg %p477
      %p801 = pneg %p501
      %p802 = pneg %p498
      %p803 = pneg %p522
      %p804 = pneg %p519
      %p805 = pneg %p543
      %p806 = pneg %p540
      %p807 = pneg %p564
      %p808 = pneg %p561
      %p809 = pneg %p585
      %p810 = pneg %p582
      %p811 = scmp.lt.s32.totalorder %s47, 1
      %s812 = scalar_select %p811, %s47, 1
      %s813 = smul.addr %s812, 4
      %s814 = smul.addr %s813, 8
      %s815 = scalar_lea.vmem %s8, %s814
      %p816 = scmp.lt.s32.totalorder %s47, 1
      %s817 = scalar_select %p816, %s47, 1
      %s818 = scalar_lea.vmem %s9, %s817
      %p819 = scmp.lt.s32.totalorder %s47, 1
      %s820 = scalar_select %p819, %s47, 1
      %s821 = smul.addr %s820, 4
      %s822 = smul.addr %s821, 8
      %s823 = scalar_lea.vmem %s10, %s822
      %p824 = scmp.lt.s32.totalorder %s47, 1
      %s825 = scalar_select %p824, %s47, 1
      %s826 = scalar_lea.vmem %s11, %s825
      %p827 = scmp.lt.s32.totalorder %s47, 1
      %s828 = scalar_select %p827, %s47, 1
      %s829 = scalar_lea.vmem %s12, %s828
      %p830 = scmp.lt.s32.totalorder %s47, 1
      %s831 = scalar_select %p830, %s47, 1
      %s832 = scalar_lea.vmem %s13, %s831
      %p833 = scmp.lt.s32.totalorder %s47, 1
      %s834 = scalar_select %p833, %s47, 1
      %s835 = smul.addr %s834, 4
      %s836 = smul.addr %s835, 8
      %s837 = scalar_lea.vmem %s14, %s836
      %p838 = scmp.lt.s32.totalorder %s47, 1
      %s839 = scalar_select %p838, %s47, 1
      %s840 = scalar_lea.vmem %s15, %s839
      %p841 = scmp.lt.s32.totalorder %s47, 1
      %s842 = scalar_select %p841, %s47, 1
      %s843 = smul.addr %s842, 8
      %s844 = smul.addr %s843, 8
      %s845 = scalar_lea.vmem %s16, %s844
      %p846 = scmp.lt.s32.totalorder %s47, 1
      %s847 = scalar_select %p846, %s47, 1
      %s848 = scalar_lea.vmem %s17, %s847
      %p849 = scmp.lt.s32.totalorder %s47, 1
      %s850 = scalar_select %p849, %s47, 1
      %s851 = scalar_lea.vmem %s18, %s850
      %p852 = scmp.lt.s32.totalorder %s47, 1
      %s853 = scalar_select %p852, %s47, 1
      %s854 = scalar_lea.vmem %s19, %s853
      %p855 = scmp.eq.s32.totalorder %s47, 0
      // Predicated region
      $region109: #{sentiment_classifier_forward.1} parent=107 // pred_check
        %p856 = pneg %p855
      $region110: #{sentiment_classifier_forward.1} parent=107 // pred_check_branch
        %858 = sbr.rel (%p856) target = $region112
      $region111: #{sentiment_classifier_forward.1} parent=107 // pred_region
        %s859 = sld [smem:[#allocation5]]
        %s860 = sld [smem:[#allocation6]]
        %s861 = scalar_lea.vmem %s3, %s859
        %v862 = vld [vmem:[%s861] sm:$0x1]
        %v863 = vld [vmem:[%s4] sm:$0x1]
        %v864 = vadd.f32 %v862, %v863
        %s865 = scalar_lea.vmem %s5, %s860
        %v866 = vld [vmem:[%s865] sm:$0x1]
        %v867 = vadd.f32 %v864, %v866
        %vm868 = vcmask 253952
        %869 = vst.msk [vmem:[#allocation2] sm:$0x1] %vm868, %v867
        %s870 = sld [smem:[#allocation5 + $0x1]]
        %s871 = sld [smem:[#allocation6 + $0x1]]
        %s872 = scalar_lea.vmem %s3, %s870
        %v873 = vld [vmem:[%s872] sm:$0x1]
        %v874 = vld [vmem:[%s4 + $0x1] sm:$0x1]
        %v875 = vadd.f32 %v873, %v874
        %s876 = scalar_lea.vmem %s5, %s871
        %v877 = vld [vmem:[%s876] sm:$0x1]
        %v878 = vadd.f32 %v875, %v877
        %879 = vst.msk [vmem:[#allocation2 + $0x1] sm:$0x1] %vm868, %v878
        %s880 = sld [smem:[#allocation5 + $0x2]]
        %s881 = sld [smem:[#allocation6 + $0x2]]
        %s882 = scalar_lea.vmem %s3, %s880
        %v883 = vld [vmem:[%s882] sm:$0x1]
        %v884 = vld [vmem:[%s4 + $0x2] sm:$0x1]
        %v885 = vadd.f32 %v883, %v884
        %s886 = scalar_lea.vmem %s5, %s881
        %v887 = vld [vmem:[%s886] sm:$0x1]
        %v888 = vadd.f32 %v885, %v887
        %889 = vst.msk [vmem:[#allocation2 + $0x2] sm:$0x1] %vm868, %v888
        %s890 = sld [smem:[#allocation5 + $0x3]]
        %s891 = sld [smem:[#allocation6 + $0x3]]
        %s892 = scalar_lea.vmem %s3, %s890
        %v893 = vld [vmem:[%s892] sm:$0x1]
        %v894 = vld [vmem:[%s4 + $0x3] sm:$0x1]
        %v895 = vadd.f32 %v893, %v894
        %s896 = scalar_lea.vmem %s5, %s891
        %v897 = vld [vmem:[%s896] sm:$0x1]
        %v898 = vadd.f32 %v895, %v897
        %899 = vst.msk [vmem:[#allocation2 + $0x3] sm:$0x1] %vm868, %v898
        %s900 = sld [smem:[#allocation5 + $0x4]]
        %s901 = sld [smem:[#allocation6 + $0x4]]
        %s902 = scalar_lea.vmem %s3, %s900
        %v903 = vld [vmem:[%s902] sm:$0x1]
        %v904 = vld [vmem:[%s4 + $0x4] sm:$0x1]
        %v905 = vadd.f32 %v903, %v904
        %s906 = scalar_lea.vmem %s5, %s901
        %v907 = vld [vmem:[%s906] sm:$0x1]
        %v908 = vadd.f32 %v905, %v907
        %909 = vst.msk [vmem:[#allocation2 + $0x4] sm:$0x1] %vm868, %v908
        %s910 = sld [smem:[#allocation5 + $0x5]]
        %s911 = sld [smem:[#allocation6 + $0x5]]
        %s912 = scalar_lea.vmem %s3, %s910
        %v913 = vld [vmem:[%s912] sm:$0x1]
        %v914 = vld [vmem:[%s4 + $0x5] sm:$0x1]
        %v915 = vadd.f32 %v913, %v914
        %s916 = scalar_lea.vmem %s5, %s911
        %v917 = vld [vmem:[%s916] sm:$0x1]
        %v918 = vadd.f32 %v915, %v917
        %919 = vst.msk [vmem:[#allocation2 + $0x5] sm:$0x1] %vm868, %v918
        %s920 = sld [smem:[#allocation5 + $0x6]]
        %s921 = sld [smem:[#allocation6 + $0x6]]
        %s922 = scalar_lea.vmem %s3, %s920
        %v923 = vld [vmem:[%s922] sm:$0x1]
        %v924 = vld [vmem:[%s4 + $0x6] sm:$0x1]
        %v925 = vadd.f32 %v923, %v924
        %s926 = scalar_lea.vmem %s5, %s921
        %v927 = vld [vmem:[%s926] sm:$0x1]
        %v928 = vadd.f32 %v925, %v927
        %929 = vst.msk [vmem:[#allocation2 + $0x6] sm:$0x1] %vm868, %v928
        %s930 = sld [smem:[#allocation5 + $0x7]]
        %s931 = sld [smem:[#allocation6 + $0x7]]
        %s932 = scalar_lea.vmem %s3, %s930
        %v933 = vld [vmem:[%s932] sm:$0x1]
        %v934 = vld [vmem:[%s4 + $0x7] sm:$0x1]
        %v935 = vadd.f32 %v933, %v934
        %s936 = scalar_lea.vmem %s5, %s931
        %v937 = vld [vmem:[%s936] sm:$0x1]
        %v938 = vadd.f32 %v935, %v937
        %939 = vst.msk [vmem:[#allocation2 + $0x7] sm:$0x1] %vm868, %v938
        %s940 = sld [smem:[#allocation5 + $0x80]]
        %s941 = sld [smem:[#allocation6 + $0x80]]
        %s942 = scalar_lea.vmem %s3, %s940
        %v943 = vld [vmem:[%s942] sm:$0x1]
        %v944 = vld [vmem:[%s4] sm:$0x1]
        %v945 = vadd.f32 %v943, %v944
        %s946 = scalar_lea.vmem %s5, %s941
        %v947 = vld [vmem:[%s946] sm:$0x1]
        %v948 = vadd.f32 %v945, %v947
        %949 = vst.msk [vmem:[#allocation2 + $0x8] sm:$0x1] %vm868, %v948
        %s950 = sld [smem:[#allocation5 + $0x81]]
        %s951 = sld [smem:[#allocation6 + $0x81]]
        %s952 = scalar_lea.vmem %s3, %s950
        %v953 = vld [vmem:[%s952] sm:$0x1]
        %v954 = vld [vmem:[%s4 + $0x1] sm:$0x1]
        %v955 = vadd.f32 %v953, %v954
        %s956 = scalar_lea.vmem %s5, %s951
        %v957 = vld [vmem:[%s956] sm:$0x1]
        %v958 = vadd.f32 %v955, %v957
        %959 = vst.msk [vmem:[#allocation2 + $0x9] sm:$0x1] %vm868, %v958
        %s960 = sld [smem:[#allocation5 + $0x82]]
        %s961 = sld [smem:[#allocation6 + $0x82]]
        %s962 = scalar_lea.vmem %s3, %s960
        %v963 = vld [vmem:[%s962] sm:$0x1]
        %v964 = vld [vmem:[%s4 + $0x2] sm:$0x1]
        %v965 = vadd.f32 %v963, %v964
        %s966 = scalar_lea.vmem %s5, %s961
        %v967 = vld [vmem:[%s966] sm:$0x1]
        %v968 = vadd.f32 %v965, %v967
        %969 = vst.msk [vmem:[#allocation2 + $0xa] sm:$0x1] %vm868, %v968
        %s970 = sld [smem:[#allocation5 + $0x83]]
        %s971 = sld [smem:[#allocation6 + $0x83]]
        %s972 = scalar_lea.vmem %s3, %s970
        %v973 = vld [vmem:[%s972] sm:$0x1]
        %v974 = vld [vmem:[%s4 + $0x3] sm:$0x1]
        %v975 = vadd.f32 %v973, %v974
        %s976 = scalar_lea.vmem %s5, %s971
        %v977 = vld [vmem:[%s976] sm:$0x1]
        %v978 = vadd.f32 %v975, %v977
        %979 = vst.msk [vmem:[#allocation2 + $0xb] sm:$0x1] %vm868, %v978
        %s980 = sld [smem:[#allocation5 + $0x84]]
        %s981 = sld [smem:[#allocation6 + $0x84]]
        %s982 = scalar_lea.vmem %s3, %s980
        %v983 = vld [vmem:[%s982] sm:$0x1]
        %v984 = vld [vmem:[%s4 + $0x4] sm:$0x1]
        %v985 = vadd.f32 %v983, %v984
        %s986 = scalar_lea.vmem %s5, %s981
        %v987 = vld [vmem:[%s986] sm:$0x1]
        %v988 = vadd.f32 %v985, %v987
        %989 = vst.msk [vmem:[#allocation2 + $0xc] sm:$0x1] %vm868, %v988
        %s990 = sld [smem:[#allocation5 + $0x85]]
        %s991 = sld [smem:[#allocation6 + $0x85]]
        %s992 = scalar_lea.vmem %s3, %s990
        %v993 = vld [vmem:[%s992] sm:$0x1]
        %v994 = vld [vmem:[%s4 + $0x5] sm:$0x1]
        %v995 = vadd.f32 %v993, %v994
        %s996 = scalar_lea.vmem %s5, %s991
        %v997 = vld [vmem:[%s996] sm:$0x1]
        %v998 = vadd.f32 %v995, %v997
        %999 = vst.msk [vmem:[#allocation2 + $0xd] sm:$0x1] %vm868, %v998
        %s1000 = sld [smem:[#allocation5 + $0x86]]
        %s1001 = sld [smem:[#allocation6 + $0x86]]
        %s1002 = scalar_lea.vmem %s3, %s1000
        %v1003 = vld [vmem:[%s1002] sm:$0x1]
        %v1004 = vld [vmem:[%s4 + $0x6] sm:$0x1]
        %v1005 = vadd.f32 %v1003, %v1004
        %s1006 = scalar_lea.vmem %s5, %s1001
        %v1007 = vld [vmem:[%s1006] sm:$0x1]
        %v1008 = vadd.f32 %v1005, %v1007
        %1009 = vst.msk [vmem:[#allocation2 + $0xe] sm:$0x1] %vm868, %v1008
        %s1010 = sld [smem:[#allocation5 + $0x87]]
        %s1011 = sld [smem:[#allocation6 + $0x87]]
        %s1012 = scalar_lea.vmem %s3, %s1010
        %v1013 = vld [vmem:[%s1012] sm:$0x1]
        %v1014 = vld [vmem:[%s4 + $0x7] sm:$0x1]
        %v1015 = vadd.f32 %v1013, %v1014
        %s1016 = scalar_lea.vmem %s5, %s1011
        %v1017 = vld [vmem:[%s1016] sm:$0x1]
        %v1018 = vadd.f32 %v1015, %v1017
        %1019 = vst.msk [vmem:[#allocation2 + $0xf] sm:$0x1] %vm868, %v1018
        %v1020 = vld [vmem:[#allocation2] sm:$0xff]
        %v1021 = vld [vmem:[#allocation2 + $0x8] sm:$0xff]
        %v1022 = vld [vmem:[%s6] sm:$0x1]
        %v1023 = vld [vmem:[%s7] sm:$0x1]
        %vm1024 = vcmask 261120
        %v1025 = vsel %vm1024, %v1020, 0.0
        %1026 = vadd.xlane.f32.xlu0 %v1025
        %v1027 = vpop.xlane.xlu0 %1026
        %v1028 = vsel %vm1024, %v1021, 0.0
        %1029 = vadd.xlane.f32.xlu0 %v1028
        %v1030 = vpop.xlane.xlu0 %1029
        %v1031 = vrcp.pop 32.0
        %v1032 = vmul.f32 %v1027, %v1031
        %v1033 = vmul.f32 %v1030, %v1031
        %v1034 = vsub.f32 %v1020, %v1032
        %v1035 = vsub.f32 %v1021, %v1033
        %v1036 = vmul.f32 %v1034, %v1034
        %v1037 = vmul.f32 %v1035, %v1035
        %v1038 = vsel %vm1024, %v1036, 0.0
        %1039 = vadd.xlane.f32.xlu0 %v1038
        %v1040 = vpop.xlane.xlu0 %1039
        %v1041 = vsel %vm1024, %v1037, 0.0
        %1042 = vadd.xlane.f32.xlu0 %v1041
        %v1043 = vpop.xlane.xlu0 %1042
        %v1044 = vmul.f32 %v1040, %v1031
        %v1045 = vmul.f32 %v1043, %v1031
        %v1046 = vadd.f32 %v1044, 1e-12
        %v1047 = vadd.f32 %v1045, 1e-12
        %v1048 = vrsqrt.pop %v1046
        %v1049 = vrsqrt.pop %v1047
        %v1050 = vmul.f32 %v1034, %v1048
        %v1051 = vmul.f32 %v1035, %v1049
        %v1053 = vlaneseq
        %v1054 = vshrl.u32 %v1053, 7
        %v1055 = vsub.s32 0, %v1054
        %v1056 = vrot.slane %v1022, %v1055
        %v1058 = vmul.f32 %v1050, %v1056
        %v1059 = vmul.f32 %v1051, %v1056
        %v1061 = vlaneseq
        %v1062 = vshrl.u32 %v1061, 7
        %v1063 = vsub.s32 0, %v1062
        %v1064 = vrot.slane %v1023, %v1063
        %v1066 = vadd.f32 %v1058, %v1064
        %v1067 = vadd.f32 %v1059, %v1064
        %1068 = vst.msk [vmem:[#allocation2] sm:$0xff] %vm1024, %v1066
        %1069 = vst.msk [vmem:[#allocation2 + $0x8] sm:$0xff] %vm1024, %v1067
      $region112: #{sentiment_classifier_forward.1} parent=107 // pred_fallthru
        _
      %v1070 = vld [vmem:[#allocation2] sm:$0xff]
      %v1071 = vld [vmem:[#allocation2 + $0x8] sm:$0xff]
      %v1072 = vld [vmem:[%s2] sm:$0x3]
      %v1073 = vcvt.s32.f32 %v1072
      %v1074 = vsub.f32 1.0, %v1073
      %v1075 = vmul.f32 %v1074, -1e+09
      %v1076 = vld [vmem:[%s815] sm:$0xff]
      %v1077 = vld [vmem:[%s815 + $0x8] sm:$0xff]
      %v1078 = vld [vmem:[%s815 + $0x10] sm:$0xff]
      %v1079 = vld [vmem:[%s815 + $0x18] sm:$0xff]
      %v1080 = vld [vmem:[%s818] sm:$0x1]
      %v1082 = vlaneseq
      %v1083 = vshrl.u32 %v1082, 7
      %v1084 = vsub.s32 0, %v1083
      %v1085 = vrot.slane %v1080, %v1084
      %vm1087 = vcmask 261120
      %v1089 = vsel %vm1087, %v1070, 0
      %v1092 = vsel %vm1087, %v1071, 0
      %1094 = vmatprep.subr.mxu0 0.0
      %1095 = vmatpush1.msra.mxu0 0.0
      %1096 = vmatprep.subr.mxu0 0.0
      %1097 = vmatpush1.msra.mxu0 0.0
      %1098 = vmatprep.subr.mxu0 0.0
      %1099 = vmatpush1.msra.mxu0 0.0
      %1100 = vmatprep.subr.mxu0 0.0
      %1101 = vmatpush1.msra.mxu0 0.0
      %1102 = vmatprep.subr.mxu0 0.0
      %1103 = vmatpush1.msra.mxu0 0.0
      %1104 = vmatprep.subr.mxu0 0.0
      %1105 = vmatpush1.msra.mxu0 0.0
      %1106 = vmatprep.subr.mxu0 0.0
      %1107 = vmatpush1.msra.mxu0 0.0
      %1108 = vmatprep.subr.mxu0 0.0
      %1109 = vmatpush1.msra.mxu0 0.0
      %1110 = vmatprep.subr.mxu0 0.0
      %1111 = vmatpush1.msra.mxu0 0.0
      %1112 = vmatprep.subr.mxu0 0.0
      %1113 = vmatpush1.msra.mxu0 0.0
      %1114 = vmatprep.subr.mxu0 0.0
      %1115 = vmatpush1.msra.mxu0 0.0
      %1116 = vmatprep.subr.mxu0 0.0
      %1117 = vmatpush1.msra.mxu0 0.0
      %1118 = vmatprep.subr.mxu0 0.0
      %1119 = vmatpush1.msra.mxu0 %v1079
      %1120 = vmatprep.subr.mxu0 0.0
      %1121 = vmatpush1.msra.mxu0 %v1078
      %1122 = vmatprep.subr.mxu0 0.0
      %1123 = vmatpush1.msra.mxu0 %v1077
      %1124 = vmatprep.subr.mxu0 0.0
      %1125 = vmatpush1.msra.mxu0 %v1076
      %1126 = vmatprep.subr.mxu0 0.0
      %1127 = vmatpush2.msra.mxu0 0.0
      %1128 = vmatprep.subr.mxu0 0.0
      %1129 = vmatpush2.msra.mxu0 0.0
      %1130 = vmatprep.subr.mxu0 0.0
      %1131 = vmatpush2.msra.mxu0 0.0
      %1132 = vmatprep.subr.mxu0 0.0
      %1133 = vmatpush2.msra.mxu0 0.0
      %1134 = vmatprep.subr.mxu0 0.0
      %1135 = vmatpush2.msra.mxu0 0.0
      %1136 = vmatprep.subr.mxu0 0.0
      %1137 = vmatpush2.msra.mxu0 0.0
      %1138 = vmatprep.subr.mxu0 0.0
      %1139 = vmatpush2.msra.mxu0 0.0
      %1140 = vmatprep.subr.mxu0 0.0
      %1141 = vmatpush2.msra.mxu0 0.0
      %1142 = vmatprep.subr.mxu0 0.0
      %1143 = vmatpush2.msra.mxu0 0.0
      %1144 = vmatprep.subr.mxu0 0.0
      %1145 = vmatpush2.msra.mxu0 0.0
      %1146 = vmatprep.subr.mxu0 0.0
      %1147 = vmatpush2.msra.mxu0 0.0
      %1148 = vmatprep.subr.mxu0 0.0
      %1149 = vmatpush2.msra.mxu0 0.0
      %1150 = vmatprep.subr.mxu0 0.0
      %1151 = vmatpush2.msra.mxu0 0.0
      %1152 = vmatprep.subr.mxu0 0.0
      %1153 = vmatpush2.msra.mxu0 0.0
      %1154 = vmatprep.subr.mxu0 0.0
      %1155 = vmatpush2.msra.mxu0 0.0
      %1156 = vmatprep.subr.mxu0 0.0
      %1157 = vmatpush2.msra.mxu0 0.0
      %1158 = vmatprep.mubr.f32.mxu0 0.0
      %1159 = vmatmul.mubr.f32.gmra.mxu0 %v1089
      %v1160 = vpop.f32.mrf.mxu0
      %v1161 = vadd.f32 %v1085, %v1160
      %v1162 = vpop.f32.mrf.mxu0
      %1163 = vmatprep.mubr.f32.mxu0 0.0
      %1164 = vmatmul.mubr.f32.gmra.mxu0 %v1092
      %v1165 = vpop.f32.mrf.mxu0
      %v1166 = vadd.f32 %v1085, %v1165
      %v1167 = vpop.f32.mrf.mxu0
      %1168 = vdwg.mxu0
      %v1169 = vlaneseq
      %v1170 = vshrl.u32 %v1169, 7
      %v1171 = vsub.s32 0, %v1170
      %v1172 = vrot.slane %v1075, %v1171
      %1174 = vrot.lane.b32.xlu0 %v1161, 96
      %v1175 = vpop.permute.xlu0 %1174
      %vm1176 = vcmask 130048
      %v1177 = vsel %vm1176, %v1161, 0
      %v1179 = vsel %vm1176, %v1175, 0
      %1181 = vmatprep.subr.mxu0 0.0
      %1182 = vmatpush1.xpose.msra.mxu0 0.0
      %1183 = vmatprep.subr.mxu0 0.0
      %1184 = vmatpush1.xpose.msra.mxu0 0.0
      %1185 = vmatprep.subr.mxu0 0.0
      %1186 = vmatpush1.xpose.msra.mxu0 0.0
      %1187 = vmatprep.subr.mxu0 0.0
      %1188 = vmatpush1.xpose.msra.mxu0 0.0
      %1189 = vmatprep.subr.mxu0 0.0
      %1190 = vmatpush1.xpose.msra.mxu0 0.0
      %1191 = vmatprep.subr.mxu0 0.0
      %1192 = vmatpush1.xpose.msra.mxu0 0.0
      %1193 = vmatprep.subr.mxu0 0.0
      %1194 = vmatpush1.xpose.msra.mxu0 0.0
      %1195 = vmatprep.subr.mxu0 0.0
      %1196 = vmatpush1.xpose.msra.mxu0 0.0
      %1197 = vmatprep.subr.mxu0 0.0
      %1198 = vmatpush1.xpose.msra.mxu0 0.0
      %1199 = vmatprep.subr.mxu0 0.0
      %1200 = vmatpush1.xpose.msra.mxu0 0.0
      %1201 = vmatprep.subr.mxu0 0.0
      %1202 = vmatpush1.xpose.msra.mxu0 0.0
      %1203 = vmatprep.subr.mxu0 0.0
      %1204 = vmatpush1.xpose.msra.mxu0 0.0
      %1205 = vmatprep.subr.mxu0 0.0
      %1206 = vmatpush1.xpose.msra.mxu0 0.0
      %1207 = vmatprep.subr.mxu0 0.0
      %1208 = vmatpush1.xpose.msra.mxu0 0.0
      %1209 = vmatprep.subr.mxu0 0.0
      %1210 = vmatpush1.xpose.msra.mxu0 0.0
      %1211 = vmatprep.subr.mxu0 0.0
      %1212 = vmatpush1.xpose.msra.mxu0 %v1179
      %1213 = vmatprep.subr.mxu0 0.0
      %1214 = vmatpush2.xpose.msra.mxu0 0.0
      %1215 = vmatprep.subr.mxu0 0.0
      %1216 = vmatpush2.xpose.msra.mxu0 0.0
      %1217 = vmatprep.subr.mxu0 0.0
      %1218 = vmatpush2.xpose.msra.mxu0 0.0
      %1219 = vmatprep.subr.mxu0 0.0
      %1220 = vmatpush2.xpose.msra.mxu0 0.0
      %1221 = vmatprep.subr.mxu0 0.0
      %1222 = vmatpush2.xpose.msra.mxu0 0.0
      %1223 = vmatprep.subr.mxu0 0.0
      %1224 = vmatpush2.xpose.msra.mxu0 0.0
      %1225 = vmatprep.subr.mxu0 0.0
      %1226 = vmatpush2.xpose.msra.mxu0 0.0
      %1227 = vmatprep.subr.mxu0 0.0
      %1228 = vmatpush2.xpose.msra.mxu0 0.0
      %1229 = vmatprep.subr.mxu0 0.0
      %1230 = vmatpush2.xpose.msra.mxu0 0.0
      %1231 = vmatprep.subr.mxu0 0.0
      %1232 = vmatpush2.xpose.msra.mxu0 0.0
      %1233 = vmatprep.subr.mxu0 0.0
      %1234 = vmatpush2.xpose.msra.mxu0 0.0
      %1235 = vmatprep.subr.mxu0 0.0
      %1236 = vmatpush2.xpose.msra.mxu0 0.0
      %1237 = vmatprep.subr.mxu0 0.0
      %1238 = vmatpush2.xpose.msra.mxu0 0.0
      %1239 = vmatprep.subr.mxu0 0.0
      %1240 = vmatpush2.xpose.msra.mxu0 0.0
      %1241 = vmatprep.subr.mxu0 0.0
      %1242 = vmatpush2.xpose.msra.mxu0 0.0
      %1243 = vmatprep.subr.mxu0 0.0
      %1244 = vmatpush2.xpose.msra.mxu0 0.0
      %1245 = vmatprep.mubr.f32.mxu0 0.0
      %1246 = vmatmul.mubr.f32.gmra.mxu0 %v1177
      %v1247 = vpop.f32.mrf.mxu0
      %v1248 = vadd.f32 %v1172, %v1247
      %v1249 = vpop.f32.mrf.mxu0
      %1250 = vdwg.mxu0
      %vm1251 = vcmask 64512
      %v1252 = vsel %vm1251, %v1248, -inf
      %1253 = vmax.xlane.f32.xlu0 %v1252
      %v1254 = vpop.xlane.xlu0 %1253
      %v1255 = vsub.f32 %v1248, %v1254
      %v1256 = vmul.f32 %v1255, 1.442695
      %v1257 = vpow.pop %v1256
      %v1258 = vsel %vm1251, %v1257, 0.0
      %1259 = vadd.xlane.f32.xlu0 %v1258
      %v1260 = vpop.xlane.xlu0 %1259
      %v1261 = vrcp.pop %v1260
      %v1262 = vmul.f32 %v1257, %v1261
      %1263 = vrot.lane.b32.xlu0 %v1161, 64
      %v1264 = vpop.permute.xlu0 %1263
      %v1267 = vsel %vm1251, %v1262, 0
      %1269 = vmatprep.subr.mxu0 0.0
      %1270 = vmatpush1.msra.mxu0 0.0
      %1271 = vmatprep.subr.mxu0 0.0
      %1272 = vmatpush1.msra.mxu0 0.0
      %1273 = vmatprep.subr.mxu0 0.0
      %1274 = vmatpush1.msra.mxu0 0.0
      %1275 = vmatprep.subr.mxu0 0.0
      %1276 = vmatpush1.msra.mxu0 0.0
      %1277 = vmatprep.subr.mxu0 0.0
      %1278 = vmatpush1.msra.mxu0 0.0
      %1279 = vmatprep.subr.mxu0 0.0
      %1280 = vmatpush1.msra.mxu0 0.0
      %1281 = vmatprep.subr.mxu0 0.0
      %1282 = vmatpush1.msra.mxu0 0.0
      %1283 = vmatprep.subr.mxu0 0.0
      %1284 = vmatpush1.msra.mxu0 0.0
      %1285 = vmatprep.subr.mxu0 0.0
      %1286 = vmatpush1.msra.mxu0 0.0
      %1287 = vmatprep.subr.mxu0 0.0
      %1288 = vmatpush1.msra.mxu0 0.0
      %1289 = vmatprep.subr.mxu0 0.0
      %1290 = vmatpush1.msra.mxu0 0.0
      %1291 = vmatprep.subr.mxu0 0.0
      %1292 = vmatpush1.msra.mxu0 0.0
      %1293 = vmatprep.subr.mxu0 0.0
      %1294 = vmatpush1.msra.mxu0 0.0
      %1295 = vmatprep.subr.mxu0 0.0
      %1296 = vmatpush1.msra.mxu0 0.0
      %1297 = vmatprep.subr.mxu0 0.0
      %1298 = vmatpush1.msra.mxu0 0.0
      %1299 = vmatprep.subr.mxu0 0.0
      %1300 = vmatpush1.msra.mxu0 %v1264
      %1301 = vmatprep.subr.mxu0 0.0
      %1302 = vmatpush2.msra.mxu0 0.0
      %1303 = vmatprep.subr.mxu0 0.0
      %1304 = vmatpush2.msra.mxu0 0.0
      %1305 = vmatprep.subr.mxu0 0.0
      %1306 = vmatpush2.msra.mxu0 0.0
      %1307 = vmatprep.subr.mxu0 0.0
      %1308 = vmatpush2.msra.mxu0 0.0
      %1309 = vmatprep.subr.mxu0 0.0
      %1310 = vmatpush2.msra.mxu0 0.0
      %1311 = vmatprep.subr.mxu0 0.0
      %1312 = vmatpush2.msra.mxu0 0.0
      %1313 = vmatprep.subr.mxu0 0.0
      %1314 = vmatpush2.msra.mxu0 0.0
      %1315 = vmatprep.subr.mxu0 0.0
      %1316 = vmatpush2.msra.mxu0 0.0
      %1317 = vmatprep.subr.mxu0 0.0
      %1318 = vmatpush2.msra.mxu0 0.0
      %1319 = vmatprep.subr.mxu0 0.0
      %1320 = vmatpush2.msra.mxu0 0.0
      %1321 = vmatprep.subr.mxu0 0.0
      %1322 = vmatpush2.msra.mxu0 0.0
      %1323 = vmatprep.subr.mxu0 0.0
      %1324 = vmatpush2.msra.mxu0 0.0
      %1325 = vmatprep.subr.mxu0 0.0
      %1326 = vmatpush2.msra.mxu0 0.0
      %1327 = vmatprep.subr.mxu0 0.0
      %1328 = vmatpush2.msra.mxu0 0.0
      %1329 = vmatprep.subr.mxu0 0.0
      %1330 = vmatpush2.msra.mxu0 0.0
      %1331 = vmatprep.subr.mxu0 0.0
      %1332 = vmatpush2.msra.mxu0 0.0
      %1333 = vmatprep.mubr.f32.mxu0 0.0
      %1334 = vmatmul.mubr.f32.gmra.mxu0 %v1267
      %v1335 = vpop.f32.mrf.mxu0
      %v1336 = vadd.f32 0.0, %v1335
      %v1337 = vpop.f32.mrf.mxu0
      %1338 = vdwg.mxu0
      %1339 = vst.msk [vmem:[#allocation3] sm:$0xff] %vm1176, %v1336
      %1340 = vrot.lane.b32.xlu0 %v1161, 112
      %v1341 = vpop.permute.xlu0 %1340
      %1342 = vrot.lane.b32.xlu0 %v1161, 80
      %v1343 = vpop.permute.xlu0 %1342
      %v1344 = vsel %vm1176, %v1341, 0
      %v1346 = vsel %vm1176, %v1343, 0
      %1348 = vmatprep.subr.mxu0 0.0
      %1349 = vmatpush1.xpose.msra.mxu0 0.0
      %1350 = vmatprep.subr.mxu0 0.0
      %1351 = vmatpush1.xpose.msra.mxu0 0.0
      %1352 = vmatprep.subr.mxu0 0.0
      %1353 = vmatpush1.xpose.msra.mxu0 0.0
      %1354 = vmatprep.subr.mxu0 0.0
      %1355 = vmatpush1.xpose.msra.mxu0 0.0
      %1356 = vmatprep.subr.mxu0 0.0
      %1357 = vmatpush1.xpose.msra.mxu0 0.0
      %1358 = vmatprep.subr.mxu0 0.0
      %1359 = vmatpush1.xpose.msra.mxu0 0.0
      %1360 = vmatprep.subr.mxu0 0.0
      %1361 = vmatpush1.xpose.msra.mxu0 0.0
      %1362 = vmatprep.subr.mxu0 0.0
      %1363 = vmatpush1.xpose.msra.mxu0 0.0
      %1364 = vmatprep.subr.mxu0 0.0
      %1365 = vmatpush1.xpose.msra.mxu0 0.0
      %1366 = vmatprep.subr.mxu0 0.0
      %1367 = vmatpush1.xpose.msra.mxu0 0.0
      %1368 = vmatprep.subr.mxu0 0.0
      %1369 = vmatpush1.xpose.msra.mxu0 0.0
      %1370 = vmatprep.subr.mxu0 0.0
      %1371 = vmatpush1.xpose.msra.mxu0 0.0
      %1372 = vmatprep.subr.mxu0 0.0
      %1373 = vmatpush1.xpose.msra.mxu0 0.0
      %1374 = vmatprep.subr.mxu0 0.0
      %1375 = vmatpush1.xpose.msra.mxu0 0.0
      %1376 = vmatprep.subr.mxu0 0.0
      %1377 = vmatpush1.xpose.msra.mxu0 0.0
      %1378 = vmatprep.subr.mxu0 0.0
      %1379 = vmatpush1.xpose.msra.mxu0 %v1346
      %1380 = vmatprep.subr.mxu0 0.0
      %1381 = vmatpush2.xpose.msra.mxu0 0.0
      %1382 = vmatprep.subr.mxu0 0.0
      %1383 = vmatpush2.xpose.msra.mxu0 0.0
      %1384 = vmatprep.subr.mxu0 0.0
      %1385 = vmatpush2.xpose.msra.mxu0 0.0
      %1386 = vmatprep.subr.mxu0 0.0
      %1387 = vmatpush2.xpose.msra.mxu0 0.0
      %1388 = vmatprep.subr.mxu0 0.0
      %1389 = vmatpush2.xpose.msra.mxu0 0.0
      %1390 = vmatprep.subr.mxu0 0.0
      %1391 = vmatpush2.xpose.msra.mxu0 0.0
      %1392 = vmatprep.subr.mxu0 0.0
      %1393 = vmatpush2.xpose.msra.mxu0 0.0
      %1394 = vmatprep.subr.mxu0 0.0
      %1395 = vmatpush2.xpose.msra.mxu0 0.0
      %1396 = vmatprep.subr.mxu0 0.0
      %1397 = vmatpush2.xpose.msra.mxu0 0.0
      %1398 = vmatprep.subr.mxu0 0.0
      %1399 = vmatpush2.xpose.msra.mxu0 0.0
      %1400 = vmatprep.subr.mxu0 0.0
      %1401 = vmatpush2.xpose.msra.mxu0 0.0
      %1402 = vmatprep.subr.mxu0 0.0
      %1403 = vmatpush2.xpose.msra.mxu0 0.0
      %1404 = vmatprep.subr.mxu0 0.0
      %1405 = vmatpush2.xpose.msra.mxu0 0.0
      %1406 = vmatprep.subr.mxu0 0.0
      %1407 = vmatpush2.xpose.msra.mxu0 0.0
      %1408 = vmatprep.subr.mxu0 0.0
      %1409 = vmatpush2.xpose.msra.mxu0 0.0
      %1410 = vmatprep.subr.mxu0 0.0
      %1411 = vmatpush2.xpose.msra.mxu0 0.0
      %1412 = vmatprep.mubr.f32.mxu0 0.0
      %1413 = vmatmul.mubr.f32.gmra.mxu0 %v1344
      %v1414 = vpop.f32.mrf.mxu0
      %v1415 = vadd.f32 %v1172, %v1414
      %v1416 = vpop.f32.mrf.mxu0
      %1417 = vdwg.mxu0
      %v1418 = vsel %vm1251, %v1415, -inf
      %1419 = vmax.xlane.f32.xlu0 %v1418
      %v1420 = vpop.xlane.xlu0 %1419
      %v1421 = vsub.f32 %v1415, %v1420
      %v1422 = vmul.f32 %v1421, 1.442695
      %v1423 = vpow.pop %v1422
      %v1424 = vsel %vm1251, %v1423, 0.0
      %1425 = vadd.xlane.f32.xlu0 %v1424
      %v1426 = vpop.xlane.xlu0 %1425
      %v1427 = vrcp.pop %v1426
      %v1428 = vmul.f32 %v1423, %v1427
      %1429 = vrot.lane.b32.xlu0 %v1161, 48
      %v1430 = vpop.permute.xlu0 %1429
      %v1433 = vsel %vm1251, %v1428, 0
      %1435 = vmatprep.subr.mxu0 0.0
      %1436 = vmatpush1.msra.mxu0 0.0
      %1437 = vmatprep.subr.mxu0 0.0
      %1438 = vmatpush1.msra.mxu0 0.0
      %1439 = vmatprep.subr.mxu0 0.0
      %1440 = vmatpush1.msra.mxu0 0.0
      %1441 = vmatprep.subr.mxu0 0.0
      %1442 = vmatpush1.msra.mxu0 0.0
      %1443 = vmatprep.subr.mxu0 0.0
      %1444 = vmatpush1.msra.mxu0 0.0
      %1445 = vmatprep.subr.mxu0 0.0
      %1446 = vmatpush1.msra.mxu0 0.0
      %1447 = vmatprep.subr.mxu0 0.0
      %1448 = vmatpush1.msra.mxu0 0.0
      %1449 = vmatprep.subr.mxu0 0.0
      %1450 = vmatpush1.msra.mxu0 0.0
      %1451 = vmatprep.subr.mxu0 0.0
      %1452 = vmatpush1.msra.mxu0 0.0
      %1453 = vmatprep.subr.mxu0 0.0
      %1454 = vmatpush1.msra.mxu0 0.0
      %1455 = vmatprep.subr.mxu0 0.0
      %1456 = vmatpush1.msra.mxu0 0.0
      %1457 = vmatprep.subr.mxu0 0.0
      %1458 = vmatpush1.msra.mxu0 0.0
      %1459 = vmatprep.subr.mxu0 0.0
      %1460 = vmatpush1.msra.mxu0 0.0
      %1461 = vmatprep.subr.mxu0 0.0
      %1462 = vmatpush1.msra.mxu0 0.0
      %1463 = vmatprep.subr.mxu0 0.0
      %1464 = vmatpush1.msra.mxu0 0.0
      %1465 = vmatprep.subr.mxu0 0.0
      %1466 = vmatpush1.msra.mxu0 %v1430
      %1467 = vmatprep.subr.mxu0 0.0
      %1468 = vmatpush2.msra.mxu0 0.0
      %1469 = vmatprep.subr.mxu0 0.0
      %1470 = vmatpush2.msra.mxu0 0.0
      %1471 = vmatprep.subr.mxu0 0.0
      %1472 = vmatpush2.msra.mxu0 0.0
      %1473 = vmatprep.subr.mxu0 0.0
      %1474 = vmatpush2.msra.mxu0 0.0
      %1475 = vmatprep.subr.mxu0 0.0
      %1476 = vmatpush2.msra.mxu0 0.0
      %1477 = vmatprep.subr.mxu0 0.0
      %1478 = vmatpush2.msra.mxu0 0.0
      %1479 = vmatprep.subr.mxu0 0.0
      %1480 = vmatpush2.msra.mxu0 0.0
      %1481 = vmatprep.subr.mxu0 0.0
      %1482 = vmatpush2.msra.mxu0 0.0
      %1483 = vmatprep.subr.mxu0 0.0
      %1484 = vmatpush2.msra.mxu0 0.0
      %1485 = vmatprep.subr.mxu0 0.0
      %1486 = vmatpush2.msra.mxu0 0.0
      %1487 = vmatprep.subr.mxu0 0.0
      %1488 = vmatpush2.msra.mxu0 0.0
      %1489 = vmatprep.subr.mxu0 0.0
      %1490 = vmatpush2.msra.mxu0 0.0
      %1491 = vmatprep.subr.mxu0 0.0
      %1492 = vmatpush2.msra.mxu0 0.0
      %1493 = vmatprep.subr.mxu0 0.0
      %1494 = vmatpush2.msra.mxu0 0.0
      %1495 = vmatprep.subr.mxu0 0.0
      %1496 = vmatpush2.msra.mxu0 0.0
      %1497 = vmatprep.subr.mxu0 0.0
      %1498 = vmatpush2.msra.mxu0 0.0
      %1499 = vmatprep.mubr.f32.mxu0 0.0
      %1500 = vmatmul.mubr.f32.gmra.mxu0 %v1433
      %v1501 = vpop.f32.mrf.mxu0
      %v1502 = vadd.f32 0.0, %v1501
      %v1503 = vpop.f32.mrf.mxu0
      %1504 = vdwg.mxu0
      %1506 = vrot.lane.b32.xlu0 %v1502, 16
      %v1507 = vpop.permute.xlu0 %1506
      %vm1509 = vcmask 261248
      %1510 = vst.msk [vmem:[#allocation3] sm:$0xff] %vm1509, %v1507
      %v1511 = vlaneseq
      %v1512 = vshrl.u32 %v1511, 7
      %v1513 = vsub.s32 1, %v1512
      %v1514 = vrot.slane %v1075, %v1513
      %1516 = vrot.lane.b32.xlu0 %v1166, 96
      %v1517 = vpop.permute.xlu0 %1516
      %v1518 = vsel %vm1176, %v1166, 0
      %v1520 = vsel %vm1176, %v1517, 0
      %1522 = vmatprep.subr.mxu0 0.0
      %1523 = vmatpush1.xpose.msra.mxu0 0.0
      %1524 = vmatprep.subr.mxu0 0.0
      %1525 = vmatpush1.xpose.msra.mxu0 0.0
      %1526 = vmatprep.subr.mxu0 0.0
      %1527 = vmatpush1.xpose.msra.mxu0 0.0
      %1528 = vmatprep.subr.mxu0 0.0
      %1529 = vmatpush1.xpose.msra.mxu0 0.0
      %1530 = vmatprep.subr.mxu0 0.0
      %1531 = vmatpush1.xpose.msra.mxu0 0.0
      %1532 = vmatprep.subr.mxu0 0.0
      %1533 = vmatpush1.xpose.msra.mxu0 0.0
      %1534 = vmatprep.subr.mxu0 0.0
      %1535 = vmatpush1.xpose.msra.mxu0 0.0
      %1536 = vmatprep.subr.mxu0 0.0
      %1537 = vmatpush1.xpose.msra.mxu0 0.0
      %1538 = vmatprep.subr.mxu0 0.0
      %1539 = vmatpush1.xpose.msra.mxu0 0.0
      %1540 = vmatprep.subr.mxu0 0.0
      %1541 = vmatpush1.xpose.msra.mxu0 0.0
      %1542 = vmatprep.subr.mxu0 0.0
      %1543 = vmatpush1.xpose.msra.mxu0 0.0
      %1544 = vmatprep.subr.mxu0 0.0
      %1545 = vmatpush1.xpose.msra.mxu0 0.0
      %1546 = vmatprep.subr.mxu0 0.0
      %1547 = vmatpush1.xpose.msra.mxu0 0.0
      %1548 = vmatprep.subr.mxu0 0.0
      %1549 = vmatpush1.xpose.msra.mxu0 0.0
      %1550 = vmatprep.subr.mxu0 0.0
      %1551 = vmatpush1.xpose.msra.mxu0 0.0
      %1552 = vmatprep.subr.mxu0 0.0
      %1553 = vmatpush1.xpose.msra.mxu0 %v1520
      %1554 = vmatprep.subr.mxu0 0.0
      %1555 = vmatpush2.xpose.msra.mxu0 0.0
      %1556 = vmatprep.subr.mxu0 0.0
      %1557 = vmatpush2.xpose.msra.mxu0 0.0
      %1558 = vmatprep.subr.mxu0 0.0
      %1559 = vmatpush2.xpose.msra.mxu0 0.0
      %1560 = vmatprep.subr.mxu0 0.0
      %1561 = vmatpush2.xpose.msra.mxu0 0.0
      %1562 = vmatprep.subr.mxu0 0.0
      %1563 = vmatpush2.xpose.msra.mxu0 0.0
      %1564 = vmatprep.subr.mxu0 0.0
      %1565 = vmatpush2.xpose.msra.mxu0 0.0
      %1566 = vmatprep.subr.mxu0 0.0
      %1567 = vmatpush2.xpose.msra.mxu0 0.0
      %1568 = vmatprep.subr.mxu0 0.0
      %1569 = vmatpush2.xpose.msra.mxu0 0.0
      %1570 = vmatprep.subr.mxu0 0.0
      %1571 = vmatpush2.xpose.msra.mxu0 0.0
      %1572 = vmatprep.subr.mxu0 0.0
      %1573 = vmatpush2.xpose.msra.mxu0 0.0
      %1574 = vmatprep.subr.mxu0 0.0
      %1575 = vmatpush2.xpose.msra.mxu0 0.0
      %1576 = vmatprep.subr.mxu0 0.0
      %1577 = vmatpush2.xpose.msra.mxu0 0.0
      %1578 = vmatprep.subr.mxu0 0.0
      %1579 = vmatpush2.xpose.msra.mxu0 0.0
      %1580 = vmatprep.subr.mxu0 0.0
      %1581 = vmatpush2.xpose.msra.mxu0 0.0
      %1582 = vmatprep.subr.mxu0 0.0
      %1583 = vmatpush2.xpose.msra.mxu0 0.0
      %1584 = vmatprep.subr.mxu0 0.0
      %1585 = vmatpush2.xpose.msra.mxu0 0.0
      %1586 = vmatprep.mubr.f32.mxu0 0.0
      %1587 = vmatmul.mubr.f32.gmra.mxu0 %v1518
      %v1588 = vpop.f32.mrf.mxu0
      %v1589 = vadd.f32 %v1514, %v1588
      %v1590 = vpop.f32.mrf.mxu0
      %1591 = vdwg.mxu0
      %v1592 = vsel %vm1251, %v1589, -inf
      %1593 = vmax.xlane.f32.xlu0 %v1592
      %v1594 = vpop.xlane.xlu0 %1593
      %v1595 = vsub.f32 %v1589, %v1594
      %v1596 = vmul.f32 %v1595, 1.442695
      %v1597 = vpow.pop %v1596
      %v1598 = vsel %vm1251, %v1597, 0.0
      %1599 = vadd.xlane.f32.xlu0 %v1598
      %v1600 = vpop.xlane.xlu0 %1599
      %v1601 = vrcp.pop %v1600
      %v1602 = vmul.f32 %v1597, %v1601
      %1603 = vrot.lane.b32.xlu0 %v1166, 64
      %v1604 = vpop.permute.xlu0 %1603
      %v1607 = vsel %vm1251, %v1602, 0
      %1609 = vmatprep.subr.mxu0 0.0
      %1610 = vmatpush1.msra.mxu0 0.0
      %1611 = vmatprep.subr.mxu0 0.0
      %1612 = vmatpush1.msra.mxu0 0.0
      %1613 = vmatprep.subr.mxu0 0.0
      %1614 = vmatpush1.msra.mxu0 0.0
      %1615 = vmatprep.subr.mxu0 0.0
      %1616 = vmatpush1.msra.mxu0 0.0
      %1617 = vmatprep.subr.mxu0 0.0
      %1618 = vmatpush1.msra.mxu0 0.0
      %1619 = vmatprep.subr.mxu0 0.0
      %1620 = vmatpush1.msra.mxu0 0.0
      %1621 = vmatprep.subr.mxu0 0.0
      %1622 = vmatpush1.msra.mxu0 0.0
      %1623 = vmatprep.subr.mxu0 0.0
      %1624 = vmatpush1.msra.mxu0 0.0
      %1625 = vmatprep.subr.mxu0 0.0
      %1626 = vmatpush1.msra.mxu0 0.0
      %1627 = vmatprep.subr.mxu0 0.0
      %1628 = vmatpush1.msra.mxu0 0.0
      %1629 = vmatprep.subr.mxu0 0.0
      %1630 = vmatpush1.msra.mxu0 0.0
      %1631 = vmatprep.subr.mxu0 0.0
      %1632 = vmatpush1.msra.mxu0 0.0
      %1633 = vmatprep.subr.mxu0 0.0
      %1634 = vmatpush1.msra.mxu0 0.0
      %1635 = vmatprep.subr.mxu0 0.0
      %1636 = vmatpush1.msra.mxu0 0.0
      %1637 = vmatprep.subr.mxu0 0.0
      %1638 = vmatpush1.msra.mxu0 0.0
      %1639 = vmatprep.subr.mxu0 0.0
      %1640 = vmatpush1.msra.mxu0 %v1604
      %1641 = vmatprep.subr.mxu0 0.0
      %1642 = vmatpush2.msra.mxu0 0.0
      %1643 = vmatprep.subr.mxu0 0.0
      %1644 = vmatpush2.msra.mxu0 0.0
      %1645 = vmatprep.subr.mxu0 0.0
      %1646 = vmatpush2.msra.mxu0 0.0
      %1647 = vmatprep.subr.mxu0 0.0
      %1648 = vmatpush2.msra.mxu0 0.0
      %1649 = vmatprep.subr.mxu0 0.0
      %1650 = vmatpush2.msra.mxu0 0.0
      %1651 = vmatprep.subr.mxu0 0.0
      %1652 = vmatpush2.msra.mxu0 0.0
      %1653 = vmatprep.subr.mxu0 0.0
      %1654 = vmatpush2.msra.mxu0 0.0
      %1655 = vmatprep.subr.mxu0 0.0
      %1656 = vmatpush2.msra.mxu0 0.0
      %1657 = vmatprep.subr.mxu0 0.0
      %1658 = vmatpush2.msra.mxu0 0.0
      %1659 = vmatprep.subr.mxu0 0.0
      %1660 = vmatpush2.msra.mxu0 0.0
      %1661 = vmatprep.subr.mxu0 0.0
      %1662 = vmatpush2.msra.mxu0 0.0
      %1663 = vmatprep.subr.mxu0 0.0
      %1664 = vmatpush2.msra.mxu0 0.0
      %1665 = vmatprep.subr.mxu0 0.0
      %1666 = vmatpush2.msra.mxu0 0.0
      %1667 = vmatprep.subr.mxu0 0.0
      %1668 = vmatpush2.msra.mxu0 0.0
      %1669 = vmatprep.subr.mxu0 0.0
      %1670 = vmatpush2.msra.mxu0 0.0
      %1671 = vmatprep.subr.mxu0 0.0
      %1672 = vmatpush2.msra.mxu0 0.0
      %1673 = vmatprep.mubr.f32.mxu0 0.0
      %1674 = vmatmul.mubr.f32.gmra.mxu0 %v1607
      %v1675 = vpop.f32.mrf.mxu0
      %v1676 = vadd.f32 0.0, %v1675
      %v1677 = vpop.f32.mrf.mxu0
      %1678 = vdwg.mxu0
      %1679 = vst.msk [vmem:[#allocation3 + $0x8] sm:$0xff] %vm1176, %v1676
      %1680 = vrot.lane.b32.xlu0 %v1166, 112
      %v1681 = vpop.permute.xlu0 %1680
      %1682 = vrot.lane.b32.xlu0 %v1166, 80
      %v1683 = vpop.permute.xlu0 %1682
      %v1684 = vsel %vm1176, %v1681, 0
      %v1686 = vsel %vm1176, %v1683, 0
      %1688 = vmatprep.subr.mxu0 0.0
      %1689 = vmatpush1.xpose.msra.mxu0 0.0
      %1690 = vmatprep.subr.mxu0 0.0
      %1691 = vmatpush1.xpose.msra.mxu0 0.0
      %1692 = vmatprep.subr.mxu0 0.0
      %1693 = vmatpush1.xpose.msra.mxu0 0.0
      %1694 = vmatprep.subr.mxu0 0.0
      %1695 = vmatpush1.xpose.msra.mxu0 0.0
      %1696 = vmatprep.subr.mxu0 0.0
      %1697 = vmatpush1.xpose.msra.mxu0 0.0
      %1698 = vmatprep.subr.mxu0 0.0
      %1699 = vmatpush1.xpose.msra.mxu0 0.0
      %1700 = vmatprep.subr.mxu0 0.0
      %1701 = vmatpush1.xpose.msra.mxu0 0.0
      %1702 = vmatprep.subr.mxu0 0.0
      %1703 = vmatpush1.xpose.msra.mxu0 0.0
      %1704 = vmatprep.subr.mxu0 0.0
      %1705 = vmatpush1.xpose.msra.mxu0 0.0
      %1706 = vmatprep.subr.mxu0 0.0
      %1707 = vmatpush1.xpose.msra.mxu0 0.0
      %1708 = vmatprep.subr.mxu0 0.0
      %1709 = vmatpush1.xpose.msra.mxu0 0.0
      %1710 = vmatprep.subr.mxu0 0.0
      %1711 = vmatpush1.xpose.msra.mxu0 0.0
      %1712 = vmatprep.subr.mxu0 0.0
      %1713 = vmatpush1.xpose.msra.mxu0 0.0
      %1714 = vmatprep.subr.mxu0 0.0
      %1715 = vmatpush1.xpose.msra.mxu0 0.0
      %1716 = vmatprep.subr.mxu0 0.0
      %1717 = vmatpush1.xpose.msra.mxu0 0.0
      %1718 = vmatprep.subr.mxu0 0.0
      %1719 = vmatpush1.xpose.msra.mxu0 %v1686
      %1720 = vmatprep.subr.mxu0 0.0
      %1721 = vmatpush2.xpose.msra.mxu0 0.0
      %1722 = vmatprep.subr.mxu0 0.0
      %1723 = vmatpush2.xpose.msra.mxu0 0.0
      %1724 = vmatprep.subr.mxu0 0.0
      %1725 = vmatpush2.xpose.msra.mxu0 0.0
      %1726 = vmatprep.subr.mxu0 0.0
      %1727 = vmatpush2.xpose.msra.mxu0 0.0
      %1728 = vmatprep.subr.mxu0 0.0
      %1729 = vmatpush2.xpose.msra.mxu0 0.0
      %1730 = vmatprep.subr.mxu0 0.0
      %1731 = vmatpush2.xpose.msra.mxu0 0.0
      %1732 = vmatprep.subr.mxu0 0.0
      %1733 = vmatpush2.xpose.msra.mxu0 0.0
      %1734 = vmatprep.subr.mxu0 0.0
      %1735 = vmatpush2.xpose.msra.mxu0 0.0
      %1736 = vmatprep.subr.mxu0 0.0
      %1737 = vmatpush2.xpose.msra.mxu0 0.0
      %1738 = vmatprep.subr.mxu0 0.0
      %1739 = vmatpush2.xpose.msra.mxu0 0.0
      %1740 = vmatprep.subr.mxu0 0.0
      %1741 = vmatpush2.xpose.msra.mxu0 0.0
      %1742 = vmatprep.subr.mxu0 0.0
      %1743 = vmatpush2.xpose.msra.mxu0 0.0
      %1744 = vmatprep.subr.mxu0 0.0
      %1745 = vmatpush2.xpose.msra.mxu0 0.0
      %1746 = vmatprep.subr.mxu0 0.0
      %1747 = vmatpush2.xpose.msra.mxu0 0.0
      %1748 = vmatprep.subr.mxu0 0.0
      %1749 = vmatpush2.xpose.msra.mxu0 0.0
      %1750 = vmatprep.subr.mxu0 0.0
      %1751 = vmatpush2.xpose.msra.mxu0 0.0
      %1752 = vmatprep.mubr.f32.mxu0 0.0
      %1753 = vmatmul.mubr.f32.gmra.mxu0 %v1684
      %v1754 = vpop.f32.mrf.mxu0
      %v1755 = vadd.f32 %v1514, %v1754
      %v1756 = vpop.f32.mrf.mxu0
      %1757 = vdwg.mxu0
      %v1758 = vsel %vm1251, %v1755, -inf
      %1759 = vmax.xlane.f32.xlu0 %v1758
      %v1760 = vpop.xlane.xlu0 %1759
      %v1761 = vsub.f32 %v1755, %v1760
      %v1762 = vmul.f32 %v1761, 1.442695
      %v1763 = vpow.pop %v1762
      %v1764 = vsel %vm1251, %v1763, 0.0
      %1765 = vadd.xlane.f32.xlu0 %v1764
      %v1766 = vpop.xlane.xlu0 %1765
      %v1767 = vrcp.pop %v1766
      %v1768 = vmul.f32 %v1763, %v1767
      %1769 = vrot.lane.b32.xlu0 %v1166, 48
      %v1770 = vpop.permute.xlu0 %1769
      %v1773 = vsel %vm1251, %v1768, 0
      %1775 = vmatprep.subr.mxu0 0.0
      %1776 = vmatpush1.msra.mxu0 0.0
      %1777 = vmatprep.subr.mxu0 0.0
      %1778 = vmatpush1.msra.mxu0 0.0
      %1779 = vmatprep.subr.mxu0 0.0
      %1780 = vmatpush1.msra.mxu0 0.0
      %1781 = vmatprep.subr.mxu0 0.0
      %1782 = vmatpush1.msra.mxu0 0.0
      %1783 = vmatprep.subr.mxu0 0.0
      %1784 = vmatpush1.msra.mxu0 0.0
      %1785 = vmatprep.subr.mxu0 0.0
      %1786 = vmatpush1.msra.mxu0 0.0
      %1787 = vmatprep.subr.mxu0 0.0
      %1788 = vmatpush1.msra.mxu0 0.0
      %1789 = vmatprep.subr.mxu0 0.0
      %1790 = vmatpush1.msra.mxu0 0.0
      %1791 = vmatprep.subr.mxu0 0.0
      %1792 = vmatpush1.msra.mxu0 0.0
      %1793 = vmatprep.subr.mxu0 0.0
      %1794 = vmatpush1.msra.mxu0 0.0
      %1795 = vmatprep.subr.mxu0 0.0
      %1796 = vmatpush1.msra.mxu0 0.0
      %1797 = vmatprep.subr.mxu0 0.0
      %1798 = vmatpush1.msra.mxu0 0.0
      %1799 = vmatprep.subr.mxu0 0.0
      %1800 = vmatpush1.msra.mxu0 0.0
      %1801 = vmatprep.subr.mxu0 0.0
      %1802 = vmatpush1.msra.mxu0 0.0
      %1803 = vmatprep.subr.mxu0 0.0
      %1804 = vmatpush1.msra.mxu0 0.0
      %1805 = vmatprep.subr.mxu0 0.0
      %1806 = vmatpush1.msra.mxu0 %v1770
      %1807 = vmatprep.subr.mxu0 0.0
      %1808 = vmatpush2.msra.mxu0 0.0
      %1809 = vmatprep.subr.mxu0 0.0
      %1810 = vmatpush2.msra.mxu0 0.0
      %1811 = vmatprep.subr.mxu0 0.0
      %1812 = vmatpush2.msra.mxu0 0.0
      %1813 = vmatprep.subr.mxu0 0.0
      %1814 = vmatpush2.msra.mxu0 0.0
      %1815 = vmatprep.subr.mxu0 0.0
      %1816 = vmatpush2.msra.mxu0 0.0
      %1817 = vmatprep.subr.mxu0 0.0
      %1818 = vmatpush2.msra.mxu0 0.0
      %1819 = vmatprep.subr.mxu0 0.0
      %1820 = vmatpush2.msra.mxu0 0.0
      %1821 = vmatprep.subr.mxu0 0.0
      %1822 = vmatpush2.msra.mxu0 0.0
      %1823 = vmatprep.subr.mxu0 0.0
      %1824 = vmatpush2.msra.mxu0 0.0
      %1825 = vmatprep.subr.mxu0 0.0
      %1826 = vmatpush2.msra.mxu0 0.0
      %1827 = vmatprep.subr.mxu0 0.0
      %1828 = vmatpush2.msra.mxu0 0.0
      %1829 = vmatprep.subr.mxu0 0.0
      %1830 = vmatpush2.msra.mxu0 0.0
      %1831 = vmatprep.subr.mxu0 0.0
      %1832 = vmatpush2.msra.mxu0 0.0
      %1833 = vmatprep.subr.mxu0 0.0
      %1834 = vmatpush2.msra.mxu0 0.0
      %1835 = vmatprep.subr.mxu0 0.0
      %1836 = vmatpush2.msra.mxu0 0.0
      %1837 = vmatprep.subr.mxu0 0.0
      %1838 = vmatpush2.msra.mxu0 0.0
      %1839 = vmatprep.mubr.f32.mxu0 0.0
      %1840 = vmatmul.mubr.f32.gmra.mxu0 %v1773
      %v1841 = vpop.f32.mrf.mxu0
      %v1842 = vadd.f32 0.0, %v1841
      %v1843 = vpop.f32.mrf.mxu0
      %1844 = vdwg.mxu0
      %1846 = vrot.lane.b32.xlu0 %v1842, 16
      %v1847 = vpop.permute.xlu0 %1846
      %1849 = vst.msk [vmem:[#allocation3 + $0x8] sm:$0xff] %vm1509, %v1847
      %v1850 = vld [vmem:[#allocation3] sm:$0xff]
      %v1851 = vld [vmem:[#allocation3 + $0x8] sm:$0xff]
      %v1852 = vld [vmem:[%s823] sm:$0xff]
      %v1853 = vld [vmem:[%s823 + $0x8] sm:$0xff]
      %v1854 = vld [vmem:[%s823 + $0x10] sm:$0xff]
      %v1855 = vld [vmem:[%s823 + $0x18] sm:$0xff]
      %v1856 = vld [vmem:[%s826] sm:$0x1]
      %v1858 = vlaneseq
      %v1859 = vshrl.u32 %v1858, 7
      %v1860 = vsub.s32 0, %v1859
      %v1861 = vrot.slane %v1856, %v1860
      %v1864 = vsel %vm1087, %v1850, 0
      %v1867 = vsel %vm1087, %v1851, 0
      %1869 = vmatprep.subr.mxu0 0.0
      %1870 = vmatpush1.msra.mxu0 0.0
      %1871 = vmatprep.subr.mxu0 0.0
      %1872 = vmatpush1.msra.mxu0 0.0
      %1873 = vmatprep.subr.mxu0 0.0
      %1874 = vmatpush1.msra.mxu0 0.0
      %1875 = vmatprep.subr.mxu0 0.0
      %1876 = vmatpush1.msra.mxu0 0.0
      %1877 = vmatprep.subr.mxu0 0.0
      %1878 = vmatpush1.msra.mxu0 0.0
      %1879 = vmatprep.subr.mxu0 0.0
      %1880 = vmatpush1.msra.mxu0 0.0
      %1881 = vmatprep.subr.mxu0 0.0
      %1882 = vmatpush1.msra.mxu0 0.0
      %1883 = vmatprep.subr.mxu0 0.0
      %1884 = vmatpush1.msra.mxu0 0.0
      %1885 = vmatprep.subr.mxu0 0.0
      %1886 = vmatpush1.msra.mxu0 0.0
      %1887 = vmatprep.subr.mxu0 0.0
      %1888 = vmatpush1.msra.mxu0 0.0
      %1889 = vmatprep.subr.mxu0 0.0
      %1890 = vmatpush1.msra.mxu0 0.0
      %1891 = vmatprep.subr.mxu0 0.0
      %1892 = vmatpush1.msra.mxu0 0.0
      %1893 = vmatprep.subr.mxu0 0.0
      %1894 = vmatpush1.msra.mxu0 %v1855
      %1895 = vmatprep.subr.mxu0 0.0
      %1896 = vmatpush1.msra.mxu0 %v1854
      %1897 = vmatprep.subr.mxu0 0.0
      %1898 = vmatpush1.msra.mxu0 %v1853
      %1899 = vmatprep.subr.mxu0 0.0
      %1900 = vmatpush1.msra.mxu0 %v1852
      %1901 = vmatprep.subr.mxu0 0.0
      %1902 = vmatpush2.msra.mxu0 0.0
      %1903 = vmatprep.subr.mxu0 0.0
      %1904 = vmatpush2.msra.mxu0 0.0
      %1905 = vmatprep.subr.mxu0 0.0
      %1906 = vmatpush2.msra.mxu0 0.0
      %1907 = vmatprep.subr.mxu0 0.0
      %1908 = vmatpush2.msra.mxu0 0.0
      %1909 = vmatprep.subr.mxu0 0.0
      %1910 = vmatpush2.msra.mxu0 0.0
      %1911 = vmatprep.subr.mxu0 0.0
      %1912 = vmatpush2.msra.mxu0 0.0
      %1913 = vmatprep.subr.mxu0 0.0
      %1914 = vmatpush2.msra.mxu0 0.0
      %1915 = vmatprep.subr.mxu0 0.0
      %1916 = vmatpush2.msra.mxu0 0.0
      %1917 = vmatprep.subr.mxu0 0.0
      %1918 = vmatpush2.msra.mxu0 0.0
      %1919 = vmatprep.subr.mxu0 0.0
      %1920 = vmatpush2.msra.mxu0 0.0
      %1921 = vmatprep.subr.mxu0 0.0
      %1922 = vmatpush2.msra.mxu0 0.0
      %1923 = vmatprep.subr.mxu0 0.0
      %1924 = vmatpush2.msra.mxu0 0.0
      %1925 = vmatprep.subr.mxu0 0.0
      %1926 = vmatpush2.msra.mxu0 0.0
      %1927 = vmatprep.subr.mxu0 0.0
      %1928 = vmatpush2.msra.mxu0 0.0
      %1929 = vmatprep.subr.mxu0 0.0
      %1930 = vmatpush2.msra.mxu0 0.0
      %1931 = vmatprep.subr.mxu0 0.0
      %1932 = vmatpush2.msra.mxu0 0.0
      %1933 = vmatprep.mubr.f32.mxu0 0.0
      %1934 = vmatmul.mubr.f32.gmra.mxu0 %v1864
      %v1935 = vpop.f32.mrf.mxu0
      %v1936 = vadd.f32 %v1861, %v1935
      %v1937 = vpop.f32.mrf.mxu0
      %1938 = vmatprep.mubr.f32.mxu0 0.0
      %1939 = vmatmul.mubr.f32.gmra.mxu0 %v1867
      %v1940 = vpop.f32.mrf.mxu0
      %v1941 = vadd.f32 %v1861, %v1940
      %v1942 = vpop.f32.mrf.mxu0
      %1943 = vdwg.mxu0
      %v1944 = vadd.f32 %v1936, %v1070
      %v1945 = vadd.f32 %v1941, %v1071
      %v1946 = vld [vmem:[%s829] sm:$0x1]
      %v1947 = vld [vmem:[%s832] sm:$0x1]
      %v1948 = vsel %vm1087, %v1944, 0.0
      %1949 = vadd.xlane.f32.xlu0 %v1948
      %v1950 = vpop.xlane.xlu0 %1949
      %v1951 = vsel %vm1087, %v1945, 0.0
      %1952 = vadd.xlane.f32.xlu0 %v1951
      %v1953 = vpop.xlane.xlu0 %1952
      %v1954 = vrcp.pop 32.0
      %v1955 = vmul.f32 %v1950, %v1954
      %v1956 = vmul.f32 %v1953, %v1954
      %v1957 = vsub.f32 %v1944, %v1955
      %v1958 = vsub.f32 %v1945, %v1956
      %v1959 = vmul.f32 %v1957, %v1957
      %v1960 = vmul.f32 %v1958, %v1958
      %v1961 = vsel %vm1087, %v1959, 0.0
      %1962 = vadd.xlane.f32.xlu0 %v1961
      %v1963 = vpop.xlane.xlu0 %1962
      %v1964 = vsel %vm1087, %v1960, 0.0
      %1965 = vadd.xlane.f32.xlu0 %v1964
      %v1966 = vpop.xlane.xlu0 %1965
      %v1967 = vmul.f32 %v1963, %v1954
      %v1968 = vmul.f32 %v1966, %v1954
      %v1969 = vadd.f32 %v1967, 1e-12
      %v1970 = vadd.f32 %v1968, 1e-12
      %v1971 = vrsqrt.pop %v1969
      %v1972 = vrsqrt.pop %v1970
      %v1973 = vmul.f32 %v1957, %v1971
      %v1974 = vmul.f32 %v1958, %v1972
      %v1976 = vlaneseq
      %v1977 = vshrl.u32 %v1976, 7
      %v1978 = vsub.s32 0, %v1977
      %v1979 = vrot.slane %v1946, %v1978
      %v1981 = vmul.f32 %v1973, %v1979
      %v1982 = vmul.f32 %v1974, %v1979
      %v1984 = vlaneseq
      %v1985 = vshrl.u32 %v1984, 7
      %v1986 = vsub.s32 0, %v1985
      %v1987 = vrot.slane %v1947, %v1986
      %v1989 = vadd.f32 %v1981, %v1987
      %v1990 = vadd.f32 %v1982, %v1987
      %v1991 = vld [vmem:[%s837] sm:$0xff]
      %v1992 = vld [vmem:[%s837 + $0x8] sm:$0xff]
      %v1993 = vld [vmem:[%s837 + $0x10] sm:$0xff]
      %v1994 = vld [vmem:[%s837 + $0x18] sm:$0xff]
      %v1995 = vld [vmem:[%s840] sm:$0x1]
      %v1997 = vlaneseq
      %v1998 = vshrl.u32 %v1997, 7
      %v1999 = vsub.s32 0, %v1998
      %v2000 = vrot.slane %v1995, %v1999
      %v2003 = vsel %vm1087, %v1989, 0
      %v2006 = vsel %vm1087, %v1990, 0
      %2008 = vmatprep.subr.mxu0 0.0
      %2009 = vmatpush1.msra.mxu0 0.0
      %2010 = vmatprep.subr.mxu0 0.0
      %2011 = vmatpush1.msra.mxu0 0.0
      %2012 = vmatprep.subr.mxu0 0.0
      %2013 = vmatpush1.msra.mxu0 0.0
      %2014 = vmatprep.subr.mxu0 0.0
      %2015 = vmatpush1.msra.mxu0 0.0
      %2016 = vmatprep.subr.mxu0 0.0
      %2017 = vmatpush1.msra.mxu0 0.0
      %2018 = vmatprep.subr.mxu0 0.0
      %2019 = vmatpush1.msra.mxu0 0.0
      %2020 = vmatprep.subr.mxu0 0.0
      %2021 = vmatpush1.msra.mxu0 0.0
      %2022 = vmatprep.subr.mxu0 0.0
      %2023 = vmatpush1.msra.mxu0 0.0
      %2024 = vmatprep.subr.mxu0 0.0
      %2025 = vmatpush1.msra.mxu0 0.0
      %2026 = vmatprep.subr.mxu0 0.0
      %2027 = vmatpush1.msra.mxu0 0.0
      %2028 = vmatprep.subr.mxu0 0.0
      %2029 = vmatpush1.msra.mxu0 0.0
      %2030 = vmatprep.subr.mxu0 0.0
      %2031 = vmatpush1.msra.mxu0 0.0
      %2032 = vmatprep.subr.mxu0 0.0
      %2033 = vmatpush1.msra.mxu0 %v1994
      %2034 = vmatprep.subr.mxu0 0.0
      %2035 = vmatpush1.msra.mxu0 %v1993
      %2036 = vmatprep.subr.mxu0 0.0
      %2037 = vmatpush1.msra.mxu0 %v1992
      %2038 = vmatprep.subr.mxu0 0.0
      %2039 = vmatpush1.msra.mxu0 %v1991
      %2040 = vmatprep.subr.mxu0 0.0
      %2041 = vmatpush2.msra.mxu0 0.0
      %2042 = vmatprep.subr.mxu0 0.0
      %2043 = vmatpush2.msra.mxu0 0.0
      %2044 = vmatprep.subr.mxu0 0.0
      %2045 = vmatpush2.msra.mxu0 0.0
      %2046 = vmatprep.subr.mxu0 0.0
      %2047 = vmatpush2.msra.mxu0 0.0
      %2048 = vmatprep.subr.mxu0 0.0
      %2049 = vmatpush2.msra.mxu0 0.0
      %2050 = vmatprep.subr.mxu0 0.0
      %2051 = vmatpush2.msra.mxu0 0.0
      %2052 = vmatprep.subr.mxu0 0.0
      %2053 = vmatpush2.msra.mxu0 0.0
      %2054 = vmatprep.subr.mxu0 0.0
      %2055 = vmatpush2.msra.mxu0 0.0
      %2056 = vmatprep.subr.mxu0 0.0
      %2057 = vmatpush2.msra.mxu0 0.0
      %2058 = vmatprep.subr.mxu0 0.0
      %2059 = vmatpush2.msra.mxu0 0.0
      %2060 = vmatprep.subr.mxu0 0.0
      %2061 = vmatpush2.msra.mxu0 0.0
      %2062 = vmatprep.subr.mxu0 0.0
      %2063 = vmatpush2.msra.mxu0 0.0
      %2064 = vmatprep.subr.mxu0 0.0
      %2065 = vmatpush2.msra.mxu0 0.0
      %2066 = vmatprep.subr.mxu0 0.0
      %2067 = vmatpush2.msra.mxu0 0.0
      %2068 = vmatprep.subr.mxu0 0.0
      %2069 = vmatpush2.msra.mxu0 0.0
      %2070 = vmatprep.subr.mxu0 0.0
      %2071 = vmatpush2.msra.mxu0 0.0
      %2072 = vmatprep.mubr.f32.mxu0 0.0
      %2073 = vmatmul.mubr.f32.gmra.mxu0 %v2003
      %v2074 = vpop.f32.mrf.mxu0
      %v2075 = vadd.f32 %v2000, %v2074
      %v2076 = vpop.f32.mrf.mxu0
      %2077 = vmatprep.mubr.f32.mxu0 0.0
      %2078 = vmatmul.mubr.f32.gmra.mxu0 %v2006
      %v2079 = vpop.f32.mrf.mxu0
      %v2080 = vadd.f32 %v2000, %v2079
      %v2081 = vpop.f32.mrf.mxu0
      %2082 = vdwg.mxu0
      %v2083 = vmul.f32 %v2075, 0.5
      %v2084 = vmul.f32 %v2080, 0.5
      %v2085 = vmul.f32 %v2075, 0.044715
      %v2086 = vmul.f32 %v2080, 0.044715
      %v2087 = vmul.f32 %v2085, %v2075
      %v2088 = vmul.f32 %v2086, %v2080
      %v2089 = vmul.f32 %v2087, %v2075
      %v2090 = vmul.f32 %v2088, %v2080
      %v2091 = vadd.f32 %v2075, %v2089
      %v2092 = vadd.f32 %v2080, %v2090
      %v2093 = vmul.f32 %v2091, 0.7978846
      %v2094 = vmul.f32 %v2092, 0.7978846
      %v2095 = vtanh.pop %v2093
      %v2096 = vtanh.pop %v2094
      %v2097 = vadd.f32 %v2095, 1.0
      %v2098 = vadd.f32 %v2096, 1.0
      %v2099 = vmul.f32 %v2083, %v2097
      %v2100 = vmul.f32 %v2084, %v2098
      %v2101 = vld [vmem:[%s845] sm:$0xff]
      %v2102 = vld [vmem:[%s845 + $0x8] sm:$0xff]
      %v2103 = vld [vmem:[%s845 + $0x10] sm:$0xff]
      %v2104 = vld [vmem:[%s845 + $0x18] sm:$0xff]
      %v2105 = vld [vmem:[%s845 + $0x20] sm:$0xff]
      %v2106 = vld [vmem:[%s845 + $0x28] sm:$0xff]
      %v2107 = vld [vmem:[%s845 + $0x30] sm:$0xff]
      %v2108 = vld [vmem:[%s845 + $0x38] sm:$0xff]
      %v2109 = vld [vmem:[%s848] sm:$0x1]
      %v2111 = vlaneseq
      %v2112 = vshrl.u32 %v2111, 7
      %v2113 = vsub.s32 0, %v2112
      %v2114 = vrot.slane %v2109, %v2113
      %vm2116 = vcmask 523264
      %v2118 = vsel %vm2116, %v2099, 0
      %v2121 = vsel %vm2116, %v2100, 0
      %2123 = vmatprep.subr.mxu0 0.0
      %2124 = vmatpush1.msra.mxu0 0.0
      %2125 = vmatprep.subr.mxu0 0.0
      %2126 = vmatpush1.msra.mxu0 0.0
      %2127 = vmatprep.subr.mxu0 0.0
      %2128 = vmatpush1.msra.mxu0 0.0
      %2129 = vmatprep.subr.mxu0 0.0
      %2130 = vmatpush1.msra.mxu0 0.0
      %2131 = vmatprep.subr.mxu0 0.0
      %2132 = vmatpush1.msra.mxu0 0.0
      %2133 = vmatprep.subr.mxu0 0.0
      %2134 = vmatpush1.msra.mxu0 0.0
      %2135 = vmatprep.subr.mxu0 0.0
      %2136 = vmatpush1.msra.mxu0 0.0
      %2137 = vmatprep.subr.mxu0 0.0
      %2138 = vmatpush1.msra.mxu0 0.0
      %2139 = vmatprep.subr.mxu0 0.0
      %2140 = vmatpush1.msra.mxu0 %v2108
      %2141 = vmatprep.subr.mxu0 0.0
      %2142 = vmatpush1.msra.mxu0 %v2107
      %2143 = vmatprep.subr.mxu0 0.0
      %2144 = vmatpush1.msra.mxu0 %v2106
      %2145 = vmatprep.subr.mxu0 0.0
      %2146 = vmatpush1.msra.mxu0 %v2105
      %2147 = vmatprep.subr.mxu0 0.0
      %2148 = vmatpush1.msra.mxu0 %v2104
      %2149 = vmatprep.subr.mxu0 0.0
      %2150 = vmatpush1.msra.mxu0 %v2103
      %2151 = vmatprep.subr.mxu0 0.0
      %2152 = vmatpush1.msra.mxu0 %v2102
      %2153 = vmatprep.subr.mxu0 0.0
      %2154 = vmatpush1.msra.mxu0 %v2101
      %2155 = vmatprep.subr.mxu0 0.0
      %2156 = vmatpush2.msra.mxu0 0.0
      %2157 = vmatprep.subr.mxu0 0.0
      %2158 = vmatpush2.msra.mxu0 0.0
      %2159 = vmatprep.subr.mxu0 0.0
      %2160 = vmatpush2.msra.mxu0 0.0
      %2161 = vmatprep.subr.mxu0 0.0
      %2162 = vmatpush2.msra.mxu0 0.0
      %2163 = vmatprep.subr.mxu0 0.0
      %2164 = vmatpush2.msra.mxu0 0.0
      %2165 = vmatprep.subr.mxu0 0.0
      %2166 = vmatpush2.msra.mxu0 0.0
      %2167 = vmatprep.subr.mxu0 0.0
      %2168 = vmatpush2.msra.mxu0 0.0
      %2169 = vmatprep.subr.mxu0 0.0
      %2170 = vmatpush2.msra.mxu0 0.0
      %2171 = vmatprep.subr.mxu0 0.0
      %2172 = vmatpush2.msra.mxu0 0.0
      %2173 = vmatprep.subr.mxu0 0.0
      %2174 = vmatpush2.msra.mxu0 0.0
      %2175 = vmatprep.subr.mxu0 0.0
      %2176 = vmatpush2.msra.mxu0 0.0
      %2177 = vmatprep.subr.mxu0 0.0
      %2178 = vmatpush2.msra.mxu0 0.0
      %2179 = vmatprep.subr.mxu0 0.0
      %2180 = vmatpush2.msra.mxu0 0.0
      %2181 = vmatprep.subr.mxu0 0.0
      %2182 = vmatpush2.msra.mxu0 0.0
      %2183 = vmatprep.subr.mxu0 0.0
      %2184 = vmatpush2.msra.mxu0 0.0
      %2185 = vmatprep.subr.mxu0 0.0
      %2186 = vmatpush2.msra.mxu0 0.0
      %2187 = vmatprep.mubr.f32.mxu0 0.0
      %2188 = vmatmul.mubr.f32.gmra.mxu0 %v2118
      %v2189 = vpop.f32.mrf.mxu0
      %v2190 = vadd.f32 %v2114, %v2189
      %v2191 = vpop.f32.mrf.mxu0
      %2192 = vmatprep.mubr.f32.mxu0 0.0
      %2193 = vmatmul.mubr.f32.gmra.mxu0 %v2121
      %v2194 = vpop.f32.mrf.mxu0
      %v2195 = vadd.f32 %v2114, %v2194
      %v2196 = vpop.f32.mrf.mxu0
      %2197 = vdwg.mxu0
      %v2198 = vadd.f32 %v2190, %v1989
      %v2199 = vadd.f32 %v2195, %v1990
      %v2200 = vld [vmem:[%s851] sm:$0x1]
      %v2201 = vld [vmem:[%s854] sm:$0x1]
      %v2202 = vsel %vm1087, %v2198, 0.0
      %2203 = vadd.xlane.f32.xlu0 %v2202
      %v2204 = vpop.xlane.xlu0 %2203
      %v2205 = vsel %vm1087, %v2199, 0.0
      %2206 = vadd.xlane.f32.xlu0 %v2205
      %v2207 = vpop.xlane.xlu0 %2206
      %v2208 = vmul.f32 %v2204, %v1954
      %v2209 = vmul.f32 %v2207, %v1954
      %v2210 = vsub.f32 %v2198, %v2208
      %v2211 = vsub.f32 %v2199, %v2209
      %v2212 = vmul.f32 %v2210, %v2210
      %v2213 = vmul.f32 %v2211, %v2211
      %v2214 = vsel %vm1087, %v2212, 0.0
      %2215 = vadd.xlane.f32.xlu0 %v2214
      %v2216 = vpop.xlane.xlu0 %2215
      %v2217 = vsel %vm1087, %v2213, 0.0
      %2218 = vadd.xlane.f32.xlu0 %v2217
      %v2219 = vpop.xlane.xlu0 %2218
      %v2220 = vmul.f32 %v2216, %v1954
      %v2221 = vmul.f32 %v2219, %v1954
      %v2222 = vadd.f32 %v2220, 1e-12
      %v2223 = vadd.f32 %v2221, 1e-12
      %v2224 = vrsqrt.pop %v2222
      %v2225 = vrsqrt.pop %v2223
      %v2226 = vmul.f32 %v2210, %v2224
      %v2227 = vmul.f32 %v2211, %v2225
      %v2229 = vlaneseq
      %v2230 = vshrl.u32 %v2229, 7
      %v2231 = vsub.s32 0, %v2230
      %v2232 = vrot.slane %v2200, %v2231
      %v2234 = vmul.f32 %v2226, %v2232
      %v2235 = vmul.f32 %v2227, %v2232
      %v2237 = vlaneseq
      %v2238 = vshrl.u32 %v2237, 7
      %v2239 = vsub.s32 0, %v2238
      %v2240 = vrot.slane %v2201, %v2239
      %v2242 = vadd.f32 %v2234, %v2240
      %v2243 = vadd.f32 %v2235, %v2240
      %2244 = vst.msk [vmem:[#allocation2] sm:$0xff] %vm1087, %v2242
      %2245 = vst.msk [vmem:[#allocation2 + $0x8] sm:$0xff] %vm1087, %v2243
      %p2246 = scmp.eq.s32.totalorder %s47, 1
      // Predicated region
      $region113: #{sentiment_classifier_forward.1} parent=107 // pred_check
        %p2247 = pneg %p2246
      $region114: #{sentiment_classifier_forward.1} parent=107 // pred_check_branch
        %2249 = sbr.rel (%p2247) target = $region116
      $region115: #{sentiment_classifier_forward.1} parent=107 // pred_region
        %v2250 = vld [vmem:[%s22] sm:$0x1]
        %v2251 = vld [vmem:[%s20] sm:$0xff]
        %v2252 = vld [vmem:[%s20 + $0x8] sm:$0xff]
        %v2253 = vld [vmem:[%s20 + $0x10] sm:$0xff]
        %v2254 = vld [vmem:[%s20 + $0x18] sm:$0xff]
        %v2255 = vld [vmem:[%s21] sm:$0x1]
        %v2257 = vsel %vm1087, %v2242, 0
        %2259 = vmatprep.subr.mxu0 0.0
        %2260 = vmatpush1.msra.mxu0 0.0
        %2261 = vmatprep.subr.mxu0 0.0
        %2262 = vmatpush1.msra.mxu0 0.0
        %2263 = vmatprep.subr.mxu0 0.0
        %2264 = vmatpush1.msra.mxu0 0.0
        %2265 = vmatprep.subr.mxu0 0.0
        %2266 = vmatpush1.msra.mxu0 0.0
        %2267 = vmatprep.subr.mxu0 0.0
        %2268 = vmatpush1.msra.mxu0 0.0
        %2269 = vmatprep.subr.mxu0 0.0
        %2270 = vmatpush1.msra.mxu0 0.0
        %2271 = vmatprep.subr.mxu0 0.0
        %2272 = vmatpush1.msra.mxu0 0.0
        %2273 = vmatprep.subr.mxu0 0.0
        %2274 = vmatpush1.msra.mxu0 0.0
        %2275 = vmatprep.subr.mxu0 0.0
        %2276 = vmatpush1.msra.mxu0 0.0
        %2277 = vmatprep.subr.mxu0 0.0
        %2278 = vmatpush1.msra.mxu0 0.0
        %2279 = vmatprep.subr.mxu0 0.0
        %2280 = vmatpush1.msra.mxu0 0.0
        %2281 = vmatprep.subr.mxu0 0.0
        %2282 = vmatpush1.msra.mxu0 0.0
        %2283 = vmatprep.subr.mxu0 0.0
        %2284 = vmatpush1.msra.mxu0 %v2254
        %2285 = vmatprep.subr.mxu0 0.0
        %2286 = vmatpush1.msra.mxu0 %v2253
        %2287 = vmatprep.subr.mxu0 0.0
        %2288 = vmatpush1.msra.mxu0 %v2252
        %2289 = vmatprep.subr.mxu0 0.0
        %2290 = vmatpush1.msra.mxu0 %v2251
        %2291 = vmatprep.subr.mxu0 0.0
        %2292 = vmatpush2.msra.mxu0 0.0
        %2293 = vmatprep.subr.mxu0 0.0
        %2294 = vmatpush2.msra.mxu0 0.0
        %2295 = vmatprep.subr.mxu0 0.0
        %2296 = vmatpush2.msra.mxu0 0.0
        %2297 = vmatprep.subr.mxu0 0.0
        %2298 = vmatpush2.msra.mxu0 0.0
        %2299 = vmatprep.subr.mxu0 0.0
        %2300 = vmatpush2.msra.mxu0 0.0
        %2301 = vmatprep.subr.mxu0 0.0
        %2302 = vmatpush2.msra.mxu0 0.0
        %2303 = vmatprep.subr.mxu0 0.0
        %2304 = vmatpush2.msra.mxu0 0.0
        %2305 = vmatprep.subr.mxu0 0.0
        %2306 = vmatpush2.msra.mxu0 0.0
        %2307 = vmatprep.subr.mxu0 0.0
        %2308 = vmatpush2.msra.mxu0 0.0
        %2309 = vmatprep.subr.mxu0 0.0
        %2310 = vmatpush2.msra.mxu0 0.0
        %2311 = vmatprep.subr.mxu0 0.0
        %2312 = vmatpush2.msra.mxu0 0.0
        %2313 = vmatprep.subr.mxu0 0.0
        %2314 = vmatpush2.msra.mxu0 0.0
        %2315 = vmatprep.subr.mxu0 0.0
        %2316 = vmatpush2.msra.mxu0 0.0
        %2317 = vmatprep.subr.mxu0 0.0
        %2318 = vmatpush2.msra.mxu0 0.0
        %2319 = vmatprep.subr.mxu0 0.0
        %2320 = vmatpush2.msra.mxu0 0.0
        %2321 = vmatprep.subr.mxu0 0.0
        %2322 = vmatpush2.msra.mxu0 0.0
        %2323 = vmatprep.mubr.f32.mxu0 0.0
        %2324 = vmatmul.mubr.f32.gmra.mxu0 %v2257
        %v2325 = vpop.f32.mrf.mxu0
        %v2326 = vadd.f32 %v2255, %v2325
        %v2327 = vpop.f32.mrf.mxu0
        %2328 = vdwg.mxu0
        %v2329 = vtanh.pop %v2326
        %v2330 = vmul.f32 %v2329, %v2250
        %vm2331 = vcmask 253952
        %v2332 = vsel %vm2331, %v2330, 0.0
        %2333 = vadd.xlane.f32.xlu0 %v2332
        %v2334 = vpop.xlane.xlu0 %2333
        %v2335 = vld [vmem:[#allocation7] sm:$0x1]
        %v2336 = vadd.f32 %v2334, %v2335
        %vm2337 = vcmask 0
        %2338 = vst.msk [vmem:[%s24] sm:$0x1] %vm2337, %v2336
        %v2339 = vld [vmem:[%s20] sm:$0xff]
        %v2340 = vld [vmem:[%s20 + $0x8] sm:$0xff]
        %v2341 = vld [vmem:[%s20 + $0x10] sm:$0xff]
        %v2342 = vld [vmem:[%s20 + $0x18] sm:$0xff]
        %v2343 = vld [vmem:[%s21] sm:$0x1]
        %v2345 = vsel %vm1087, %v2243, 0
        %2347 = vmatprep.subr.mxu0 0.0
        %2348 = vmatpush1.msra.mxu0 0.0
        %2349 = vmatprep.subr.mxu0 0.0
        %2350 = vmatpush1.msra.mxu0 0.0
        %2351 = vmatprep.subr.mxu0 0.0
        %2352 = vmatpush1.msra.mxu0 0.0
        %2353 = vmatprep.subr.mxu0 0.0
        %2354 = vmatpush1.msra.mxu0 0.0
        %2355 = vmatprep.subr.mxu0 0.0
        %2356 = vmatpush1.msra.mxu0 0.0
        %2357 = vmatprep.subr.mxu0 0.0
        %2358 = vmatpush1.msra.mxu0 0.0
        %2359 = vmatprep.subr.mxu0 0.0
        %2360 = vmatpush1.msra.mxu0 0.0
        %2361 = vmatprep.subr.mxu0 0.0
        %2362 = vmatpush1.msra.mxu0 0.0
        %2363 = vmatprep.subr.mxu0 0.0
        %2364 = vmatpush1.msra.mxu0 0.0
        %2365 = vmatprep.subr.mxu0 0.0
        %2366 = vmatpush1.msra.mxu0 0.0
        %2367 = vmatprep.subr.mxu0 0.0
        %2368 = vmatpush1.msra.mxu0 0.0
        %2369 = vmatprep.subr.mxu0 0.0
        %2370 = vmatpush1.msra.mxu0 0.0
        %2371 = vmatprep.subr.mxu0 0.0
        %2372 = vmatpush1.msra.mxu0 %v2342
        %2373 = vmatprep.subr.mxu0 0.0
        %2374 = vmatpush1.msra.mxu0 %v2341
        %2375 = vmatprep.subr.mxu0 0.0
        %2376 = vmatpush1.msra.mxu0 %v2340
        %2377 = vmatprep.subr.mxu0 0.0
        %2378 = vmatpush1.msra.mxu0 %v2339
        %2379 = vmatprep.subr.mxu0 0.0
        %2380 = vmatpush2.msra.mxu0 0.0
        %2381 = vmatprep.subr.mxu0 0.0
        %2382 = vmatpush2.msra.mxu0 0.0
        %2383 = vmatprep.subr.mxu0 0.0
        %2384 = vmatpush2.msra.mxu0 0.0
        %2385 = vmatprep.subr.mxu0 0.0
        %2386 = vmatpush2.msra.mxu0 0.0
        %2387 = vmatprep.subr.mxu0 0.0
        %2388 = vmatpush2.msra.mxu0 0.0
        %2389 = vmatprep.subr.mxu0 0.0
        %2390 = vmatpush2.msra.mxu0 0.0
        %2391 = vmatprep.subr.mxu0 0.0
        %2392 = vmatpush2.msra.mxu0 0.0
        %2393 = vmatprep.subr.mxu0 0.0
        %2394 = vmatpush2.msra.mxu0 0.0
        %2395 = vmatprep.subr.mxu0 0.0
        %2396 = vmatpush2.msra.mxu0 0.0
        %2397 = vmatprep.subr.mxu0 0.0
        %2398 = vmatpush2.msra.mxu0 0.0
        %2399 = vmatprep.subr.mxu0 0.0
        %2400 = vmatpush2.msra.mxu0 0.0
        %2401 = vmatprep.subr.mxu0 0.0
        %2402 = vmatpush2.msra.mxu0 0.0
        %2403 = vmatprep.subr.mxu0 0.0
        %2404 = vmatpush2.msra.mxu0 0.0
        %2405 = vmatprep.subr.mxu0 0.0
        %2406 = vmatpush2.msra.mxu0 0.0
        %2407 = vmatprep.subr.mxu0 0.0
        %2408 = vmatpush2.msra.mxu0 0.0
        %2409 = vmatprep.subr.mxu0 0.0
        %2410 = vmatpush2.msra.mxu0 0.0
        %2411 = vmatprep.mubr.f32.mxu0 0.0
        %2412 = vmatmul.mubr.f32.gmra.mxu0 %v2345
        %v2413 = vpop.f32.mrf.mxu0
        %v2414 = vadd.f32 %v2343, %v2413
        %v2415 = vpop.f32.mrf.mxu0
        %2416 = vdwg.mxu0
        %v2417 = vtanh.pop %v2414
        %v2418 = vmul.f32 %v2417, %v2250
        %v2419 = vsel %vm2331, %v2418, 0.0
        %2420 = vadd.xlane.f32.xlu0 %v2419
        %v2421 = vpop.xlane.xlu0 %2420
        %v2422 = vld [vmem:[#allocation7] sm:$0x1]
        %v2423 = vadd.f32 %v2421, %v2422
        %2424 = vst.msk [vmem:[%s24 + $0x1] sm:$0x1] %vm2337, %v2423
      $region116: #{sentiment_classifier_forward.1} parent=107 // pred_fallthru
        _
      // Predicated region
      $region117: #{sentiment_classifier_forward.1} parent=107 // pred_check
        %p2425 = pneg %p582
      $region118: #{sentiment_classifier_forward.1} parent=107 // pred_check_branch
        %2427 = sbr.rel (%p2425) target = $region120
      $region119: #{sentiment_classifier_forward.1} parent=107 // pred_region
        _
      $region120: #{sentiment_classifier_forward.1} parent=107 // pred_fallthru
        _
      // Predicated region
      $region121: #{sentiment_classifier_forward.1} parent=107 // pred_check
        %p2428 = pneg %p582
      $region122: #{sentiment_classifier_forward.1} parent=107 // pred_check_branch
        %2430 = sbr.rel (%p2428) target = $region124
      $region123: #{sentiment_classifier_forward.1} parent=107 // pred_region
        _
      $region124: #{sentiment_classifier_forward.1} parent=107 // pred_fallthru
        _
    $region108: #{sentiment_classifier_forward.1} parent=5 // pred_fallthru
      _
    %p2431 = scmp.le.s32.totalorder 2, %s42
    // Predicated region
    $region125: #{sentiment_classifier_forward.1} parent=5 // pred_check
      %p2432 = pneg %p2431
    $region126: #{sentiment_classifier_forward.1} parent=5 // pred_check_branch
      %2434 = sbr.rel (%p2432) target = $region128
    $region127: #{sentiment_classifier_forward.1} parent=5 // pred_region
      %s2435 = ssub.s32 %s42, 2
    $region128: #{sentiment_classifier_forward.1} parent=5 // pred_fallthru
      _
  $region6: #{sentiment_classifier_forward.1} parent=0 // loop_footer
    %s46 = sadd.s32 1, %s42
  $region7: #{sentiment_classifier_forward.1} parent=0 // loop_footer_branch
    %41 = sbr.rel target = $region3
  $region8: #{sentiment_classifier_forward.1} parent=0 // loop_exit
    _

</llo_original>
